<compile_context>
chip_gen: v7x
topology: tpu7x:2x2x1
jax: 0.10.0
libtpu: 0.0.40
codegen_flags: <defaults>
</compile_context>

<pallas_src>
import functools

import numpy as np
import jax
import jax.numpy as jnp
from jax.experimental import pallas as pl
from jax.experimental.pallas import tpu as pltpu


# ---------------------------------------------------------------------------
# Fused kernel (one grid step == one sample)
# ---------------------------------------------------------------------------

def _fused_kernel(x_ref,      # (1, Cin, H, W)        NCHW input block
                  e_ref,      # (Cin, W, W*Cin)       channel scatter: NCHW -> planar
                  p1_ref,     # (2, H, H)             row shift -1/+1 for conv1
                  m1_ref,     # (3, W*Cin, W*C1)      banded conv1 weights (per dh)
                  b1_ref,     # (1, W*C1)
                  s1_ref,     # (2, H/2, H)           pool1 row selectors (even/odd)
                  t1_ref,     # (2, W*C1, W/2*C1)     pool1 col selectors (even/odd)
                  p2_ref,     # (2, H/2, H/2)
                  m2_ref,     # (3, W/2*C1, W/2*C2)
                  b2_ref,     # (1, W/2*C2)
                  s2_ref,     # (2, H/4, H/2)
                  t2_ref,     # (2, W/2*C2, W/4*C2)
                  fcw_ref,    # (H/4, W/4*C2, HID)    fc weight, rows in planar order
                  fcb_ref,    # (1, HID)
                  hw_ref,     # (HID, C*STEP)         head weight, columns permuted
                  hb_ref,     # (1, C*STEP)
                  cmask_ref,  # (C, C*STEP)           cell-membership mask
                  ksum_ref,   # (C*STEP, STEP)        lane "unflatten" selector
                  o_ref,      # (1, C, STEP)
                  *, n_boxes):
    f32 = jnp.float32
    cin = x_ref.shape[1]

    def mm(a, bmat):
        return jnp.dot(a, bmat, preferred_element_type=f32)

    # ---- NCHW -> planar (H, W*Cin): planar[h, w*Cin + ci] = x[ci, h, w] ----
    planar = mm(x_ref[0, 0], e_ref[0])
    for ci in range(1, cin):
        planar = planar + mm(x_ref[0, ci], e_ref[ci])

    # ---- 3x3 "same" conv + ReLU: sum of 3 banded matmuls (one per dh) ----
    def conv_relu(act, p_ref, m_ref, b_ref):
        y = mm(act, m_ref[1])                        # dh =  0
        y = y + mm(mm(p_ref[0], act), m_ref[0])      # dh = -1  (zero-padded rows)
        y = y + mm(mm(p_ref[1], act), m_ref[2])      # dh = +1
        return jnp.maximum(y + b_ref[...], 0.0)

    # ---- 2x2 max-pool: selection matmuls + elementwise max (pure MXU/VPU) ----
    def maxpool(act, s_ref, t_ref):
        v = jnp.maximum(mm(s_ref[0], act), mm(s_ref[1], act))    # pool rows
        return jnp.maximum(mm(v, t_ref[0]), mm(v, t_ref[1]))     # pool cols

    act = maxpool(conv_relu(planar, p1_ref, m1_ref, b1_ref), s1_ref, t1_ref)
    act = maxpool(conv_relu(act, p2_ref, m2_ref, b2_ref), s2_ref, t2_ref)

    # ---- fully connected + ReLU (NCHW-flatten order folded into fcw rows) ----
    acc = fcb_ref[...]
    for h in range(fcw_ref.shape[0]):
        acc = acc + mm(act[h:h + 1, :], fcw_ref[h])
    fc = jnp.maximum(acc, 0.0)
    # TODO(synk): dropout > 0 path not implemented (module default p=0 skips it);
    # BatchNorm1d is declared but never used in forward(), matching the reference.

    # ---- YOLO head: linear, then per-cell sigmoid (coords) / softmax (classes) ----
    logits = mm(fc, hw_ref[...]) + hb_ref[...]            # (1, C*STEP), permuted cols
    cells = mm(cmask_ref[...] * logits, ksum_ref[...])    # (C, STEP) per-cell logits

    lane = jax.lax.broadcasted_iota(jnp.int32, cells.shape, 1)
    is_coord = lane < 3 * n_boxes
    sig = pl.reciprocal(1.0 + jnp.exp(-cells), approx=True)   # sigmoid on EUP
    cls = jnp.where(is_coord, -1e30, cells)
    mx = jnp.max(cls, axis=-1, keepdims=True)
    ex = jnp.exp(cls - mx)
    probs = ex / jnp.sum(ex, axis=-1, keepdims=True)          # exact divide: sums to 1
    o_ref[0] = jnp.where(is_coord, sig, probs).astype(o_ref.dtype)


# ---------------------------------------------------------------------------
# Trace-time construction of the constant matrices (all layout work is here)
# ---------------------------------------------------------------------------

def _build_kernel_operands(params, *, cin, H, W, c, b, k):
    f32 = jnp.float32
    c1 = params["conv1_w"].shape[-1]
    c2 = params["conv2_w"].shape[-1]
    hid = params["fc_w"].shape[-1]
    H1, W1 = H // 2, W // 2
    H2, W2 = H // 4, W // 4
    step = 3 * b + k

    # channel scatter: planar[h, w*cin + ci] = x[ci, h, w]
    e = np.zeros((cin, W, W * cin), np.float32)
    for ci in range(cin):
        for w in range(W):
            e[ci, w, w * cin + ci] = 1.0

    def shift_mats(n):                       # (P_dh @ act)[h] = act[h+dh] (zero fill)
        return np.stack([np.eye(n, k=-1), np.eye(n, k=1)]).astype(np.float32)

    def band_matrix(kern, wsp):
        # kern: (3,3,Ci,Co) HWIO -> (3, wsp*Ci, wsp*Co); encodes horizontal taps+padding
        ci, co = kern.shape[2], kern.shape[3]
        place = np.zeros((3, wsp, wsp), np.float32)
        for a in range(3):
            for wo in range(wsp):
                wi = wo + a - 1
                if 0 <= wi < wsp:
                    place[a, wi, wo] = 1.0
        m = jnp.einsum("aio,bacd->bicod", jnp.asarray(place), kern)
        return m.reshape(3, wsp * ci, wsp * co).astype(f32)

    def pool_row_sel(h_in):
        s = np.zeros((2, h_in // 2, h_in), np.float32)
        for h2 in range(h_in // 2):
            s[0, h2, 2 * h2] = 1.0
            s[1, h2, 2 * h2 + 1] = 1.0
        return s

    def pool_col_sel(w_in, ch):
        t = np.zeros((2, w_in * ch, (w_in // 2) * ch), np.float32)
        for w2 in range(w_in // 2):
            for cc in range(ch):
                t[0, (2 * w2) * ch + cc, w2 * ch + cc] = 1.0
                t[1, (2 * w2 + 1) * ch + cc, w2 * ch + cc] = 1.0
        return t

    # fc weight rows: torch NCHW flatten order (c2, h, w) -> planar rows (h, w*c2 + c)
    fcw = params["fc_w"].reshape(c2, H2, W2, hid).transpose(1, 2, 0, 3)
    fcw = fcw.reshape(H2, W2 * c2, hid).astype(f32)

    # head: permute columns so each cell reads [x_0..x_{b-1}, w_0.., conf_0.., classes]
    perm = []
    for ci in range(c):
        base = ci * step
        for kind in range(3):                     # xs, ws, confs
            for bi in range(b):
                perm.append(base + 3 * bi + kind)
        for t in range(3 * b, step):
            perm.append(base + t)
    perm = np.asarray(perm, np.int32)
    hw = params["last_w"][:, perm].astype(f32)
    hb = params["last_b"][perm].reshape(1, c * step).astype(f32)

    cmask = np.zeros((c, c * step), np.float32)
    ksum = np.zeros((c * step, step), np.float32)
    for ci in range(c):
        cmask[ci, ci * step:(ci + 1) * step] = 1.0
    for j in range(c * step):
        ksum[j, j % step] = 1.0

    return (
        jnp.asarray(e),
        jnp.asarray(shift_mats(H)),
        band_matrix(params["conv1_w"], W),
        jnp.tile(params["conv1_b"], W).reshape(1, W * c1).astype(f32),
        jnp.asarray(pool_row_sel(H)),
        jnp.asarray(pool_col_sel(W, c1)),
        jnp.asarray(shift_mats(H1)),
        band_matrix(params["conv2_w"], W1),
        jnp.tile(params["conv2_b"], W1).reshape(1, W1 * c2).astype(f32),
        jnp.asarray(pool_row_sel(H1)),
        jnp.asarray(pool_col_sel(W1, c2)),
        fcw,
        params["fc_b"].reshape(1, hid).astype(f32),
        hw,
        hb,
        jnp.asarray(cmask),
        jnp.asarray(ksum),
    )


# ---------------------------------------------------------------------------
# Public forward
# ---------------------------------------------------------------------------

def speech_yolo_forward(x_nchw, params, *, c=7, b=2, k=10):
    N, cin, H, W = x_nchw.shape
    step = 3 * b + k
    operands = _build_kernel_operands(params, cin=cin, H=H, W=W, c=c, b=b, k=k)

    def const_spec(arr):
        nd = arr.ndim
        return pl.BlockSpec(tuple(arr.shape), lambda i, _nd=nd: (0,) * _nd)

    in_specs = [pl.BlockSpec((1, cin, H, W), lambda i: (i, 0, 0, 0))]
    in_specs += [const_spec(a) for a in operands]

    return pl.pallas_call(
        functools.partial(_fused_kernel, n_boxes=b),
        out_shape=jax.ShapeDtypeStruct((N, c, step), jnp.float32),
        grid_spec=pltpu.PrefetchScalarGridSpec(
            num_scalar_prefetch=0,
            grid=(N,),                              # batch sharded across TCs on v7x
            in_specs=in_specs,
            out_specs=pl.BlockSpec((1, c, step), lambda i: (i, 0, 0)),
        ),
        compiler_params=pltpu.CompilerParams(
            dimension_semantics=("parallel",),
        ),
    )(x_nchw, *operands)


# ---------------------------------------------------------------------------
# Pure-XLA reference (same math) for correctness checking
# ---------------------------------------------------------------------------

def reference_forward(x_nchw, params, *, c=7, b=2, k=10):
    hi = jax.lax.Precision.HIGHEST
    x = jnp.transpose(x_nchw, (0, 2, 3, 1))

    def conv_relu(y, w, bias):
        y = jax.lax.conv_general_dilated(
            y, w, window_strides=(1, 1), padding="SAME",
            dimension_numbers=("NHWC", "HWIO", "NHWC"), precision=hi)
        return jax.nn.relu(y + bias)

    def pool(y):
        return jax.lax.reduce_window(y, -jnp.inf, jax.lax.max,
                                     (1, 2, 2, 1), (1, 2, 2, 1), "VALID")

    x = pool(conv_relu(x, params["conv1_w"], params["conv1_b"]))
    x = pool(conv_relu(x, params["conv2_w"], params["conv2_b"]))
    N = x.shape[0]
    x = jnp.transpose(x, (0, 3, 1, 2)).reshape(N, -1)          # torch x.view(N, -1)
    x = jax.nn.relu(jnp.dot(x, params["fc_w"], precision=hi) + params["fc_b"])
    logits = jnp.dot(x, params["last_w"], precision=hi) + params["last_b"]
    step = 3 * b + k
    resh = logits.reshape(N, c, step)
    coords = resh[:, :, :3 * b].reshape(N, c, b, 3)
    xs = jax.nn.sigmoid(coords[..., 0])
    ws = jax.nn.sigmoid(coords[..., 1])
    cf = jax.nn.sigmoid(coords[..., 2])
    probs = jax.nn.softmax(resh[:, :, 3 * b:], axis=-1)
    return jnp.concatenate([xs, ws, cf, probs], axis=-1)


# ---------------------------------------------------------------------------
# Parameter init (same synthesized backbone as before)
# ---------------------------------------------------------------------------

def init_params(key, *, cin=4, h=16, w=16, c=7, b=2, k=10):
    ks = jax.random.split(key, 8)
    c1, c2 = 16, 32
    flat = c2 * (h // 4) * (w // 4)          # 32 * 4 * 4 = 512
    hidden = 512
    out_dim = c * (3 * b + k)                # 7 * 16 = 112

    def xavier(kk, shape):
        fan_in, fan_out = shape[-2], shape[-1]
        std = (2.0 / (fan_in + fan_out)) ** 0.5
        return std * jax.random.normal(kk, shape, dtype=jnp.float32)

    return dict(
        conv1_w=0.1 * jax.random.normal(ks[0], (3, 3, cin, c1), dtype=jnp.float32),
        conv1_b=0.01 * jax.random.normal(ks[1], (c1,), dtype=jnp.float32),
        conv2_w=0.1 * jax.random.normal(ks[2], (3, 3, c1, c2), dtype=jnp.float32),
        conv2_b=0.01 * jax.random.normal(ks[3], (c2,), dtype=jnp.float32),
        fc_w=xavier(ks[4], (flat, hidden)),
        fc_b=0.01 * jax.random.normal(ks[5], (hidden,), dtype=jnp.float32),
        last_w=xavier(ks[6], (hidden, out_dim)),   # xavier_normal_, as in init_weight()
        last_b=jnp.zeros((out_dim,), dtype=jnp.float32),
    )


if __name__ == "__main__":
    key = jax.random.PRNGKey(0)
    pkey, xkey = jax.random.split(key)
    params = init_params(pkey)
    x = jax.random.normal(xkey, (2, 4, 16, 16), dtype=jnp.float32)  # NCHW

    fwd = jax.jit(functools.partial(speech_yolo_forward, c=7, b=2, k=10))
    out = jax.block_until_ready(fwd(x, params))

    assert out.shape == (2, 7, 16), out.shape
    # class probabilities (last k=10 lanes per cell) must sum to 1
    assert jnp.allclose(jnp.sum(out[..., 6:], axis=-1), 1.0, atol=1e-5)
    # cross-check the fused kernel against a pure-XLA reference of the same forward
    ref = reference_forward(x, params, c=7, b=2, k=10)
    max_err = float(jnp.max(jnp.abs(out - ref)))
    assert max_err < 5e-3, max_err
    print("KERNEL_OK")
</pallas_src>

<mosaic_0001>
module attributes {stable_mosaic.version = 11 : i64} {
  func.func @_fused_kernel(%arg0: i32, %arg1: memref<1x4x16x16xf32, #tpu.memory_space<vmem>>, %arg2: memref<4x16x64xf32, #tpu.memory_space<vmem>>, %arg3: memref<2x16x16xf32, #tpu.memory_space<vmem>>, %arg4: memref<3x64x256xf32, #tpu.memory_space<vmem>>, %arg5: memref<1x256xf32, #tpu.memory_space<vmem>>, %arg6: memref<2x8x16xf32, #tpu.memory_space<vmem>>, %arg7: memref<2x256x128xf32, #tpu.memory_space<vmem>>, %arg8: memref<2x8x8xf32, #tpu.memory_space<vmem>>, %arg9: memref<3x128x256xf32, #tpu.memory_space<vmem>>, %arg10: memref<1x256xf32, #tpu.memory_space<vmem>>, %arg11: memref<2x4x8xf32, #tpu.memory_space<vmem>>, %arg12: memref<2x256x128xf32, #tpu.memory_space<vmem>>, %arg13: memref<4x128x512xf32, #tpu.memory_space<vmem>>, %arg14: memref<1x512xf32, #tpu.memory_space<vmem>>, %arg15: memref<512x112xf32, #tpu.memory_space<vmem>>, %arg16: memref<1x112xf32, #tpu.memory_space<vmem>>, %arg17: memref<7x112xf32, #tpu.memory_space<vmem>>, %arg18: memref<112x16xf32, #tpu.memory_space<vmem>>, %arg19: memref<1x7x16xf32, #tpu.memory_space<vmem>>) attributes {dimension_semantics = [#tpu.dimension_semantics<parallel>], iteration_bounds = array<i64: 2>, scalar_prefetch = 0 : i64, scratch_operands = 0 : i64, tpu.core_type = #tpu.core_type<tc>, window_params = [{transform_indices = @transform_0, window_bounds = array<i64: 1, 4, 16, 16>}, {pipeline_mode = #tpu.pipeline_mode<synchronous>, transform_indices = @transform_1, window_bounds = array<i64: 4, 16, 64>}, {pipeline_mode = #tpu.pipeline_mode<synchronous>, transform_indices = @transform_2, window_bounds = array<i64: 2, 16, 16>}, {pipeline_mode = #tpu.pipeline_mode<synchronous>, transform_indices = @transform_3, window_bounds = array<i64: 3, 64, 256>}, {pipeline_mode = #tpu.pipeline_mode<synchronous>, transform_indices = @transform_4, window_bounds = array<i64: 1, 256>}, {pipeline_mode = #tpu.pipeline_mode<synchronous>, transform_indices = @transform_5, window_bounds = array<i64: 2, 8, 16>}, {pipeline_mode = #tpu.pipeline_mode<synchronous>, transform_indices = @transform_6, window_bounds = array<i64: 2, 256, 128>}, {pipeline_mode = #tpu.pipeline_mode<synchronous>, transform_indices = @transform_7, window_bounds = array<i64: 2, 8, 8>}, {pipeline_mode = #tpu.pipeline_mode<synchronous>, transform_indices = @transform_8, window_bounds = array<i64: 3, 128, 256>}, {pipeline_mode = #tpu.pipeline_mode<synchronous>, transform_indices = @transform_9, window_bounds = array<i64: 1, 256>}, {pipeline_mode = #tpu.pipeline_mode<synchronous>, transform_indices = @transform_10, window_bounds = array<i64: 2, 4, 8>}, {pipeline_mode = #tpu.pipeline_mode<synchronous>, transform_indices = @transform_11, window_bounds = array<i64: 2, 256, 128>}, {pipeline_mode = #tpu.pipeline_mode<synchronous>, transform_indices = @transform_12, window_bounds = array<i64: 4, 128, 512>}, {pipeline_mode = #tpu.pipeline_mode<synchronous>, transform_indices = @transform_13, window_bounds = array<i64: 1, 512>}, {pipeline_mode = #tpu.pipeline_mode<synchronous>, transform_indices = @transform_14, window_bounds = array<i64: 512, 112>}, {pipeline_mode = #tpu.pipeline_mode<synchronous>, transform_indices = @transform_15, window_bounds = array<i64: 1, 112>}, {pipeline_mode = #tpu.pipeline_mode<synchronous>, transform_indices = @transform_16, window_bounds = array<i64: 7, 112>}, {pipeline_mode = #tpu.pipeline_mode<synchronous>, transform_indices = @transform_17, window_bounds = array<i64: 112, 16>}, {transform_indices = @transform_18, window_bounds = array<i64: 1, 7, 16>}]} {
    %c0 = arith.constant 0 : index
    %c0_0 = arith.constant 0 : index
    %c0_1 = arith.constant 0 : index
    %c0_2 = arith.constant 0 : index
    %0 = vector.load %arg1[%c0, %c0_0, %c0_1, %c0_2] : memref<1x4x16x16xf32, #tpu.memory_space<vmem>>, vector<1x1x16x16xf32>
    %1 = vector.shape_cast %0 : vector<1x1x16x16xf32> to vector<16x16xf32>
    %c0_3 = arith.constant 0 : index
    %c0_4 = arith.constant 0 : index
    %c0_5 = arith.constant 0 : index
    %2 = vector.load %arg2[%c0_3, %c0_4, %c0_5] : memref<4x16x64xf32, #tpu.memory_space<vmem>>, vector<1x16x64xf32>
    %3 = vector.shape_cast %2 : vector<1x16x64xf32> to vector<16x64xf32>
    %cst = arith.constant dense<0.000000e+00> : vector<16x64xf32>
    %4 = tpu.matmul %1, %3, %cst {dimension_numbers = #tpu.dot_dimension_numbers<[1], [0], [0], [1], [0, 0, 1, 1], [], []>} : vector<16x16xf32>, vector<16x64xf32>, vector<16x64xf32> -> vector<16x64xf32>
    %c0_6 = arith.constant 0 : index
    %c1 = arith.constant 1 : index
    %c0_7 = arith.constant 0 : index
    %c0_8 = arith.constant 0 : index
    %5 = vector.load %arg1[%c0_6, %c1, %c0_7, %c0_8] : memref<1x4x16x16xf32, #tpu.memory_space<vmem>>, vector<1x1x16x16xf32>
    %6 = vector.shape_cast %5 : vector<1x1x16x16xf32> to vector<16x16xf32>
    %c1_9 = arith.constant 1 : index
    %c0_10 = arith.constant 0 : index
    %c0_11 = arith.constant 0 : index
    %7 = vector.load %arg2[%c1_9, %c0_10, %c0_11] : memref<4x16x64xf32, #tpu.memory_space<vmem>>, vector<1x16x64xf32>
    %8 = vector.shape_cast %7 : vector<1x16x64xf32> to vector<16x64xf32>
    %cst_12 = arith.constant dense<0.000000e+00> : vector<16x64xf32>
    %9 = tpu.matmul %6, %8, %cst_12 {dimension_numbers = #tpu.dot_dimension_numbers<[1], [0], [0], [1], [0, 0, 1, 1], [], []>} : vector<16x16xf32>, vector<16x64xf32>, vector<16x64xf32> -> vector<16x64xf32>
    %10 = arith.addf %4, %9 : vector<16x64xf32>
    %c0_13 = arith.constant 0 : index
    %c2 = arith.constant 2 : index
    %c0_14 = arith.constant 0 : index
    %c0_15 = arith.constant 0 : index
    %11 = vector.load %arg1[%c0_13, %c2, %c0_14, %c0_15] : memref<1x4x16x16xf32, #tpu.memory_space<vmem>>, vector<1x1x16x16xf32>
    %12 = vector.shape_cast %11 : vector<1x1x16x16xf32> to vector<16x16xf32>
    %c2_16 = arith.constant 2 : index
    %c0_17 = arith.constant 0 : index
    %c0_18 = arith.constant 0 : index
    %13 = vector.load %arg2[%c2_16, %c0_17, %c0_18] : memref<4x16x64xf32, #tpu.memory_space<vmem>>, vector<1x16x64xf32>
    %14 = vector.shape_cast %13 : vector<1x16x64xf32> to vector<16x64xf32>
    %cst_19 = arith.constant dense<0.000000e+00> : vector<16x64xf32>
    %15 = tpu.matmul %12, %14, %cst_19 {dimension_numbers = #tpu.dot_dimension_numbers<[1], [0], [0], [1], [0, 0, 1, 1], [], []>} : vector<16x16xf32>, vector<16x64xf32>, vector<16x64xf32> -> vector<16x64xf32>
    %16 = arith.addf %10, %15 : vector<16x64xf32>
    %c0_20 = arith.constant 0 : index
    %c3 = arith.constant 3 : index
    %c0_21 = arith.constant 0 : index
    %c0_22 = arith.constant 0 : index
    %17 = vector.load %arg1[%c0_20, %c3, %c0_21, %c0_22] : memref<1x4x16x16xf32, #tpu.memory_space<vmem>>, vector<1x1x16x16xf32>
    %18 = vector.shape_cast %17 : vector<1x1x16x16xf32> to vector<16x16xf32>
    %c3_23 = arith.constant 3 : index
    %c0_24 = arith.constant 0 : index
    %c0_25 = arith.constant 0 : index
    %19 = vector.load %arg2[%c3_23, %c0_24, %c0_25] : memref<4x16x64xf32, #tpu.memory_space<vmem>>, vector<1x16x64xf32>
    %20 = vector.shape_cast %19 : vector<1x16x64xf32> to vector<16x64xf32>
    %cst_26 = arith.constant dense<0.000000e+00> : vector<16x64xf32>
    %21 = tpu.matmul %18, %20, %cst_26 {dimension_numbers = #tpu.dot_dimension_numbers<[1], [0], [0], [1], [0, 0, 1, 1], [], []>} : vector<16x16xf32>, vector<16x64xf32>, vector<16x64xf32> -> vector<16x64xf32>
    %22 = arith.addf %16, %21 : vector<16x64xf32>
    %c1_27 = arith.constant 1 : index
    %c0_28 = arith.constant 0 : index
    %c0_29 = arith.constant 0 : index
    %23 = vector.load %arg4[%c1_27, %c0_28, %c0_29] : memref<3x64x256xf32, #tpu.memory_space<vmem>>, vector<1x64x256xf32>
    %24 = vector.shape_cast %23 : vector<1x64x256xf32> to vector<64x256xf32>
    %cst_30 = arith.constant dense<0.000000e+00> : vector<16x256xf32>
    %25 = tpu.matmul %22, %24, %cst_30 {dimension_numbers = #tpu.dot_dimension_numbers<[1], [0], [0], [1], [0, 0, 1, 1], [], []>} : vector<16x64xf32>, vector<64x256xf32>, vector<16x256xf32> -> vector<16x256xf32>
    %c0_31 = arith.constant 0 : index
    %c0_32 = arith.constant 0 : index
    %c0_33 = arith.constant 0 : index
    %26 = vector.load %arg3[%c0_31, %c0_32, %c0_33] : memref<2x16x16xf32, #tpu.memory_space<vmem>>, vector<1x16x16xf32>
    %27 = vector.shape_cast %26 : vector<1x16x16xf32> to vector<16x16xf32>
    %cst_34 = arith.constant dense<0.000000e+00> : vector<16x64xf32>
    %28 = tpu.matmul %27, %22, %cst_34 {dimension_numbers = #tpu.dot_dimension_numbers<[1], [0], [0], [1], [0, 0, 1, 1], [], []>} : vector<16x16xf32>, vector<16x64xf32>, vector<16x64xf32> -> vector<16x64xf32>
    %c0_35 = arith.constant 0 : index
    %c0_36 = arith.constant 0 : index
    %c0_37 = arith.constant 0 : index
    %29 = vector.load %arg4[%c0_35, %c0_36, %c0_37] : memref<3x64x256xf32, #tpu.memory_space<vmem>>, vector<1x64x256xf32>
    %30 = vector.shape_cast %29 : vector<1x64x256xf32> to vector<64x256xf32>
    %cst_38 = arith.constant dense<0.000000e+00> : vector<16x256xf32>
    %31 = tpu.matmul %28, %30, %cst_38 {dimension_numbers = #tpu.dot_dimension_numbers<[1], [0], [0], [1], [0, 0, 1, 1], [], []>} : vector<16x64xf32>, vector<64x256xf32>, vector<16x256xf32> -> vector<16x256xf32>
    %32 = arith.addf %25, %31 : vector<16x256xf32>
    %c1_39 = arith.constant 1 : index
    %c0_40 = arith.constant 0 : index
    %c0_41 = arith.constant 0 : index
    %33 = vector.load %arg3[%c1_39, %c0_40, %c0_41] : memref<2x16x16xf32, #tpu.memory_space<vmem>>, vector<1x16x16xf32>
    %34 = vector.shape_cast %33 : vector<1x16x16xf32> to vector<16x16xf32>
    %cst_42 = arith.constant dense<0.000000e+00> : vector<16x64xf32>
    %35 = tpu.matmul %34, %22, %cst_42 {dimension_numbers = #tpu.dot_dimension_numbers<[1], [0], [0], [1], [0, 0, 1, 1], [], []>} : vector<16x16xf32>, vector<16x64xf32>, vector<16x64xf32> -> vector<16x64xf32>
    %c2_43 = arith.constant 2 : index
    %c0_44 = arith.constant 0 : index
    %c0_45 = arith.constant 0 : index
    %36 = vector.load %arg4[%c2_43, %c0_44, %c0_45] : memref<3x64x256xf32, #tpu.memory_space<vmem>>, vector<1x64x256xf32>
    %37 = vector.shape_cast %36 : vector<1x64x256xf32> to vector<64x256xf32>
    %cst_46 = arith.constant dense<0.000000e+00> : vector<16x256xf32>
    %38 = tpu.matmul %35, %37, %cst_46 {dimension_numbers = #tpu.dot_dimension_numbers<[1], [0], [0], [1], [0, 0, 1, 1], [], []>} : vector<16x64xf32>, vector<64x256xf32>, vector<16x256xf32> -> vector<16x256xf32>
    %39 = arith.addf %32, %38 : vector<16x256xf32>
    %c0_47 = arith.constant 0 : index
    %c0_48 = arith.constant 0 : index
    %40 = vector.load %arg5[%c0_47, %c0_48] : memref<1x256xf32, #tpu.memory_space<vmem>>, vector<1x256xf32>
    %41 = vector.broadcast %40 : vector<1x256xf32> to vector<16x256xf32>
    %42 = arith.addf %39, %41 : vector<16x256xf32>
    %cst_49 = arith.constant 0.000000e+00 : f32
    %43 = vector.broadcast %cst_49 : f32 to vector<16x256xf32>
    %44 = arith.maximumf %42, %43 : vector<16x256xf32>
    %c0_50 = arith.constant 0 : index
    %c0_51 = arith.constant 0 : index
    %c0_52 = arith.constant 0 : index
    %45 = vector.load %arg6[%c0_50, %c0_51, %c0_52] : memref<2x8x16xf32, #tpu.memory_space<vmem>>, vector<1x8x16xf32>
    %46 = vector.shape_cast %45 : vector<1x8x16xf32> to vector<8x16xf32>
    %cst_53 = arith.constant dense<0.000000e+00> : vector<8x256xf32>
    %47 = tpu.matmul %46, %44, %cst_53 {dimension_numbers = #tpu.dot_dimension_numbers<[1], [0], [0], [1], [0, 0, 1, 1], [], []>} : vector<8x16xf32>, vector<16x256xf32>, vector<8x256xf32> -> vector<8x256xf32>
    %c1_54 = arith.constant 1 : index
    %c0_55 = arith.constant 0 : index
    %c0_56 = arith.constant 0 : index
    %48 = vector.load %arg6[%c1_54, %c0_55, %c0_56] : memref<2x8x16xf32, #tpu.memory_space<vmem>>, vector<1x8x16xf32>
    %49 = vector.shape_cast %48 : vector<1x8x16xf32> to vector<8x16xf32>
    %cst_57 = arith.constant dense<0.000000e+00> : vector<8x256xf32>
    %50 = tpu.matmul %49, %44, %cst_57 {dimension_numbers = #tpu.dot_dimension_numbers<[1], [0], [0], [1], [0, 0, 1, 1], [], []>} : vector<8x16xf32>, vector<16x256xf32>, vector<8x256xf32> -> vector<8x256xf32>
    %51 = arith.maximumf %47, %50 : vector<8x256xf32>
    %c0_58 = arith.constant 0 : index
    %c0_59 = arith.constant 0 : index
    %c0_60 = arith.constant 0 : index
    %52 = vector.load %arg7[%c0_58, %c0_59, %c0_60] : memref<2x256x128xf32, #tpu.memory_space<vmem>>, vector<1x256x128xf32>
    %53 = vector.shape_cast %52 : vector<1x256x128xf32> to vector<256x128xf32>
    %cst_61 = arith.constant dense<0.000000e+00> : vector<8x128xf32>
    %54 = tpu.matmul %51, %53, %cst_61 {dimension_numbers = #tpu.dot_dimension_numbers<[1], [0], [0], [1], [0, 0, 1, 1], [], []>} : vector<8x256xf32>, vector<256x128xf32>, vector<8x128xf32> -> vector<8x128xf32>
    %c1_62 = arith.constant 1 : index
    %c0_63 = arith.constant 0 : index
    %c0_64 = arith.constant 0 : index
    %55 = vector.load %arg7[%c1_62, %c0_63, %c0_64] : memref<2x256x128xf32, #tpu.memory_space<vmem>>, vector<1x256x128xf32>
    %56 = vector.shape_cast %55 : vector<1x256x128xf32> to vector<256x128xf32>
    %cst_65 = arith.constant dense<0.000000e+00> : vector<8x128xf32>
    %57 = tpu.matmul %51, %56, %cst_65 {dimension_numbers = #tpu.dot_dimension_numbers<[1], [0], [0], [1], [0, 0, 1, 1], [], []>} : vector<8x256xf32>, vector<256x128xf32>, vector<8x128xf32> -> vector<8x128xf32>
    %58 = arith.maximumf %54, %57 : vector<8x128xf32>
    %c1_66 = arith.constant 1 : index
    %c0_67 = arith.constant 0 : index
    %c0_68 = arith.constant 0 : index
    %59 = vector.load %arg9[%c1_66, %c0_67, %c0_68] : memref<3x128x256xf32, #tpu.memory_space<vmem>>, vector<1x128x256xf32>
    %60 = vector.shape_cast %59 : vector<1x128x256xf32> to vector<128x256xf32>
    %cst_69 = arith.constant dense<0.000000e+00> : vector<8x256xf32>
    %61 = tpu.matmul %58, %60, %cst_69 {dimension_numbers = #tpu.dot_dimension_numbers<[1], [0], [0], [1], [0, 0, 1, 1], [], []>} : vector<8x128xf32>, vector<128x256xf32>, vector<8x256xf32> -> vector<8x256xf32>
    %c0_70 = arith.constant 0 : index
    %c0_71 = arith.constant 0 : index
    %c0_72 = arith.constant 0 : index
    %62 = vector.load %arg8[%c0_70, %c0_71, %c0_72] : memref<2x8x8xf32, #tpu.memory_space<vmem>>, vector<1x8x8xf32>
    %63 = vector.shape_cast %62 : vector<1x8x8xf32> to vector<8x8xf32>
    %cst_73 = arith.constant dense<0.000000e+00> : vector<8x128xf32>
    %64 = tpu.matmul %63, %58, %cst_73 {dimension_numbers = #tpu.dot_dimension_numbers<[1], [0], [0], [1], [0, 0, 1, 1], [], []>} : vector<8x8xf32>, vector<8x128xf32>, vector<8x128xf32> -> vector<8x128xf32>
    %c0_74 = arith.constant 0 : index
    %c0_75 = arith.constant 0 : index
    %c0_76 = arith.constant 0 : index
    %65 = vector.load %arg9[%c0_74, %c0_75, %c0_76] : memref<3x128x256xf32, #tpu.memory_space<vmem>>, vector<1x128x256xf32>
    %66 = vector.shape_cast %65 : vector<1x128x256xf32> to vector<128x256xf32>
    %cst_77 = arith.constant dense<0.000000e+00> : vector<8x256xf32>
    %67 = tpu.matmul %64, %66, %cst_77 {dimension_numbers = #tpu.dot_dimension_numbers<[1], [0], [0], [1], [0, 0, 1, 1], [], []>} : vector<8x128xf32>, vector<128x256xf32>, vector<8x256xf32> -> vector<8x256xf32>
    %68 = arith.addf %61, %67 : vector<8x256xf32>
    %c1_78 = arith.constant 1 : index
    %c0_79 = arith.constant 0 : index
    %c0_80 = arith.constant 0 : index
    %69 = vector.load %arg8[%c1_78, %c0_79, %c0_80] : memref<2x8x8xf32, #tpu.memory_space<vmem>>, vector<1x8x8xf32>
    %70 = vector.shape_cast %69 : vector<1x8x8xf32> to vector<8x8xf32>
    %cst_81 = arith.constant dense<0.000000e+00> : vector<8x128xf32>
    %71 = tpu.matmul %70, %58, %cst_81 {dimension_numbers = #tpu.dot_dimension_numbers<[1], [0], [0], [1], [0, 0, 1, 1], [], []>} : vector<8x8xf32>, vector<8x128xf32>, vector<8x128xf32> -> vector<8x128xf32>
    %c2_82 = arith.constant 2 : index
    %c0_83 = arith.constant 0 : index
    %c0_84 = arith.constant 0 : index
    %72 = vector.load %arg9[%c2_82, %c0_83, %c0_84] : memref<3x128x256xf32, #tpu.memory_space<vmem>>, vector<1x128x256xf32>
    %73 = vector.shape_cast %72 : vector<1x128x256xf32> to vector<128x256xf32>
    %cst_85 = arith.constant dense<0.000000e+00> : vector<8x256xf32>
    %74 = tpu.matmul %71, %73, %cst_85 {dimension_numbers = #tpu.dot_dimension_numbers<[1], [0], [0], [1], [0, 0, 1, 1], [], []>} : vector<8x128xf32>, vector<128x256xf32>, vector<8x256xf32> -> vector<8x256xf32>
    %75 = arith.addf %68, %74 : vector<8x256xf32>
    %c0_86 = arith.constant 0 : index
    %c0_87 = arith.constant 0 : index
    %76 = vector.load %arg10[%c0_86, %c0_87] : memref<1x256xf32, #tpu.memory_space<vmem>>, vector<1x256xf32>
    %77 = vector.broadcast %76 : vector<1x256xf32> to vector<8x256xf32>
    %78 = arith.addf %75, %77 : vector<8x256xf32>
    %cst_88 = arith.constant 0.000000e+00 : f32
    %79 = vector.broadcast %cst_88 : f32 to vector<8x256xf32>
    %80 = arith.maximumf %78, %79 : vector<8x256xf32>
    %c0_89 = arith.constant 0 : index
    %c0_90 = arith.constant 0 : index
    %c0_91 = arith.constant 0 : index
    %81 = vector.load %arg11[%c0_89, %c0_90, %c0_91] : memref<2x4x8xf32, #tpu.memory_space<vmem>>, vector<1x4x8xf32>
    %82 = vector.shape_cast %81 : vector<1x4x8xf32> to vector<4x8xf32>
    %cst_92 = arith.constant dense<0.000000e+00> : vector<4x256xf32>
    %83 = tpu.matmul %82, %80, %cst_92 {dimension_numbers = #tpu.dot_dimension_numbers<[1], [0], [0], [1], [0, 0, 1, 1], [], []>} : vector<4x8xf32>, vector<8x256xf32>, vector<4x256xf32> -> vector<4x256xf32>
    %c1_93 = arith.constant 1 : index
    %c0_94 = arith.constant 0 : index
    %c0_95 = arith.constant 0 : index
    %84 = vector.load %arg11[%c1_93, %c0_94, %c0_95] : memref<2x4x8xf32, #tpu.memory_space<vmem>>, vector<1x4x8xf32>
    %85 = vector.shape_cast %84 : vector<1x4x8xf32> to vector<4x8xf32>
    %cst_96 = arith.constant dense<0.000000e+00> : vector<4x256xf32>
    %86 = tpu.matmul %85, %80, %cst_96 {dimension_numbers = #tpu.dot_dimension_numbers<[1], [0], [0], [1], [0, 0, 1, 1], [], []>} : vector<4x8xf32>, vector<8x256xf32>, vector<4x256xf32> -> vector<4x256xf32>
    %87 = arith.maximumf %83, %86 : vector<4x256xf32>
    %c0_97 = arith.constant 0 : index
    %c0_98 = arith.constant 0 : index
    %c0_99 = arith.constant 0 : index
    %88 = vector.load %arg12[%c0_97, %c0_98, %c0_99] : memref<2x256x128xf32, #tpu.memory_space<vmem>>, vector<1x256x128xf32>
    %89 = vector.shape_cast %88 : vector<1x256x128xf32> to vector<256x128xf32>
    %cst_100 = arith.constant dense<0.000000e+00> : vector<4x128xf32>
    %90 = tpu.matmul %87, %89, %cst_100 {dimension_numbers = #tpu.dot_dimension_numbers<[1], [0], [0], [1], [0, 0, 1, 1], [], []>} : vector<4x256xf32>, vector<256x128xf32>, vector<4x128xf32> -> vector<4x128xf32>
    %c1_101 = arith.constant 1 : index
    %c0_102 = arith.constant 0 : index
    %c0_103 = arith.constant 0 : index
    %91 = vector.load %arg12[%c1_101, %c0_102, %c0_103] : memref<2x256x128xf32, #tpu.memory_space<vmem>>, vector<1x256x128xf32>
    %92 = vector.shape_cast %91 : vector<1x256x128xf32> to vector<256x128xf32>
    %cst_104 = arith.constant dense<0.000000e+00> : vector<4x128xf32>
    %93 = tpu.matmul %87, %92, %cst_104 {dimension_numbers = #tpu.dot_dimension_numbers<[1], [0], [0], [1], [0, 0, 1, 1], [], []>} : vector<4x256xf32>, vector<256x128xf32>, vector<4x128xf32> -> vector<4x128xf32>
    %94 = arith.maximumf %90, %93 : vector<4x128xf32>
    %c0_105 = arith.constant 0 : index
    %c0_106 = arith.constant 0 : index
    %95 = vector.load %arg14[%c0_105, %c0_106] : memref<1x512xf32, #tpu.memory_space<vmem>>, vector<1x512xf32>
    %96 = vector.extract_strided_slice %94 {offsets = [0, 0], sizes = [1, 128], strides = [1, 1]} : vector<4x128xf32> to vector<1x128xf32>
    %c0_107 = arith.constant 0 : index
    %c0_108 = arith.constant 0 : index
    %c0_109 = arith.constant 0 : index
    %97 = vector.load %arg13[%c0_107, %c0_108, %c0_109] : memref<4x128x512xf32, #tpu.memory_space<vmem>>, vector<1x128x512xf32>
    %98 = vector.shape_cast %97 : vector<1x128x512xf32> to vector<128x512xf32>
    %cst_110 = arith.constant dense<0.000000e+00> : vector<1x512xf32>
    %99 = tpu.matmul %96, %98, %cst_110 {dimension_numbers = #tpu.dot_dimension_numbers<[1], [0], [0], [1], [0, 0, 1, 1], [], []>} : vector<1x128xf32>, vector<128x512xf32>, vector<1x512xf32> -> vector<1x512xf32>
    %100 = arith.addf %95, %99 : vector<1x512xf32>
    %101 = vector.extract_strided_slice %94 {offsets = [1, 0], sizes = [1, 128], strides = [1, 1]} : vector<4x128xf32> to vector<1x128xf32>
    %c1_111 = arith.constant 1 : index
    %c0_112 = arith.constant 0 : index
    %c0_113 = arith.constant 0 : index
    %102 = vector.load %arg13[%c1_111, %c0_112, %c0_113] : memref<4x128x512xf32, #tpu.memory_space<vmem>>, vector<1x128x512xf32>
    %103 = vector.shape_cast %102 : vector<1x128x512xf32> to vector<128x512xf32>
    %cst_114 = arith.constant dense<0.000000e+00> : vector<1x512xf32>
    %104 = tpu.matmul %101, %103, %cst_114 {dimension_numbers = #tpu.dot_dimension_numbers<[1], [0], [0], [1], [0, 0, 1, 1], [], []>} : vector<1x128xf32>, vector<128x512xf32>, vector<1x512xf32> -> vector<1x512xf32>
    %105 = arith.addf %100, %104 : vector<1x512xf32>
    %106 = vector.extract_strided_slice %94 {offsets = [2, 0], sizes = [1, 128], strides = [1, 1]} : vector<4x128xf32> to vector<1x128xf32>
    %c2_115 = arith.constant 2 : index
    %c0_116 = arith.constant 0 : index
    %c0_117 = arith.constant 0 : index
    %107 = vector.load %arg13[%c2_115, %c0_116, %c0_117] : memref<4x128x512xf32, #tpu.memory_space<vmem>>, vector<1x128x512xf32>
    %108 = vector.shape_cast %107 : vector<1x128x512xf32> to vector<128x512xf32>
    %cst_118 = arith.constant dense<0.000000e+00> : vector<1x512xf32>
    %109 = tpu.matmul %106, %108, %cst_118 {dimension_numbers = #tpu.dot_dimension_numbers<[1], [0], [0], [1], [0, 0, 1, 1], [], []>} : vector<1x128xf32>, vector<128x512xf32>, vector<1x512xf32> -> vector<1x512xf32>
    %110 = arith.addf %105, %109 : vector<1x512xf32>
    %111 = vector.extract_strided_slice %94 {offsets = [3, 0], sizes = [1, 128], strides = [1, 1]} : vector<4x128xf32> to vector<1x128xf32>
    %c3_119 = arith.constant 3 : index
    %c0_120 = arith.constant 0 : index
    %c0_121 = arith.constant 0 : index
    %112 = vector.load %arg13[%c3_119, %c0_120, %c0_121] : memref<4x128x512xf32, #tpu.memory_space<vmem>>, vector<1x128x512xf32>
    %113 = vector.shape_cast %112 : vector<1x128x512xf32> to vector<128x512xf32>
    %cst_122 = arith.constant dense<0.000000e+00> : vector<1x512xf32>
    %114 = tpu.matmul %111, %113, %cst_122 {dimension_numbers = #tpu.dot_dimension_numbers<[1], [0], [0], [1], [0, 0, 1, 1], [], []>} : vector<1x128xf32>, vector<128x512xf32>, vector<1x512xf32> -> vector<1x512xf32>
    %115 = arith.addf %110, %114 : vector<1x512xf32>
    %cst_123 = arith.constant 0.000000e+00 : f32
    %116 = vector.broadcast %cst_123 : f32 to vector<1x512xf32>
    %117 = arith.maximumf %115, %116 : vector<1x512xf32>
    %c0_124 = arith.constant 0 : index
    %c0_125 = arith.constant 0 : index
    %118 = vector.load %arg15[%c0_124, %c0_125] : memref<512x112xf32, #tpu.memory_space<vmem>>, vector<512x112xf32>
    %cst_126 = arith.constant dense<0.000000e+00> : vector<1x112xf32>
    %119 = tpu.matmul %117, %118, %cst_126 {dimension_numbers = #tpu.dot_dimension_numbers<[1], [0], [0], [1], [0, 0, 1, 1], [], []>} : vector<1x512xf32>, vector<512x112xf32>, vector<1x112xf32> -> vector<1x112xf32>
    %c0_127 = arith.constant 0 : index
    %c0_128 = arith.constant 0 : index
    %120 = vector.load %arg16[%c0_127, %c0_128] : memref<1x112xf32, #tpu.memory_space<vmem>>, vector<1x112xf32>
    %121 = arith.addf %119, %120 : vector<1x112xf32>
    %c0_129 = arith.constant 0 : index
    %c0_130 = arith.constant 0 : index
    %122 = vector.load %arg17[%c0_129, %c0_130] : memref<7x112xf32, #tpu.memory_space<vmem>>, vector<7x112xf32>
    %123 = vector.broadcast %121 : vector<1x112xf32> to vector<7x112xf32>
    %124 = arith.mulf %122, %123 : vector<7x112xf32>
    %c0_131 = arith.constant 0 : index
    %c0_132 = arith.constant 0 : index
    %125 = vector.load %arg18[%c0_131, %c0_132] : memref<112x16xf32, #tpu.memory_space<vmem>>, vector<112x16xf32>
    %cst_133 = arith.constant dense<0.000000e+00> : vector<7x16xf32>
    %126 = tpu.matmul %124, %125, %cst_133 {dimension_numbers = #tpu.dot_dimension_numbers<[1], [0], [0], [1], [0, 0, 1, 1], [], []>} : vector<7x112xf32>, vector<112x16xf32>, vector<7x16xf32> -> vector<7x16xf32>
    %127 = tpu.iota {dimensions = array<i32: 1>} : vector<7x16xi32>
    %c6_i32 = arith.constant 6 : i32
    %128 = vector.broadcast %c6_i32 : i32 to vector<7x16xi32>
    %129 = arith.cmpi slt, %127, %128 : vector<7x16xi32>
    %cst_134 = arith.constant 0.000000e+00 : f32
    %130 = vector.broadcast %cst_134 : f32 to vector<7x16xf32>
    %131 = arith.subf %130, %126 : vector<7x16xf32>
    %132 = math.exp %131 : vector<7x16xf32>
    %cst_135 = arith.constant 1.000000e+00 : f32
    %133 = vector.broadcast %cst_135 : f32 to vector<7x16xf32>
    %134 = arith.addf %133, %132 : vector<7x16xf32>
    %135 = tpu.reciprocal %134 {approx = true} : vector<7x16xf32> -> vector<7x16xf32>
    %cst_136 = arith.constant -1.000000e+30 : f32
    %136 = vector.broadcast %cst_136 : f32 to vector<7x16xf32>
    %137 = arith.select %129, %136, %126 : vector<7x16xi1>, vector<7x16xf32>
    %cst_137 = arith.constant dense<0xFF800000> : vector<7xf32>
    %138 = vector.multi_reduction <maximumf>, %137, %cst_137 [1] : vector<7x16xf32> to vector<7xf32>
    %139 = vector.shape_cast %138 : vector<7xf32> to vector<7x1xf32>
    %140 = vector.broadcast %139 : vector<7x1xf32> to vector<7x16xf32>
    %141 = arith.subf %137, %140 : vector<7x16xf32>
    %142 = math.exp %141 : vector<7x16xf32>
    %cst_138 = arith.constant dense<0.000000e+00> : vector<7xf32>
    %143 = vector.multi_reduction <add>, %142, %cst_138 [1] : vector<7x16xf32> to vector<7xf32>
    %144 = vector.shape_cast %143 : vector<7xf32> to vector<7x1xf32>
    %145 = vector.broadcast %144 : vector<7x1xf32> to vector<7x16xf32>
    %146 = arith.divf %142, %145 : vector<7x16xf32>
    %147 = arith.select %129, %135, %146 : vector<7x16xi1>, vector<7x16xf32>
    %c0_139 = arith.constant 0 : index
    %c0_140 = arith.constant 0 : index
    %c0_141 = arith.constant 0 : index
    %148 = vector.load %arg19[%c0_139, %c0_140, %c0_141] : memref<1x7x16xf32, #tpu.memory_space<vmem>>, vector<1x7x16xf32>
    %149 = vector.shape_cast %148 : vector<1x7x16xf32> to vector<7x16xf32>
    %150 = vector.shape_cast %147 : vector<7x16xf32> to vector<1x7x16xf32>
    tpu.vector_store %arg19[%c0_139, %c0_140, %c0_141], %150 {strides = array<i32>} : memref<1x7x16xf32, #tpu.memory_space<vmem>>, vector<1x7x16xf32>,
    return
  }
  func.func @transform_0(%arg0: i32) -> (i32, i32, i32, i32) {
    %c0_i32 = arith.constant 0 : i32
    %c0_i32_0 = arith.constant 0 : i32
    %c0_i32_1 = arith.constant 0 : i32
    %c0_i32_2 = arith.constant 0 : i32
    return %arg0, %c0_i32, %c0_i32_0, %c0_i32_1 : i32, i32, i32, i32
  }
  func.func @transform_1(%arg0: i32) -> (i32, i32, i32) {
    %c0_i32 = arith.constant 0 : i32
    %c0_i32_0 = arith.constant 0 : i32
    %c0_i32_1 = arith.constant 0 : i32
    %c0_i32_2 = arith.constant 0 : i32
    return %c0_i32, %c0_i32_0, %c0_i32_1 : i32, i32, i32
  }
  func.func @transform_2(%arg0: i32) -> (i32, i32, i32) {
    %c0_i32 = arith.constant 0 : i32
    %c0_i32_0 = arith.constant 0 : i32
    %c0_i32_1 = arith.constant 0 : i32
    %c0_i32_2 = arith.constant 0 : i32
    return %c0_i32, %c0_i32_0, %c0_i32_1 : i32, i32, i32
  }
  func.func @transform_3(%arg0: i32) -> (i32, i32, i32) {
    %c0_i32 = arith.constant 0 : i32
    %c0_i32_0 = arith.constant 0 : i32
    %c0_i32_1 = arith.constant 0 : i32
    %c0_i32_2 = arith.constant 0 : i32
    return %c0_i32, %c0_i32_0, %c0_i32_1 : i32, i32, i32
  }
  func.func @transform_4(%arg0: i32) -> (i32, i32) {
    %c0_i32 = arith.constant 0 : i32
    %c0_i32_0 = arith.constant 0 : i32
    %c0_i32_1 = arith.constant 0 : i32
    return %c0_i32, %c0_i32_0 : i32, i32
  }
  func.func @transform_5(%arg0: i32) -> (i32, i32, i32) {
    %c0_i32 = arith.constant 0 : i32
    %c0_i32_0 = arith.constant 0 : i32
    %c0_i32_1 = arith.constant 0 : i32
    %c0_i32_2 = arith.constant 0 : i32
    return %c0_i32, %c0_i32_0, %c0_i32_1 : i32, i32, i32
  }
  func.func @transform_6(%arg0: i32) -> (i32, i32, i32) {
    %c0_i32 = arith.constant 0 : i32
    %c0_i32_0 = arith.constant 0 : i32
    %c0_i32_1 = arith.constant 0 : i32
    %c0_i32_2 = arith.constant 0 : i32
    return %c0_i32, %c0_i32_0, %c0_i32_1 : i32, i32, i32
  }
  func.func @transform_7(%arg0: i32) -> (i32, i32, i32) {
    %c0_i32 = arith.constant 0 : i32
    %c0_i32_0 = arith.constant 0 : i32
    %c0_i32_1 = arith.constant 0 : i32
    %c0_i32_2 = arith.constant 0 : i32
    return %c0_i32, %c0_i32_0, %c0_i32_1 : i32, i32, i32
  }
  func.func @transform_8(%arg0: i32) -> (i32, i32, i32) {
    %c0_i32 = arith.constant 0 : i32
    %c0_i32_0 = arith.constant 0 : i32
    %c0_i32_1 = arith.constant 0 : i32
    %c0_i32_2 = arith.constant 0 : i32
    return %c0_i32, %c0_i32_0, %c0_i32_1 : i32, i32, i32
  }
  func.func @transform_9(%arg0: i32) -> (i32, i32) {
    %c0_i32 = arith.constant 0 : i32
    %c0_i32_0 = arith.constant 0 : i32
    %c0_i32_1 = arith.constant 0 : i32
    return %c0_i32, %c0_i32_0 : i32, i32
  }
  func.func @transform_10(%arg0: i32) -> (i32, i32, i32) {
    %c0_i32 = arith.constant 0 : i32
    %c0_i32_0 = arith.constant 0 : i32
    %c0_i32_1 = arith.constant 0 : i32
    %c0_i32_2 = arith.constant 0 : i32
    return %c0_i32, %c0_i32_0, %c0_i32_1 : i32, i32, i32
  }
  func.func @transform_11(%arg0: i32) -> (i32, i32, i32) {
    %c0_i32 = arith.constant 0 : i32
    %c0_i32_0 = arith.constant 0 : i32
    %c0_i32_1 = arith.constant 0 : i32
    %c0_i32_2 = arith.constant 0 : i32
    return %c0_i32, %c0_i32_0, %c0_i32_1 : i32, i32, i32
  }
  func.func @transform_12(%arg0: i32) -> (i32, i32, i32) {
    %c0_i32 = arith.constant 0 : i32
    %c0_i32_0 = arith.constant 0 : i32
    %c0_i32_1 = arith.constant 0 : i32
    %c0_i32_2 = arith.constant 0 : i32
    return %c0_i32, %c0_i32_0, %c0_i32_1 : i32, i32, i32
  }
  func.func @transform_13(%arg0: i32) -> (i32, i32) {
    %c0_i32 = arith.constant 0 : i32
    %c0_i32_0 = arith.constant 0 : i32
    %c0_i32_1 = arith.constant 0 : i32
    return %c0_i32, %c0_i32_0 : i32, i32
  }
  func.func @transform_14(%arg0: i32) -> (i32, i32) {
    %c0_i32 = arith.constant 0 : i32
    %c0_i32_0 = arith.constant 0 : i32
    %c0_i32_1 = arith.constant 0 : i32
    return %c0_i32, %c0_i32_0 : i32, i32
  }
  func.func @transform_15(%arg0: i32) -> (i32, i32) {
    %c0_i32 = arith.constant 0 : i32
    %c0_i32_0 = arith.constant 0 : i32
    %c0_i32_1 = arith.constant 0 : i32
    return %c0_i32, %c0_i32_0 : i32, i32
  }
  func.func @transform_16(%arg0: i32) -> (i32, i32) {
    %c0_i32 = arith.constant 0 : i32
    %c0_i32_0 = arith.constant 0 : i32
    %c0_i32_1 = arith.constant 0 : i32
    return %c0_i32, %c0_i32_0 : i32, i32
  }
  func.func @transform_17(%arg0: i32) -> (i32, i32) {
    %c0_i32 = arith.constant 0 : i32
    %c0_i32_0 = arith.constant 0 : i32
    %c0_i32_1 = arith.constant 0 : i32
    return %c0_i32, %c0_i32_0 : i32, i32
  }
  func.func @transform_18(%arg0: i32) -> (i32, i32, i32) {
    %c0_i32 = arith.constant 0 : i32
    %c0_i32_0 = arith.constant 0 : i32
    %c0_i32_1 = arith.constant 0 : i32
    return %arg0, %c0_i32, %c0_i32_0 : i32, i32, i32
  }
}

</mosaic_0001>

<llo_original>
// kernel: tile.13
$region0: #{tile.13}
  #allocation0 [shape = 's32[1]{0}', space=sflag, size = 0x4, scoped, tag = 'scoped memory for tile.13']
  %s0 = inlined_call_operand.vmem [shape: f32[16], index: 0, kind: input, shape index: {}]
  %s1 = inlined_call_operand.vmem [shape: f32[16,16], index: 1, kind: output, shape index: {}]
  // Predicated region
  $region2: #{tile.13} parent=0 // pred_check
    _
  $region3: #{tile.13} parent=0 // pred_check_branch
    %3 = sbr.rel (0) target = $region5
  $region4: #{tile.13} parent=0 // pred_region
    _
  $region5: #{tile.13} parent=0 // pred_fallthru
    _
  %v4 = vld [vmem:[%s0] ss:$0 sm:$0xff]
  %5 = vst [vmem:[%s1] sm:$0xff] %v4
  %s6 = scalar_lea.vmem %s1, 8
  %7 = vst [vmem:[%s6] sm:$0xff] %v4

// kernel: tile.14
$region0: #{tile.14}
  %s0 = inlined_call_operand.vmem [shape: f32[16,16], index: 0, kind: input, shape index: {}]
  %s1 = inlined_call_operand.vmem [shape: f32[1,256], index: 1, kind: output, shape index: {}]
  $region1: #{tile.14} parent=0
    #allocation0 [shape = 'u8[8192]{0}', space=vmem, size = 0x2000, scoped, tag = 'scoped mem for output reshape']
    %s2 = smov 3
    %v3 = vld [vmem:[%s0] ss:$8 sm:%s2]
    %vm4 = vcmask 130048
    %5 = vst.msk [vmem:[#allocation0] ss:$8 sm:$0x3] %vm4, %v3
    %s6 = scalar_lea.vmem %s0, 7
    %s7 = smov 3
    %v8 = vld [vmem:[%s6] ss:$8 sm:%s7]
    %9 = vrot.lane.b32.xlu0 %v8, 112
    %v10 = vpop.permute.xlu0 %9
    %vm11 = vcmask 1048448
    %12 = vst.msk [vmem:[#allocation0] ss:$8 sm:$0x3] %vm11, %v10
    %s13 = scalar_lea.vmem %s0, 6
    %s14 = smov 3
    %v15 = vld [vmem:[%s13] ss:$8 sm:%s14]
    %16 = vrot.lane.b32.xlu0 %v15, 96
    %v17 = vpop.permute.xlu0 %16
    %vm18 = vcmask 917248
    %19 = vst.msk [vmem:[#allocation0] ss:$8 sm:$0x3] %vm18, %v17
    %s20 = scalar_lea.vmem %s0, 5
    %s21 = smov 3
    %v22 = vld [vmem:[%s20] ss:$8 sm:%s21]
    %23 = vrot.lane.b32.xlu0 %v22, 80
    %v24 = vpop.permute.xlu0 %23
    %vm25 = vcmask 786048
    %26 = vst.msk [vmem:[#allocation0] ss:$8 sm:$0x3] %vm25, %v24
    %s27 = scalar_lea.vmem %s0, 4
    %s28 = smov 3
    %v29 = vld [vmem:[%s27] ss:$8 sm:%s28]
    %30 = vrot.lane.b32.xlu0 %v29, 64
    %v31 = vpop.permute.xlu0 %30
    %vm32 = vcmask 654848
    %33 = vst.msk [vmem:[#allocation0] ss:$8 sm:$0x3] %vm32, %v31
    %s34 = scalar_lea.vmem %s0, 3
    %s35 = smov 3
    %v36 = vld [vmem:[%s34] ss:$8 sm:%s35]
    %37 = vrot.lane.b32.xlu0 %v36, 48
    %v38 = vpop.permute.xlu0 %37
    %vm39 = vcmask 523648
    %40 = vst.msk [vmem:[#allocation0] ss:$8 sm:$0x3] %vm39, %v38
    %s41 = scalar_lea.vmem %s0, 2
    %s42 = smov 3
    %v43 = vld [vmem:[%s41] ss:$8 sm:%s42]
    %44 = vrot.lane.b32.xlu0 %v43, 32
    %v45 = vpop.permute.xlu0 %44
    %vm46 = vcmask 392448
    %47 = vst.msk [vmem:[#allocation0] ss:$8 sm:$0x3] %vm46, %v45
    %s48 = scalar_lea.vmem %s0, 1
    %s49 = smov 3
    %v50 = vld [vmem:[%s48] ss:$8 sm:%s49]
    %51 = vrot.lane.b32.xlu0 %v50, 16
    %v52 = vpop.permute.xlu0 %51
    %vm53 = vcmask 261248
    %54 = vst.msk [vmem:[#allocation0] ss:$8 sm:$0x3] %vm53, %v52
    %s56 = sshllo.u32 0, 1
    %v58 = vld [vmem:[#allocation0] sm:%s56]
    %s59 = sshllo.u32 0, 1
    %60 = vst [vmem:[%s1] sm:%s59] %v58
    %s61 = scalar_lea.vmem [#allocation0], 8
    %v62 = vld [vmem:[%s61] sm:%s56]
    %s63 = sshllo.u32 0, 1
    %s64 = scalar_lea.vmem %s1, 1
    %65 = vst [vmem:[%s64] sm:%s63] %v62

// kernel: tile.18
$region0: #{tile.18}
  #allocation0 [shape = 's32[1]{0}', space=sflag, size = 0x4, scoped, tag = 'scoped memory for tile.18']
  %s0 = inlined_call_operand.vmem [shape: f32[32], index: 0, kind: input, shape index: {}]
  %s1 = inlined_call_operand.vmem [shape: f32[8,32], index: 1, kind: output, shape index: {}]
  // Predicated region
  $region2: #{tile.18} parent=0 // pred_check
    _
  $region3: #{tile.18} parent=0 // pred_check_branch
    %3 = sbr.rel (0) target = $region5
  $region4: #{tile.18} parent=0 // pred_region
    _
  $region5: #{tile.18} parent=0 // pred_fallthru
    _
  %v4 = vld [vmem:[%s0] ss:$0 sm:$0xff]
  %5 = vst [vmem:[%s1] sm:$0xff] %v4

// kernel: tile.19
$region0: #{tile.19}
  %s0 = inlined_call_operand.vmem [shape: f32[8,32], index: 0, kind: input, shape index: {}]
  %s1 = inlined_call_operand.vmem [shape: f32[1,256], index: 1, kind: output, shape index: {}]
  $region1: #{tile.19} parent=0
    #allocation0 [shape = 'u8[8192]{0}', space=vmem, size = 0x2000, scoped, tag = 'scoped mem for output reshape']
    %s2 = smov 3
    %v3 = vld [vmem:[%s0] ss:$4 sm:%s2]
    %vm4 = vcmask 261120
    %5 = vst.msk [vmem:[#allocation0] ss:$8 sm:$0x3] %vm4, %v3
    %s6 = scalar_lea.vmem %s0, 3
    %s7 = smov 3
    %v8 = vld [vmem:[%s6] ss:$4 sm:%s7]
    %9 = vrot.lane.b32.xlu0 %v8, 96
    %v10 = vpop.permute.xlu0 %9
    %vm11 = vcmask 1048320
    %12 = vst.msk [vmem:[#allocation0] ss:$8 sm:$0x3] %vm11, %v10
    %s13 = scalar_lea.vmem %s0, 2
    %s14 = smov 3
    %v15 = vld [vmem:[%s13] ss:$4 sm:%s14]
    %16 = vrot.lane.b32.xlu0 %v15, 64
    %v17 = vpop.permute.xlu0 %16
    %vm18 = vcmask 785920
    %19 = vst.msk [vmem:[#allocation0] ss:$8 sm:$0x3] %vm18, %v17
    %s20 = scalar_lea.vmem %s0, 1
    %s21 = smov 3
    %v22 = vld [vmem:[%s20] ss:$4 sm:%s21]
    %23 = vrot.lane.b32.xlu0 %v22, 32
    %v24 = vpop.permute.xlu0 %23
    %vm25 = vcmask 523520
    %26 = vst.msk [vmem:[#allocation0] ss:$8 sm:$0x3] %vm25, %v24
    %s28 = sshllo.u32 0, 1
    %v30 = vld [vmem:[#allocation0] sm:%s28]
    %s31 = sshllo.u32 0, 1
    %32 = vst [vmem:[%s1] sm:%s31] %v30
    %s33 = scalar_lea.vmem [#allocation0], 8
    %v34 = vld [vmem:[%s33] sm:%s28]
    %s35 = sshllo.u32 0, 1
    %s36 = scalar_lea.vmem %s1, 1
    %37 = vst [vmem:[%s36] sm:%s35] %v34

// kernel: speech_yolo_forward.1
$region0: #{speech_yolo_forward.1}
  #allocation0 [shape = 'u32[]', space=smem, size = 0x4, offset = 0x4, fixed_abs, tag = 'smem constant byte address 0x4 - core index']
  #allocation1 [shape = 'u32[144,128]{1,0:T(1,128)}', space=vmem, size = 0x12000, scoped, tag = 'internal scratch']
  %s0 = inlined_call_operand.vmem [shape: f32[2,4,16,16], index: 0, kind: input, shape index: {}]
  %s1 = inlined_call_operand.vmem [shape: f32[4,16,64], index: 1, kind: input, shape index: {}]
  %s2 = inlined_call_operand.vmem [shape: f32[2,16,16], index: 2, kind: input, shape index: {}]
  %s3 = inlined_call_operand.vmem [shape: f32[3,64,256], index: 3, kind: input, shape index: {}]
  %s4 = inlined_call_operand.vmem [shape: f32[1,256], index: 4, kind: input, shape index: {}]
  %s5 = inlined_call_operand.vmem [shape: f32[2,8,16], index: 5, kind: input, shape index: {}]
  %s6 = inlined_call_operand.vmem [shape: f32[2,256,128], index: 6, kind: input, shape index: {}]
  %s7 = inlined_call_operand.vmem [shape: f32[2,8,8], index: 7, kind: input, shape index: {}]
  %s8 = inlined_call_operand.vmem [shape: f32[3,128,256], index: 8, kind: input, shape index: {}]
  %s9 = inlined_call_operand.vmem [shape: f32[1,256], index: 9, kind: input, shape index: {}]
  %s10 = inlined_call_operand.vmem [shape: f32[2,4,8], index: 10, kind: input, shape index: {}]
  %s11 = inlined_call_operand.vmem [shape: f32[2,256,128], index: 11, kind: input, shape index: {}]
  %s12 = inlined_call_operand.vmem [shape: f32[4,128,512], index: 12, kind: input, shape index: {}]
  %s13 = inlined_call_operand.vmem [shape: f32[1,512], index: 13, kind: input, shape index: {}]
  %s14 = inlined_call_operand.vmem [shape: f32[512,112], index: 14, kind: input, shape index: {}]
  %s15 = inlined_call_operand.vmem [shape: f32[1,112], index: 15, kind: input, shape index: {}]
  %s16 = inlined_call_operand.vmem [shape: f32[7,112], index: 16, kind: input, shape index: {}]
  %s17 = inlined_call_operand.vmem [shape: f32[112,16], index: 17, kind: input, shape index: {}]
  %s18 = inlined_call_operand.vmem [shape: f32[2,7,16], index: 18, kind: output, shape index: {}]
  %s19 = sld [smem:[#allocation0]]
  $region105: #{speech_yolo_forward.1} parent=0
    _
  %s21 = ssub.s32 1, %s19
  %s22 = scalar_select 0, %s21, %s19
  loop: start=0, step=1, limit=4
  $region2: #{speech_yolo_forward.1} parent=0 // loop_pre_header
    _
  $region3: #{speech_yolo_forward.1} parent=0 // loop_header
    %s24 = sphi 0, %s28
    %p25 = scmp.ge.s32.totalorder %s24, 4
    %s34 = sphi 0, %s36
    %s37 = sphi 0, %s34
    %s38 = sphi 0, %s37
    %s54 = sphi 0, %s38
    %s58 = sphi 0, %s58
    %s60 = sphi 0, %s58
    %s61 = sphi 0, %s60
    %s75 = sphi 0, %s61
    %s79 = sphi 0, %s79
    %s81 = sphi 0, %s79
    %s82 = sphi 0, %s81
    %s96 = sphi 0, %s82
    %s100 = sphi 0, %s100
    %s102 = sphi 0, %s100
    %s103 = sphi 0, %s102
    %s117 = sphi 0, %s103
    %s121 = sphi 0, %s121
    %s123 = sphi 0, %s121
    %s124 = sphi 0, %s123
    %s138 = sphi 0, %s124
    %s142 = sphi 0, %s142
    %s144 = sphi 0, %s142
    %s145 = sphi 0, %s144
    %s159 = sphi 0, %s145
    %s163 = sphi 0, %s163
    %s165 = sphi 0, %s163
    %s166 = sphi 0, %s165
    %s180 = sphi 0, %s166
    %s184 = sphi 0, %s184
    %s186 = sphi 0, %s184
    %s187 = sphi 0, %s186
    %s201 = sphi 0, %s187
    %s205 = sphi 0, %s205
    %s207 = sphi 0, %s205
    %s208 = sphi 0, %s207
    %s222 = sphi 0, %s208
    %s226 = sphi 0, %s226
    %s228 = sphi 0, %s226
    %s229 = sphi 0, %s228
    %s243 = sphi 0, %s229
    %s247 = sphi 0, %s247
    %s249 = sphi 0, %s247
    %s250 = sphi 0, %s249
    %s264 = sphi 0, %s250
    %s268 = sphi 0, %s268
    %s270 = sphi 0, %s268
    %s271 = sphi 0, %s270
    %s285 = sphi 0, %s271
    %s289 = sphi 0, %s289
    %s291 = sphi 0, %s289
    %s292 = sphi 0, %s291
    %s306 = sphi 0, %s292
    %s310 = sphi 0, %s310
    %s312 = sphi 0, %s310
    %s313 = sphi 0, %s312
    %s327 = sphi 0, %s313
    %s331 = sphi 0, %s331
    %s333 = sphi 0, %s331
    %s334 = sphi 0, %s333
    %s348 = sphi 0, %s334
    %s352 = sphi 0, %s352
    %s354 = sphi 0, %s352
    %s355 = sphi 0, %s354
    %s369 = sphi 0, %s355
    %s373 = sphi 0, %s373
    %s375 = sphi 0, %s373
    %s376 = sphi 0, %s375
    %s390 = sphi 0, %s376
    %s394 = sphi 0, %s394
    %s396 = sphi 0, %s394
    %s397 = sphi 0, %s396
    %s411 = sphi 0, %s397
    %s417 = sphi 0, %s419
    %s420 = sphi 0, %s417
    %s421 = sphi 0, %s420
    %s437 = sphi 0, %s421
  $region4: #{speech_yolo_forward.1} parent=0 // loop_header_branch
    %27 = sbr.rel (%p25) target = $region8
  $region5: #{speech_yolo_forward.1} parent=0 // loop_body
    %s29 = ssub.s32 %s24, 1
    %s30 = ssub.s32 %s24, 2
    %s31 = sadd.s32 %s24, 1
    %s32 = ssub.s32 %s24, %s31
    %p33 = scmp.eq.s32.totalorder %s32, 0
    %s35 = sadd.s32 %s34, 1
    %s36 = scalar_select %p33, %s34, %s35
    %p39 = pneg %p33
    %p40 = scmp.eq.s32.totalorder %s24, 1
    %p41 = por %p39, %p40
    %p42 = scmp.ne.s32.totalorder %s34, %s37
    %p43 = scmp.eq.s32.totalorder %s24, 0
    %p44 = por %p42, %p43
    %p45 = scmp.ne.s32.totalorder %s34, %s37
    %p46 = scmp.eq.s32.totalorder %s29, 1
    %p47 = por %p45, %p46
    %p48 = scmp.ne.s32.totalorder %s37, %s38
    %p49 = scmp.eq.s32.totalorder %s29, 0
    %p50 = por %p48, %p49
    %p51 = scmp.ne.s32.totalorder %s37, %s38
    %p52 = scmp.eq.s32.totalorder %s30, 1
    %p53 = por %p51, %p52
    %p55 = scmp.ne.s32.totalorder %s38, %s54
    %p56 = scmp.eq.s32.totalorder %s30, 0
    %p57 = por %p55, %p56
    %s59 = sadd.s32 %s58, 1
    %p62 = scmp.eq.s32.totalorder %s24, 1
    %p63 = scmp.ne.s32.totalorder %s58, %s60
    %p64 = scmp.eq.s32.totalorder %s24, 0
    %p65 = por %p63, %p64
    %p66 = scmp.ne.s32.totalorder %s58, %s60
    %p67 = scmp.eq.s32.totalorder %s29, 1
    %p68 = por %p66, %p67
    %p69 = scmp.ne.s32.totalorder %s60, %s61
    %p70 = scmp.eq.s32.totalorder %s29, 0
    %p71 = por %p69, %p70
    %p72 = scmp.ne.s32.totalorder %s60, %s61
    %p73 = scmp.eq.s32.totalorder %s30, 1
    %p74 = por %p72, %p73
    %p76 = scmp.ne.s32.totalorder %s61, %s75
    %p77 = scmp.eq.s32.totalorder %s30, 0
    %p78 = por %p76, %p77
    %s80 = sadd.s32 %s79, 1
    %p83 = scmp.eq.s32.totalorder %s24, 1
    %p84 = scmp.ne.s32.totalorder %s79, %s81
    %p85 = scmp.eq.s32.totalorder %s24, 0
    %p86 = por %p84, %p85
    %p87 = scmp.ne.s32.totalorder %s79, %s81
    %p88 = scmp.eq.s32.totalorder %s29, 1
    %p89 = por %p87, %p88
    %p90 = scmp.ne.s32.totalorder %s81, %s82
    %p91 = scmp.eq.s32.totalorder %s29, 0
    %p92 = por %p90, %p91
    %p93 = scmp.ne.s32.totalorder %s81, %s82
    %p94 = scmp.eq.s32.totalorder %s30, 1
    %p95 = por %p93, %p94
    %p97 = scmp.ne.s32.totalorder %s82, %s96
    %p98 = scmp.eq.s32.totalorder %s30, 0
    %p99 = por %p97, %p98
    %s101 = sadd.s32 %s100, 1
    %p104 = scmp.eq.s32.totalorder %s24, 1
    %p105 = scmp.ne.s32.totalorder %s100, %s102
    %p106 = scmp.eq.s32.totalorder %s24, 0
    %p107 = por %p105, %p106
    %p108 = scmp.ne.s32.totalorder %s100, %s102
    %p109 = scmp.eq.s32.totalorder %s29, 1
    %p110 = por %p108, %p109
    %p111 = scmp.ne.s32.totalorder %s102, %s103
    %p112 = scmp.eq.s32.totalorder %s29, 0
    %p113 = por %p111, %p112
    %p114 = scmp.ne.s32.totalorder %s102, %s103
    %p115 = scmp.eq.s32.totalorder %s30, 1
    %p116 = por %p114, %p115
    %p118 = scmp.ne.s32.totalorder %s103, %s117
    %p119 = scmp.eq.s32.totalorder %s30, 0
    %p120 = por %p118, %p119
    %s122 = sadd.s32 %s121, 1
    %p125 = scmp.eq.s32.totalorder %s24, 1
    %p126 = scmp.ne.s32.totalorder %s121, %s123
    %p127 = scmp.eq.s32.totalorder %s24, 0
    %p128 = por %p126, %p127
    %p129 = scmp.ne.s32.totalorder %s121, %s123
    %p130 = scmp.eq.s32.totalorder %s29, 1
    %p131 = por %p129, %p130
    %p132 = scmp.ne.s32.totalorder %s123, %s124
    %p133 = scmp.eq.s32.totalorder %s29, 0
    %p134 = por %p132, %p133
    %p135 = scmp.ne.s32.totalorder %s123, %s124
    %p136 = scmp.eq.s32.totalorder %s30, 1
    %p137 = por %p135, %p136
    %p139 = scmp.ne.s32.totalorder %s124, %s138
    %p140 = scmp.eq.s32.totalorder %s30, 0
    %p141 = por %p139, %p140
    %s143 = sadd.s32 %s142, 1
    %p146 = scmp.eq.s32.totalorder %s24, 1
    %p147 = scmp.ne.s32.totalorder %s142, %s144
    %p148 = scmp.eq.s32.totalorder %s24, 0
    %p149 = por %p147, %p148
    %p150 = scmp.ne.s32.totalorder %s142, %s144
    %p151 = scmp.eq.s32.totalorder %s29, 1
    %p152 = por %p150, %p151
    %p153 = scmp.ne.s32.totalorder %s144, %s145
    %p154 = scmp.eq.s32.totalorder %s29, 0
    %p155 = por %p153, %p154
    %p156 = scmp.ne.s32.totalorder %s144, %s145
    %p157 = scmp.eq.s32.totalorder %s30, 1
    %p158 = por %p156, %p157
    %p160 = scmp.ne.s32.totalorder %s145, %s159
    %p161 = scmp.eq.s32.totalorder %s30, 0
    %p162 = por %p160, %p161
    %s164 = sadd.s32 %s163, 1
    %p167 = scmp.eq.s32.totalorder %s24, 1
    %p168 = scmp.ne.s32.totalorder %s163, %s165
    %p169 = scmp.eq.s32.totalorder %s24, 0
    %p170 = por %p168, %p169
    %p171 = scmp.ne.s32.totalorder %s163, %s165
    %p172 = scmp.eq.s32.totalorder %s29, 1
    %p173 = por %p171, %p172
    %p174 = scmp.ne.s32.totalorder %s165, %s166
    %p175 = scmp.eq.s32.totalorder %s29, 0
    %p176 = por %p174, %p175
    %p177 = scmp.ne.s32.totalorder %s165, %s166
    %p178 = scmp.eq.s32.totalorder %s30, 1
    %p179 = por %p177, %p178
    %p181 = scmp.ne.s32.totalorder %s166, %s180
    %p182 = scmp.eq.s32.totalorder %s30, 0
    %p183 = por %p181, %p182
    %s185 = sadd.s32 %s184, 1
    %p188 = scmp.eq.s32.totalorder %s24, 1
    %p189 = scmp.ne.s32.totalorder %s184, %s186
    %p190 = scmp.eq.s32.totalorder %s24, 0
    %p191 = por %p189, %p190
    %p192 = scmp.ne.s32.totalorder %s184, %s186
    %p193 = scmp.eq.s32.totalorder %s29, 1
    %p194 = por %p192, %p193
    %p195 = scmp.ne.s32.totalorder %s186, %s187
    %p196 = scmp.eq.s32.totalorder %s29, 0
    %p197 = por %p195, %p196
    %p198 = scmp.ne.s32.totalorder %s186, %s187
    %p199 = scmp.eq.s32.totalorder %s30, 1
    %p200 = por %p198, %p199
    %p202 = scmp.ne.s32.totalorder %s187, %s201
    %p203 = scmp.eq.s32.totalorder %s30, 0
    %p204 = por %p202, %p203
    %s206 = sadd.s32 %s205, 1
    %p209 = scmp.eq.s32.totalorder %s24, 1
    %p210 = scmp.ne.s32.totalorder %s205, %s207
    %p211 = scmp.eq.s32.totalorder %s24, 0
    %p212 = por %p210, %p211
    %p213 = scmp.ne.s32.totalorder %s205, %s207
    %p214 = scmp.eq.s32.totalorder %s29, 1
    %p215 = por %p213, %p214
    %p216 = scmp.ne.s32.totalorder %s207, %s208
    %p217 = scmp.eq.s32.totalorder %s29, 0
    %p218 = por %p216, %p217
    %p219 = scmp.ne.s32.totalorder %s207, %s208
    %p220 = scmp.eq.s32.totalorder %s30, 1
    %p221 = por %p219, %p220
    %p223 = scmp.ne.s32.totalorder %s208, %s222
    %p224 = scmp.eq.s32.totalorder %s30, 0
    %p225 = por %p223, %p224
    %s227 = sadd.s32 %s226, 1
    %p230 = scmp.eq.s32.totalorder %s24, 1
    %p231 = scmp.ne.s32.totalorder %s226, %s228
    %p232 = scmp.eq.s32.totalorder %s24, 0
    %p233 = por %p231, %p232
    %p234 = scmp.ne.s32.totalorder %s226, %s228
    %p235 = scmp.eq.s32.totalorder %s29, 1
    %p236 = por %p234, %p235
    %p237 = scmp.ne.s32.totalorder %s228, %s229
    %p238 = scmp.eq.s32.totalorder %s29, 0
    %p239 = por %p237, %p238
    %p240 = scmp.ne.s32.totalorder %s228, %s229
    %p241 = scmp.eq.s32.totalorder %s30, 1
    %p242 = por %p240, %p241
    %p244 = scmp.ne.s32.totalorder %s229, %s243
    %p245 = scmp.eq.s32.totalorder %s30, 0
    %p246 = por %p244, %p245
    %s248 = sadd.s32 %s247, 1
    %p251 = scmp.eq.s32.totalorder %s24, 1
    %p252 = scmp.ne.s32.totalorder %s247, %s249
    %p253 = scmp.eq.s32.totalorder %s24, 0
    %p254 = por %p252, %p253
    %p255 = scmp.ne.s32.totalorder %s247, %s249
    %p256 = scmp.eq.s32.totalorder %s29, 1
    %p257 = por %p255, %p256
    %p258 = scmp.ne.s32.totalorder %s249, %s250
    %p259 = scmp.eq.s32.totalorder %s29, 0
    %p260 = por %p258, %p259
    %p261 = scmp.ne.s32.totalorder %s249, %s250
    %p262 = scmp.eq.s32.totalorder %s30, 1
    %p263 = por %p261, %p262
    %p265 = scmp.ne.s32.totalorder %s250, %s264
    %p266 = scmp.eq.s32.totalorder %s30, 0
    %p267 = por %p265, %p266
    %s269 = sadd.s32 %s268, 1
    %p272 = scmp.eq.s32.totalorder %s24, 1
    %p273 = scmp.ne.s32.totalorder %s268, %s270
    %p274 = scmp.eq.s32.totalorder %s24, 0
    %p275 = por %p273, %p274
    %p276 = scmp.ne.s32.totalorder %s268, %s270
    %p277 = scmp.eq.s32.totalorder %s29, 1
    %p278 = por %p276, %p277
    %p279 = scmp.ne.s32.totalorder %s270, %s271
    %p280 = scmp.eq.s32.totalorder %s29, 0
    %p281 = por %p279, %p280
    %p282 = scmp.ne.s32.totalorder %s270, %s271
    %p283 = scmp.eq.s32.totalorder %s30, 1
    %p284 = por %p282, %p283
    %p286 = scmp.ne.s32.totalorder %s271, %s285
    %p287 = scmp.eq.s32.totalorder %s30, 0
    %p288 = por %p286, %p287
    %s290 = sadd.s32 %s289, 1
    %p293 = scmp.eq.s32.totalorder %s24, 1
    %p294 = scmp.ne.s32.totalorder %s289, %s291
    %p295 = scmp.eq.s32.totalorder %s24, 0
    %p296 = por %p294, %p295
    %p297 = scmp.ne.s32.totalorder %s289, %s291
    %p298 = scmp.eq.s32.totalorder %s29, 1
    %p299 = por %p297, %p298
    %p300 = scmp.ne.s32.totalorder %s291, %s292
    %p301 = scmp.eq.s32.totalorder %s29, 0
    %p302 = por %p300, %p301
    %p303 = scmp.ne.s32.totalorder %s291, %s292
    %p304 = scmp.eq.s32.totalorder %s30, 1
    %p305 = por %p303, %p304
    %p307 = scmp.ne.s32.totalorder %s292, %s306
    %p308 = scmp.eq.s32.totalorder %s30, 0
    %p309 = por %p307, %p308
    %s311 = sadd.s32 %s310, 1
    %p314 = scmp.eq.s32.totalorder %s24, 1
    %p315 = scmp.ne.s32.totalorder %s310, %s312
    %p316 = scmp.eq.s32.totalorder %s24, 0
    %p317 = por %p315, %p316
    %p318 = scmp.ne.s32.totalorder %s310, %s312
    %p319 = scmp.eq.s32.totalorder %s29, 1
    %p320 = por %p318, %p319
    %p321 = scmp.ne.s32.totalorder %s312, %s313
    %p322 = scmp.eq.s32.totalorder %s29, 0
    %p323 = por %p321, %p322
    %p324 = scmp.ne.s32.totalorder %s312, %s313
    %p325 = scmp.eq.s32.totalorder %s30, 1
    %p326 = por %p324, %p325
    %p328 = scmp.ne.s32.totalorder %s313, %s327
    %p329 = scmp.eq.s32.totalorder %s30, 0
    %p330 = por %p328, %p329
    %s332 = sadd.s32 %s331, 1
    %p335 = scmp.eq.s32.totalorder %s24, 1
    %p336 = scmp.ne.s32.totalorder %s331, %s333
    %p337 = scmp.eq.s32.totalorder %s24, 0
    %p338 = por %p336, %p337
    %p339 = scmp.ne.s32.totalorder %s331, %s333
    %p340 = scmp.eq.s32.totalorder %s29, 1
    %p341 = por %p339, %p340
    %p342 = scmp.ne.s32.totalorder %s333, %s334
    %p343 = scmp.eq.s32.totalorder %s29, 0
    %p344 = por %p342, %p343
    %p345 = scmp.ne.s32.totalorder %s333, %s334
    %p346 = scmp.eq.s32.totalorder %s30, 1
    %p347 = por %p345, %p346
    %p349 = scmp.ne.s32.totalorder %s334, %s348
    %p350 = scmp.eq.s32.totalorder %s30, 0
    %p351 = por %p349, %p350
    %s353 = sadd.s32 %s352, 1
    %p356 = scmp.eq.s32.totalorder %s24, 1
    %p357 = scmp.ne.s32.totalorder %s352, %s354
    %p358 = scmp.eq.s32.totalorder %s24, 0
    %p359 = por %p357, %p358
    %p360 = scmp.ne.s32.totalorder %s352, %s354
    %p361 = scmp.eq.s32.totalorder %s29, 1
    %p362 = por %p360, %p361
    %p363 = scmp.ne.s32.totalorder %s354, %s355
    %p364 = scmp.eq.s32.totalorder %s29, 0
    %p365 = por %p363, %p364
    %p366 = scmp.ne.s32.totalorder %s354, %s355
    %p367 = scmp.eq.s32.totalorder %s30, 1
    %p368 = por %p366, %p367
    %p370 = scmp.ne.s32.totalorder %s355, %s369
    %p371 = scmp.eq.s32.totalorder %s30, 0
    %p372 = por %p370, %p371
    %s374 = sadd.s32 %s373, 1
    %p377 = scmp.eq.s32.totalorder %s24, 1
    %p378 = scmp.ne.s32.totalorder %s373, %s375
    %p379 = scmp.eq.s32.totalorder %s24, 0
    %p380 = por %p378, %p379
    %p381 = scmp.ne.s32.totalorder %s373, %s375
    %p382 = scmp.eq.s32.totalorder %s29, 1
    %p383 = por %p381, %p382
    %p384 = scmp.ne.s32.totalorder %s375, %s376
    %p385 = scmp.eq.s32.totalorder %s29, 0
    %p386 = por %p384, %p385
    %p387 = scmp.ne.s32.totalorder %s375, %s376
    %p388 = scmp.eq.s32.totalorder %s30, 1
    %p389 = por %p387, %p388
    %p391 = scmp.ne.s32.totalorder %s376, %s390
    %p392 = scmp.eq.s32.totalorder %s30, 0
    %p393 = por %p391, %p392
    %s395 = sadd.s32 %s394, 1
    %p398 = scmp.eq.s32.totalorder %s24, 1
    %p399 = scmp.ne.s32.totalorder %s394, %s396
    %p400 = scmp.eq.s32.totalorder %s24, 0
    %p401 = por %p399, %p400
    %p402 = scmp.ne.s32.totalorder %s394, %s396
    %p403 = scmp.eq.s32.totalorder %s29, 1
    %p404 = por %p402, %p403
    %p405 = scmp.ne.s32.totalorder %s396, %s397
    %p406 = scmp.eq.s32.totalorder %s29, 0
    %p407 = por %p405, %p406
    %p408 = scmp.ne.s32.totalorder %s396, %s397
    %p409 = scmp.eq.s32.totalorder %s30, 1
    %p410 = por %p408, %p409
    %p412 = scmp.ne.s32.totalorder %s397, %s411
    %p413 = scmp.eq.s32.totalorder %s30, 0
    %p414 = por %p412, %p413
    %s415 = ssub.s32 %s24, %s31
    %p416 = scmp.eq.s32.totalorder %s415, 0
    %s418 = sadd.s32 %s417, 1
    %s419 = scalar_select %p416, %s417, %s418
    %p422 = pneg %p416
    %p423 = scmp.eq.s32.totalorder %s24, 1
    %p424 = por %p422, %p423
    %p425 = scmp.ne.s32.totalorder %s417, %s420
    %p426 = scmp.eq.s32.totalorder %s24, 0
    %p427 = por %p425, %p426
    %p428 = scmp.ne.s32.totalorder %s417, %s420
    %p429 = scmp.eq.s32.totalorder %s29, 1
    %p430 = por %p428, %p429
    %p431 = scmp.ne.s32.totalorder %s420, %s421
    %p432 = scmp.eq.s32.totalorder %s29, 0
    %p433 = por %p431, %p432
    %p434 = scmp.ne.s32.totalorder %s420, %s421
    %p435 = scmp.eq.s32.totalorder %s30, 1
    %p436 = por %p434, %p435
    %p438 = scmp.ne.s32.totalorder %s421, %s437
    %p439 = scmp.eq.s32.totalorder %s30, 0
    %p440 = por %p438, %p439
    %p441 = scmp.le.s32.totalorder 1, %s24
    %p442 = scmp.lt.s32.totalorder %s24, 3
    %p443 = pnand %p441, %p442
    %p444 = pneg %p443
    // Predicated region
    $region9: #{speech_yolo_forward.1} parent=5 // pred_check
      _
    $region10: #{speech_yolo_forward.1} parent=5 // pred_check_branch
      %446 = sbr.rel (%p443) target = $region12
    $region11: #{speech_yolo_forward.1} parent=5 // pred_region
      %s447 = ssub.s32 %s24, 1
      // Predicated region
      $region13: #{speech_yolo_forward.1} parent=11 // pred_check
        %p448 = pneg %p71
      $region14: #{speech_yolo_forward.1} parent=11 // pred_check_branch
        %450 = sbr.rel (%p448) target = $region16
      $region15: #{speech_yolo_forward.1} parent=11 // pred_region
        _
      $region16: #{speech_yolo_forward.1} parent=11 // pred_fallthru
        _
      // Predicated region
      $region17: #{speech_yolo_forward.1} parent=11 // pred_check
        %p451 = pneg %p92
      $region18: #{speech_yolo_forward.1} parent=11 // pred_check_branch
        %453 = sbr.rel (%p451) target = $region20
      $region19: #{speech_yolo_forward.1} parent=11 // pred_region
        _
      $region20: #{speech_yolo_forward.1} parent=11 // pred_fallthru
        _
      // Predicated region
      $region21: #{speech_yolo_forward.1} parent=11 // pred_check
        %p454 = pneg %p113
      $region22: #{speech_yolo_forward.1} parent=11 // pred_check_branch
        %456 = sbr.rel (%p454) target = $region24
      $region23: #{speech_yolo_forward.1} parent=11 // pred_region
        _
      $region24: #{speech_yolo_forward.1} parent=11 // pred_fallthru
        _
      // Predicated region
      $region25: #{speech_yolo_forward.1} parent=11 // pred_check
        %p457 = pneg %p134
      $region26: #{speech_yolo_forward.1} parent=11 // pred_check_branch
        %459 = sbr.rel (%p457) target = $region28
      $region27: #{speech_yolo_forward.1} parent=11 // pred_region
        _
      $region28: #{speech_yolo_forward.1} parent=11 // pred_fallthru
        _
      // Predicated region
      $region29: #{speech_yolo_forward.1} parent=11 // pred_check
        %p460 = pneg %p155
      $region30: #{speech_yolo_forward.1} parent=11 // pred_check_branch
        %462 = sbr.rel (%p460) target = $region32
      $region31: #{speech_yolo_forward.1} parent=11 // pred_region
        _
      $region32: #{speech_yolo_forward.1} parent=11 // pred_fallthru
        _
      // Predicated region
      $region33: #{speech_yolo_forward.1} parent=11 // pred_check
        %p463 = pneg %p176
      $region34: #{speech_yolo_forward.1} parent=11 // pred_check_branch
        %465 = sbr.rel (%p463) target = $region36
      $region35: #{speech_yolo_forward.1} parent=11 // pred_region
        _
      $region36: #{speech_yolo_forward.1} parent=11 // pred_fallthru
        _
      // Predicated region
      $region37: #{speech_yolo_forward.1} parent=11 // pred_check
        %p466 = pneg %p197
      $region38: #{speech_yolo_forward.1} parent=11 // pred_check_branch
        %468 = sbr.rel (%p466) target = $region40
      $region39: #{speech_yolo_forward.1} parent=11 // pred_region
        _
      $region40: #{speech_yolo_forward.1} parent=11 // pred_fallthru
        _
      // Predicated region
      $region41: #{speech_yolo_forward.1} parent=11 // pred_check
        %p469 = pneg %p218
      $region42: #{speech_yolo_forward.1} parent=11 // pred_check_branch
        %471 = sbr.rel (%p469) target = $region44
      $region43: #{speech_yolo_forward.1} parent=11 // pred_region
        _
      $region44: #{speech_yolo_forward.1} parent=11 // pred_fallthru
        _
      // Predicated region
      $region45: #{speech_yolo_forward.1} parent=11 // pred_check
        %p472 = pneg %p239
      $region46: #{speech_yolo_forward.1} parent=11 // pred_check_branch
        %474 = sbr.rel (%p472) target = $region48
      $region47: #{speech_yolo_forward.1} parent=11 // pred_region
        _
      $region48: #{speech_yolo_forward.1} parent=11 // pred_fallthru
        _
      // Predicated region
      $region49: #{speech_yolo_forward.1} parent=11 // pred_check
        %p475 = pneg %p260
      $region50: #{speech_yolo_forward.1} parent=11 // pred_check_branch
        %477 = sbr.rel (%p475) target = $region52
      $region51: #{speech_yolo_forward.1} parent=11 // pred_region
        _
      $region52: #{speech_yolo_forward.1} parent=11 // pred_fallthru
        _
      // Predicated region
      $region53: #{speech_yolo_forward.1} parent=11 // pred_check
        %p478 = pneg %p281
      $region54: #{speech_yolo_forward.1} parent=11 // pred_check_branch
        %480 = sbr.rel (%p478) target = $region56
      $region55: #{speech_yolo_forward.1} parent=11 // pred_region
        _
      $region56: #{speech_yolo_forward.1} parent=11 // pred_fallthru
        _
      // Predicated region
      $region57: #{speech_yolo_forward.1} parent=11 // pred_check
        %p481 = pneg %p302
      $region58: #{speech_yolo_forward.1} parent=11 // pred_check_branch
        %483 = sbr.rel (%p481) target = $region60
      $region59: #{speech_yolo_forward.1} parent=11 // pred_region
        _
      $region60: #{speech_yolo_forward.1} parent=11 // pred_fallthru
        _
      // Predicated region
      $region61: #{speech_yolo_forward.1} parent=11 // pred_check
        %p484 = pneg %p323
      $region62: #{speech_yolo_forward.1} parent=11 // pred_check_branch
        %486 = sbr.rel (%p484) target = $region64
      $region63: #{speech_yolo_forward.1} parent=11 // pred_region
        _
      $region64: #{speech_yolo_forward.1} parent=11 // pred_fallthru
        _
      // Predicated region
      $region65: #{speech_yolo_forward.1} parent=11 // pred_check
        %p487 = pneg %p344
      $region66: #{speech_yolo_forward.1} parent=11 // pred_check_branch
        %489 = sbr.rel (%p487) target = $region68
      $region67: #{speech_yolo_forward.1} parent=11 // pred_region
        _
      $region68: #{speech_yolo_forward.1} parent=11 // pred_fallthru
        _
      // Predicated region
      $region69: #{speech_yolo_forward.1} parent=11 // pred_check
        %p490 = pneg %p365
      $region70: #{speech_yolo_forward.1} parent=11 // pred_check_branch
        %492 = sbr.rel (%p490) target = $region72
      $region71: #{speech_yolo_forward.1} parent=11 // pred_region
        _
      $region72: #{speech_yolo_forward.1} parent=11 // pred_fallthru
        _
      // Predicated region
      $region73: #{speech_yolo_forward.1} parent=11 // pred_check
        %p493 = pneg %p386
      $region74: #{speech_yolo_forward.1} parent=11 // pred_check_branch
        %495 = sbr.rel (%p493) target = $region76
      $region75: #{speech_yolo_forward.1} parent=11 // pred_region
        _
      $region76: #{speech_yolo_forward.1} parent=11 // pred_fallthru
        _
      // Predicated region
      $region77: #{speech_yolo_forward.1} parent=11 // pred_check
        %p496 = pneg %p407
      $region78: #{speech_yolo_forward.1} parent=11 // pred_check_branch
        %498 = sbr.rel (%p496) target = $region80
      $region79: #{speech_yolo_forward.1} parent=11 // pred_region
        _
      $region80: #{speech_yolo_forward.1} parent=11 // pred_fallthru
        _
    $region12: #{speech_yolo_forward.1} parent=5 // pred_fallthru
      _
    %p499 = scmp.lt.s32.totalorder %s24, 2
    // Predicated region
    $region81: #{speech_yolo_forward.1} parent=5 // pred_check
      %p500 = pneg %p499
    $region82: #{speech_yolo_forward.1} parent=5 // pred_check_branch
      %502 = sbr.rel (%p500) target = $region84
    $region83: #{speech_yolo_forward.1} parent=5 // pred_region
      // Predicated region
      $region85: #{speech_yolo_forward.1} parent=83 // pred_check
        %p503 = pneg %p44
      $region86: #{speech_yolo_forward.1} parent=83 // pred_check_branch
        %505 = sbr.rel (%p503) target = $region88
      $region87: #{speech_yolo_forward.1} parent=83 // pred_region
        %p506 = scmp.lt.s32.totalorder %s24, 1
        %s507 = scalar_select %p506, %s24, 1
        %s508 = smul.addr %s507, 8
        %s509 = smul.addr %s508, 8
        %s510 = scalar_lea.vmem %s0, %s509
      $region88: #{speech_yolo_forward.1} parent=83 // pred_fallthru
        _
    $region84: #{speech_yolo_forward.1} parent=5 // pred_fallthru
      _
    %p511 = scmp.le.s32.totalorder 1, %s24
    %p512 = scmp.lt.s32.totalorder %s24, 3
    %p513 = pnand %p511, %p512
    %p514 = pneg %p513
    // Predicated region
    $region89: #{speech_yolo_forward.1} parent=5 // pred_check
      _
    $region90: #{speech_yolo_forward.1} parent=5 // pred_check_branch
      %516 = sbr.rel (%p513) target = $region92
    $region91: #{speech_yolo_forward.1} parent=5 // pred_region
      %s517 = ssub.s32 %s24, 1
      %p518 = scmp.lt.s32.totalorder %s29, 1
      %s519 = scalar_select %p518, %s29, 1
      %s520 = smul.addr %s519, 8
      %s521 = smul.addr %s520, 8
      %s522 = scalar_lea.vmem %s0, %s521
      %p523 = pneg %p50
      %p524 = pneg %p47
      %p525 = pneg %p71
      %p526 = pneg %p68
      %p527 = pneg %p92
      %p528 = pneg %p89
      %p529 = pneg %p113
      %p530 = pneg %p110
      %p531 = pneg %p134
      %p532 = pneg %p131
      %p533 = pneg %p155
      %p534 = pneg %p152
      %p535 = pneg %p176
      %p536 = pneg %p173
      %p537 = pneg %p197
      %p538 = pneg %p194
      %p539 = pneg %p218
      %p540 = pneg %p215
      %p541 = pneg %p239
      %p542 = pneg %p236
      %p543 = pneg %p260
      %p544 = pneg %p257
      %p545 = pneg %p281
      %p546 = pneg %p278
      %p547 = pneg %p302
      %p548 = pneg %p299
      %p549 = pneg %p323
      %p550 = pneg %p320
      %p551 = pneg %p344
      %p552 = pneg %p341
      %p553 = pneg %p365
      %p554 = pneg %p362
      %p555 = pneg %p386
      %p556 = pneg %p383
      %p557 = pneg %p407
      %p558 = pneg %p404
      %p559 = pneg %p433
      %p560 = pneg %p430
      %p561 = scmp.lt.s32.totalorder %s29, 1
      %s562 = scalar_select %p561, %s29, 1
      %s563 = smul.addr %s562, 8
      %s564 = scalar_lea.vmem %s18, %s563
      %p565 = scmp.lt.s32.totalorder %s29, 1
      %s566 = scalar_select %p565, %s29, 1
      %s567 = smul.addr %s566, 8
      %s568 = smul.addr %s567, 8
      %s569 = scalar_lea.vmem %s0, %s568
      %p570 = scmp.lt.s32.totalorder %s29, 1
      %s571 = scalar_select %p570, %s29, 1
      %s572 = smul.addr %s571, 8
      %s573 = scalar_lea.vmem %s18, %s572
      %v574 = vld [vmem:[%s569] sm:$0xff]
      %v575 = vld [vmem:[%s569 + $0x8] sm:$0xff]
      %v576 = vld [vmem:[%s1] sm:$0xff]
      %v577 = vld [vmem:[%s1 + $0x8] sm:$0xff]
      %s578 = scalar_lea.vmem %s569, 16
      %v579 = vld [vmem:[%s578] sm:$0xff]
      %v580 = vld [vmem:[%s578 + $0x8] sm:$0xff]
      %s581 = scalar_lea.vmem %s1, 16
      %v582 = vld [vmem:[%s581] sm:$0xff]
      %v583 = vld [vmem:[%s581 + $0x8] sm:$0xff]
      %vm584 = vcmask 130048
      %v586 = vsel %vm584, %v579, 0
      %v589 = vsel %vm584, %v580, 0
      %591 = vmatprep.subr.mxu0 0.0
      %592 = vmatpush1.msra.mxu0 %v582
      %593 = vmatprep.subr.mxu0 0.0
      %594 = vmatpush1.msra.mxu0 %v583
      %595 = vmatprep.subr.mxu0 0.0
      %596 = vmatpush1.msra.mxu0 0.0
      %597 = vmatprep.subr.mxu0 0.0
      %598 = vmatpush1.msra.mxu0 0.0
      %599 = vmatprep.subr.mxu0 0.0
      %600 = vmatpush1.msra.mxu0 0.0
      %601 = vmatprep.subr.mxu0 0.0
      %602 = vmatpush1.msra.mxu0 0.0
      %603 = vmatprep.subr.mxu0 0.0
      %604 = vmatpush1.msra.mxu0 0.0
      %605 = vmatprep.subr.mxu0 0.0
      %606 = vmatpush1.msra.mxu0 0.0
      %607 = vmatprep.subr.mxu0 0.0
      %608 = vmatpush1.msra.mxu0 0.0
      %609 = vmatprep.subr.mxu0 0.0
      %610 = vmatpush1.msra.mxu0 0.0
      %611 = vmatprep.subr.mxu0 0.0
      %612 = vmatpush1.msra.mxu0 0.0
      %613 = vmatprep.subr.mxu0 0.0
      %614 = vmatpush1.msra.mxu0 0.0
      %615 = vmatprep.subr.mxu0 0.0
      %616 = vmatpush1.msra.mxu0 0.0
      %617 = vmatprep.subr.mxu0 0.0
      %618 = vmatpush1.msra.mxu0 0.0
      %619 = vmatprep.subr.mxu0 0.0
      %620 = vmatpush1.msra.mxu0 0.0
      %621 = vmatprep.subr.mxu0 0.0
      %622 = vmatpush1.msra.mxu0 0.0
      %623 = vmatprep.subr.mxu0 0.0
      %624 = vmatpush1.msra.mxu0 0.0
      %625 = vmatprep.subr.mxu0 0.0
      %626 = vmatpush1.msra.mxu0 0.0
      %627 = vmatprep.subr.mxu0 0.0
      %628 = vmatpush1.msra.mxu0 0.0
      %629 = vmatprep.subr.mxu0 0.0
      %630 = vmatpush1.msra.mxu0 0.0
      %631 = vmatprep.subr.mxu0 0.0
      %632 = vmatpush1.msra.mxu0 0.0
      %633 = vmatprep.subr.mxu0 0.0
      %634 = vmatpush1.msra.mxu0 0.0
      %635 = vmatprep.subr.mxu0 0.0
      %636 = vmatpush1.msra.mxu0 0.0
      %637 = vmatprep.subr.mxu0 0.0
      %638 = vmatpush1.msra.mxu0 0.0
      %639 = vmatprep.subr.mxu0 0.0
      %640 = vmatpush1.msra.mxu0 0.0
      %641 = vmatprep.subr.mxu0 0.0
      %642 = vmatpush1.msra.mxu0 0.0
      %643 = vmatprep.subr.mxu0 0.0
      %644 = vmatpush1.msra.mxu0 0.0
      %645 = vmatprep.subr.mxu0 0.0
      %646 = vmatpush1.msra.mxu0 0.0
      %647 = vmatprep.subr.mxu0 0.0
      %648 = vmatpush1.msra.mxu0 0.0
      %649 = vmatprep.subr.mxu0 0.0
      %650 = vmatpush1.msra.mxu0 0.0
      %651 = vmatprep.subr.mxu0 0.0
      %652 = vmatpush1.msra.mxu0 0.0
      %653 = vmatprep.subr.mxu0 0.0
      %654 = vmatpush1.msra.mxu0 0.0
      %655 = vmatprep.mubr.f32.mxu0 0.0
      %656 = vmatmul.mubr.f32.gmra.mrb[0].mxu0 %v586
      %v657 = vpop.f32.mrb[0].mxu0
      %v658 = vadd.f32 0.0, %v657
      %v659 = vpop.f32.mrb[0].mxu0
      %660 = vmatprep.mubr.f32.mxu0 0.0
      %661 = vmatmul.mubr.f32.gmra.mrb[0].mxu0 %v589
      %v662 = vpop.f32.mrb[0].mxu0
      %v663 = vadd.f32 0.0, %v662
      %v664 = vpop.f32.mrb[0].mxu0
      %665 = vdwg.mxu0
      %v667 = vsel %vm584, %v574, 0
      %v670 = vsel %vm584, %v575, 0
      %672 = vmatprep.subr.mxu0 0.0
      %673 = vmatpush1.msra.mxu0 %v576
      %674 = vmatprep.subr.mxu0 0.0
      %675 = vmatpush1.msra.mxu0 %v577
      %676 = vmatprep.subr.mxu0 0.0
      %677 = vmatpush1.msra.mxu0 0.0
      %678 = vmatprep.subr.mxu0 0.0
      %679 = vmatpush1.msra.mxu0 0.0
      %680 = vmatprep.subr.mxu0 0.0
      %681 = vmatpush1.msra.mxu0 0.0
      %682 = vmatprep.subr.mxu0 0.0
      %683 = vmatpush1.msra.mxu0 0.0
      %684 = vmatprep.subr.mxu0 0.0
      %685 = vmatpush1.msra.mxu0 0.0
      %686 = vmatprep.subr.mxu0 0.0
      %687 = vmatpush1.msra.mxu0 0.0
      %688 = vmatprep.subr.mxu0 0.0
      %689 = vmatpush1.msra.mxu0 0.0
      %690 = vmatprep.subr.mxu0 0.0
      %691 = vmatpush1.msra.mxu0 0.0
      %692 = vmatprep.subr.mxu0 0.0
      %693 = vmatpush1.msra.mxu0 0.0
      %694 = vmatprep.subr.mxu0 0.0
      %695 = vmatpush1.msra.mxu0 0.0
      %696 = vmatprep.subr.mxu0 0.0
      %697 = vmatpush1.msra.mxu0 0.0
      %698 = vmatprep.subr.mxu0 0.0
      %699 = vmatpush1.msra.mxu0 0.0
      %700 = vmatprep.subr.mxu0 0.0
      %701 = vmatpush1.msra.mxu0 0.0
      %702 = vmatprep.subr.mxu0 0.0
      %703 = vmatpush1.msra.mxu0 0.0
      %704 = vmatprep.subr.mxu0 0.0
      %705 = vmatpush1.msra.mxu0 0.0
      %706 = vmatprep.subr.mxu0 0.0
      %707 = vmatpush1.msra.mxu0 0.0
      %708 = vmatprep.subr.mxu0 0.0
      %709 = vmatpush1.msra.mxu0 0.0
      %710 = vmatprep.subr.mxu0 0.0
      %711 = vmatpush1.msra.mxu0 0.0
      %712 = vmatprep.subr.mxu0 0.0
      %713 = vmatpush1.msra.mxu0 0.0
      %714 = vmatprep.subr.mxu0 0.0
      %715 = vmatpush1.msra.mxu0 0.0
      %716 = vmatprep.subr.mxu0 0.0
      %717 = vmatpush1.msra.mxu0 0.0
      %718 = vmatprep.subr.mxu0 0.0
      %719 = vmatpush1.msra.mxu0 0.0
      %720 = vmatprep.subr.mxu0 0.0
      %721 = vmatpush1.msra.mxu0 0.0
      %722 = vmatprep.subr.mxu0 0.0
      %723 = vmatpush1.msra.mxu0 0.0
      %724 = vmatprep.subr.mxu0 0.0
      %725 = vmatpush1.msra.mxu0 0.0
      %726 = vmatprep.subr.mxu0 0.0
      %727 = vmatpush1.msra.mxu0 0.0
      %728 = vmatprep.subr.mxu0 0.0
      %729 = vmatpush1.msra.mxu0 0.0
      %730 = vmatprep.subr.mxu0 0.0
      %731 = vmatpush1.msra.mxu0 0.0
      %732 = vmatprep.subr.mxu0 0.0
      %733 = vmatpush1.msra.mxu0 0.0
      %734 = vmatprep.subr.mxu0 0.0
      %735 = vmatpush1.msra.mxu0 0.0
      %736 = vmatprep.mubr.f32.mxu0 0.0
      %737 = vmatmul.mubr.f32.gmra.mrb[0].mxu0 %v667
      %v738 = vpop.f32.mrb[0].mxu0
      %v739 = vadd.f32 %v658, %v738
      %v740 = vpop.f32.mrb[0].mxu0
      %741 = vmatprep.mubr.f32.mxu0 0.0
      %742 = vmatmul.mubr.f32.gmra.mrb[0].mxu0 %v670
      %v743 = vpop.f32.mrb[0].mxu0
      %v744 = vadd.f32 %v663, %v743
      %v745 = vpop.f32.mrb[0].mxu0
      %746 = vdwg.mxu0
      %s747 = scalar_lea.vmem %s569, 32
      %v748 = vld [vmem:[%s747] sm:$0xff]
      %v749 = vld [vmem:[%s747 + $0x8] sm:$0xff]
      %s750 = scalar_lea.vmem %s1, 32
      %v751 = vld [vmem:[%s750] sm:$0xff]
      %v752 = vld [vmem:[%s750 + $0x8] sm:$0xff]
      %v754 = vsel %vm584, %v748, 0
      %v757 = vsel %vm584, %v749, 0
      %759 = vmatprep.subr.mxu0 0.0
      %760 = vmatpush1.msra.mxu0 %v751
      %761 = vmatprep.subr.mxu0 0.0
      %762 = vmatpush1.msra.mxu0 %v752
      %763 = vmatprep.subr.mxu0 0.0
      %764 = vmatpush1.msra.mxu0 0.0
      %765 = vmatprep.subr.mxu0 0.0
      %766 = vmatpush1.msra.mxu0 0.0
      %767 = vmatprep.subr.mxu0 0.0
      %768 = vmatpush1.msra.mxu0 0.0
      %769 = vmatprep.subr.mxu0 0.0
      %770 = vmatpush1.msra.mxu0 0.0
      %771 = vmatprep.subr.mxu0 0.0
      %772 = vmatpush1.msra.mxu0 0.0
      %773 = vmatprep.subr.mxu0 0.0
      %774 = vmatpush1.msra.mxu0 0.0
      %775 = vmatprep.subr.mxu0 0.0
      %776 = vmatpush1.msra.mxu0 0.0
      %777 = vmatprep.subr.mxu0 0.0
      %778 = vmatpush1.msra.mxu0 0.0
      %779 = vmatprep.subr.mxu0 0.0
      %780 = vmatpush1.msra.mxu0 0.0
      %781 = vmatprep.subr.mxu0 0.0
      %782 = vmatpush1.msra.mxu0 0.0
      %783 = vmatprep.subr.mxu0 0.0
      %784 = vmatpush1.msra.mxu0 0.0
      %785 = vmatprep.subr.mxu0 0.0
      %786 = vmatpush1.msra.mxu0 0.0
      %787 = vmatprep.subr.mxu0 0.0
      %788 = vmatpush1.msra.mxu0 0.0
      %789 = vmatprep.subr.mxu0 0.0
      %790 = vmatpush1.msra.mxu0 0.0
      %791 = vmatprep.subr.mxu0 0.0
      %792 = vmatpush1.msra.mxu0 0.0
      %793 = vmatprep.subr.mxu0 0.0
      %794 = vmatpush1.msra.mxu0 0.0
      %795 = vmatprep.subr.mxu0 0.0
      %796 = vmatpush1.msra.mxu0 0.0
      %797 = vmatprep.subr.mxu0 0.0
      %798 = vmatpush1.msra.mxu0 0.0
      %799 = vmatprep.subr.mxu0 0.0
      %800 = vmatpush1.msra.mxu0 0.0
      %801 = vmatprep.subr.mxu0 0.0
      %802 = vmatpush1.msra.mxu0 0.0
      %803 = vmatprep.subr.mxu0 0.0
      %804 = vmatpush1.msra.mxu0 0.0
      %805 = vmatprep.subr.mxu0 0.0
      %806 = vmatpush1.msra.mxu0 0.0
      %807 = vmatprep.subr.mxu0 0.0
      %808 = vmatpush1.msra.mxu0 0.0
      %809 = vmatprep.subr.mxu0 0.0
      %810 = vmatpush1.msra.mxu0 0.0
      %811 = vmatprep.subr.mxu0 0.0
      %812 = vmatpush1.msra.mxu0 0.0
      %813 = vmatprep.subr.mxu0 0.0
      %814 = vmatpush1.msra.mxu0 0.0
      %815 = vmatprep.subr.mxu0 0.0
      %816 = vmatpush1.msra.mxu0 0.0
      %817 = vmatprep.subr.mxu0 0.0
      %818 = vmatpush1.msra.mxu0 0.0
      %819 = vmatprep.subr.mxu0 0.0
      %820 = vmatpush1.msra.mxu0 0.0
      %821 = vmatprep.subr.mxu0 0.0
      %822 = vmatpush1.msra.mxu0 0.0
      %823 = vmatprep.mubr.f32.mxu0 0.0
      %824 = vmatmul.mubr.f32.gmra.mrb[0].mxu0 %v754
      %v825 = vpop.f32.mrb[0].mxu0
      %v826 = vadd.f32 0.0, %v825
      %v827 = vpop.f32.mrb[0].mxu0
      %828 = vmatprep.mubr.f32.mxu0 0.0
      %829 = vmatmul.mubr.f32.gmra.mrb[0].mxu0 %v757
      %v830 = vpop.f32.mrb[0].mxu0
      %v831 = vadd.f32 0.0, %v830
      %v832 = vpop.f32.mrb[0].mxu0
      %833 = vdwg.mxu0
      %v834 = vadd.f32 %v739, %v826
      %v835 = vadd.f32 %v744, %v831
      %s836 = scalar_lea.vmem %s569, 48
      %v837 = vld [vmem:[%s836] sm:$0xff]
      %v838 = vld [vmem:[%s836 + $0x8] sm:$0xff]
      %s839 = scalar_lea.vmem %s1, 48
      %v840 = vld [vmem:[%s839] sm:$0xff]
      %v841 = vld [vmem:[%s839 + $0x8] sm:$0xff]
      %v843 = vsel %vm584, %v837, 0
      %v846 = vsel %vm584, %v838, 0
      %848 = vmatprep.subr.mxu0 0.0
      %849 = vmatpush1.msra.mxu0 %v840
      %850 = vmatprep.subr.mxu0 0.0
      %851 = vmatpush1.msra.mxu0 %v841
      %852 = vmatprep.subr.mxu0 0.0
      %853 = vmatpush1.msra.mxu0 0.0
      %854 = vmatprep.subr.mxu0 0.0
      %855 = vmatpush1.msra.mxu0 0.0
      %856 = vmatprep.subr.mxu0 0.0
      %857 = vmatpush1.msra.mxu0 0.0
      %858 = vmatprep.subr.mxu0 0.0
      %859 = vmatpush1.msra.mxu0 0.0
      %860 = vmatprep.subr.mxu0 0.0
      %861 = vmatpush1.msra.mxu0 0.0
      %862 = vmatprep.subr.mxu0 0.0
      %863 = vmatpush1.msra.mxu0 0.0
      %864 = vmatprep.subr.mxu0 0.0
      %865 = vmatpush1.msra.mxu0 0.0
      %866 = vmatprep.subr.mxu0 0.0
      %867 = vmatpush1.msra.mxu0 0.0
      %868 = vmatprep.subr.mxu0 0.0
      %869 = vmatpush1.msra.mxu0 0.0
      %870 = vmatprep.subr.mxu0 0.0
      %871 = vmatpush1.msra.mxu0 0.0
      %872 = vmatprep.subr.mxu0 0.0
      %873 = vmatpush1.msra.mxu0 0.0
      %874 = vmatprep.subr.mxu0 0.0
      %875 = vmatpush1.msra.mxu0 0.0
      %876 = vmatprep.subr.mxu0 0.0
      %877 = vmatpush1.msra.mxu0 0.0
      %878 = vmatprep.subr.mxu0 0.0
      %879 = vmatpush1.msra.mxu0 0.0
      %880 = vmatprep.subr.mxu0 0.0
      %881 = vmatpush1.msra.mxu0 0.0
      %882 = vmatprep.subr.mxu0 0.0
      %883 = vmatpush1.msra.mxu0 0.0
      %884 = vmatprep.subr.mxu0 0.0
      %885 = vmatpush1.msra.mxu0 0.0
      %886 = vmatprep.subr.mxu0 0.0
      %887 = vmatpush1.msra.mxu0 0.0
      %888 = vmatprep.subr.mxu0 0.0
      %889 = vmatpush1.msra.mxu0 0.0
      %890 = vmatprep.subr.mxu0 0.0
      %891 = vmatpush1.msra.mxu0 0.0
      %892 = vmatprep.subr.mxu0 0.0
      %893 = vmatpush1.msra.mxu0 0.0
      %894 = vmatprep.subr.mxu0 0.0
      %895 = vmatpush1.msra.mxu0 0.0
      %896 = vmatprep.subr.mxu0 0.0
      %897 = vmatpush1.msra.mxu0 0.0
      %898 = vmatprep.subr.mxu0 0.0
      %899 = vmatpush1.msra.mxu0 0.0
      %900 = vmatprep.subr.mxu0 0.0
      %901 = vmatpush1.msra.mxu0 0.0
      %902 = vmatprep.subr.mxu0 0.0
      %903 = vmatpush1.msra.mxu0 0.0
      %904 = vmatprep.subr.mxu0 0.0
      %905 = vmatpush1.msra.mxu0 0.0
      %906 = vmatprep.subr.mxu0 0.0
      %907 = vmatpush1.msra.mxu0 0.0
      %908 = vmatprep.subr.mxu0 0.0
      %909 = vmatpush1.msra.mxu0 0.0
      %910 = vmatprep.subr.mxu0 0.0
      %911 = vmatpush1.msra.mxu0 0.0
      %912 = vmatprep.mubr.f32.mxu0 0.0
      %913 = vmatmul.mubr.f32.gmra.mrb[0].mxu0 %v843
      %v914 = vpop.f32.mrb[0].mxu0
      %v915 = vadd.f32 0.0, %v914
      %v916 = vpop.f32.mrb[0].mxu0
      %917 = vmatprep.mubr.f32.mxu0 0.0
      %918 = vmatmul.mubr.f32.gmra.mrb[0].mxu0 %v846
      %v919 = vpop.f32.mrb[0].mxu0
      %v920 = vadd.f32 0.0, %v919
      %v921 = vpop.f32.mrb[0].mxu0
      %922 = vdwg.mxu0
      %v923 = vadd.f32 %v834, %v915
      %v924 = vadd.f32 %v835, %v920
      %s925 = scalar_lea.vmem %s3, 128
      %v926 = vld [vmem:[%s925] sm:$0xff]
      %v927 = vld [vmem:[%s925 + $0x8] sm:$0xff]
      %v928 = vld [vmem:[%s925 + $0x10] sm:$0xff]
      %v929 = vld [vmem:[%s925 + $0x18] sm:$0xff]
      %v930 = vld [vmem:[%s925 + $0x20] sm:$0xff]
      %v931 = vld [vmem:[%s925 + $0x28] sm:$0xff]
      %v932 = vld [vmem:[%s925 + $0x30] sm:$0xff]
      %v933 = vld [vmem:[%s925 + $0x38] sm:$0xff]
      %v934 = vld [vmem:[%s925 + $0x40] sm:$0xff]
      %v935 = vld [vmem:[%s925 + $0x48] sm:$0xff]
      %v936 = vld [vmem:[%s925 + $0x50] sm:$0xff]
      %v937 = vld [vmem:[%s925 + $0x58] sm:$0xff]
      %v938 = vld [vmem:[%s925 + $0x60] sm:$0xff]
      %v939 = vld [vmem:[%s925 + $0x68] sm:$0xff]
      %v940 = vld [vmem:[%s925 + $0x70] sm:$0xff]
      %v941 = vld [vmem:[%s925 + $0x78] sm:$0xff]
      %v942 = vld [vmem:[%s2] sm:$0xff]
      %v943 = vld [vmem:[%s2 + $0x8] sm:$0xff]
      %v945 = vsel %vm584, %v942, 0
      %v948 = vsel %vm584, %v943, 0
      %950 = vmatprep.subr.mxu0 0.0
      %951 = vmatpush1.msra.mxu0 %v923
      %952 = vmatprep.subr.mxu0 0.0
      %953 = vmatpush1.msra.mxu0 %v924
      %954 = vmatprep.subr.mxu0 0.0
      %955 = vmatpush1.msra.mxu0 0.0
      %956 = vmatprep.subr.mxu0 0.0
      %957 = vmatpush1.msra.mxu0 0.0
      %958 = vmatprep.subr.mxu0 0.0
      %959 = vmatpush1.msra.mxu0 0.0
      %960 = vmatprep.subr.mxu0 0.0
      %961 = vmatpush1.msra.mxu0 0.0
      %962 = vmatprep.subr.mxu0 0.0
      %963 = vmatpush1.msra.mxu0 0.0
      %964 = vmatprep.subr.mxu0 0.0
      %965 = vmatpush1.msra.mxu0 0.0
      %966 = vmatprep.subr.mxu0 0.0
      %967 = vmatpush1.msra.mxu0 0.0
      %968 = vmatprep.subr.mxu0 0.0
      %969 = vmatpush1.msra.mxu0 0.0
      %970 = vmatprep.subr.mxu0 0.0
      %971 = vmatpush1.msra.mxu0 0.0
      %972 = vmatprep.subr.mxu0 0.0
      %973 = vmatpush1.msra.mxu0 0.0
      %974 = vmatprep.subr.mxu0 0.0
      %975 = vmatpush1.msra.mxu0 0.0
      %976 = vmatprep.subr.mxu0 0.0
      %977 = vmatpush1.msra.mxu0 0.0
      %978 = vmatprep.subr.mxu0 0.0
      %979 = vmatpush1.msra.mxu0 0.0
      %980 = vmatprep.subr.mxu0 0.0
      %981 = vmatpush1.msra.mxu0 0.0
      %982 = vmatprep.subr.mxu0 0.0
      %983 = vmatpush1.msra.mxu0 0.0
      %984 = vmatprep.subr.mxu0 0.0
      %985 = vmatpush1.msra.mxu0 0.0
      %986 = vmatprep.subr.mxu0 0.0
      %987 = vmatpush1.msra.mxu0 0.0
      %988 = vmatprep.subr.mxu0 0.0
      %989 = vmatpush1.msra.mxu0 0.0
      %990 = vmatprep.subr.mxu0 0.0
      %991 = vmatpush1.msra.mxu0 0.0
      %992 = vmatprep.subr.mxu0 0.0
      %993 = vmatpush1.msra.mxu0 0.0
      %994 = vmatprep.subr.mxu0 0.0
      %995 = vmatpush1.msra.mxu0 0.0
      %996 = vmatprep.subr.mxu0 0.0
      %997 = vmatpush1.msra.mxu0 0.0
      %998 = vmatprep.subr.mxu0 0.0
      %999 = vmatpush1.msra.mxu0 0.0
      %1000 = vmatprep.subr.mxu0 0.0
      %1001 = vmatpush1.msra.mxu0 0.0
      %1002 = vmatprep.subr.mxu0 0.0
      %1003 = vmatpush1.msra.mxu0 0.0
      %1004 = vmatprep.subr.mxu0 0.0
      %1005 = vmatpush1.msra.mxu0 0.0
      %1006 = vmatprep.subr.mxu0 0.0
      %1007 = vmatpush1.msra.mxu0 0.0
      %1008 = vmatprep.subr.mxu0 0.0
      %1009 = vmatpush1.msra.mxu0 0.0
      %1010 = vmatprep.subr.mxu0 0.0
      %1011 = vmatpush1.msra.mxu0 0.0
      %1012 = vmatprep.subr.mxu0 0.0
      %1013 = vmatpush1.msra.mxu0 0.0
      %1014 = vmatprep.mubr.f32.mxu0 0.0
      %1015 = vmatmul.mubr.f32.gmra.mrb[0].mxu0 %v945
      %v1016 = vpop.f32.mrb[0].mxu0
      %v1017 = vadd.f32 0.0, %v1016
      %v1018 = vpop.f32.mrb[0].mxu0
      %1019 = vmatprep.mubr.f32.mxu0 0.0
      %1020 = vmatmul.mubr.f32.gmra.mrb[0].mxu0 %v948
      %v1021 = vpop.f32.mrb[0].mxu0
      %v1022 = vadd.f32 0.0, %v1021
      %v1023 = vpop.f32.mrb[0].mxu0
      %1024 = vdwg.mxu0
      %v1025 = vld [vmem:[%s3] sm:$0xff]
      %v1026 = vld [vmem:[%s3 + $0x8] sm:$0xff]
      %v1027 = vld [vmem:[%s3 + $0x10] sm:$0xff]
      %v1028 = vld [vmem:[%s3 + $0x18] sm:$0xff]
      %v1029 = vld [vmem:[%s3 + $0x20] sm:$0xff]
      %v1030 = vld [vmem:[%s3 + $0x28] sm:$0xff]
      %v1031 = vld [vmem:[%s3 + $0x30] sm:$0xff]
      %v1032 = vld [vmem:[%s3 + $0x38] sm:$0xff]
      %v1033 = vld [vmem:[%s3 + $0x40] sm:$0xff]
      %v1034 = vld [vmem:[%s3 + $0x48] sm:$0xff]
      %v1035 = vld [vmem:[%s3 + $0x50] sm:$0xff]
      %v1036 = vld [vmem:[%s3 + $0x58] sm:$0xff]
      %v1037 = vld [vmem:[%s3 + $0x60] sm:$0xff]
      %v1038 = vld [vmem:[%s3 + $0x68] sm:$0xff]
      %v1039 = vld [vmem:[%s3 + $0x70] sm:$0xff]
      %v1040 = vld [vmem:[%s3 + $0x78] sm:$0xff]
      %vm1041 = vcmask 523264
      %v1043 = vsel %vm1041, %v1017, 0
      %v1046 = vsel %vm1041, %v1022, 0
      %1048 = vmatprep.subr.mxu0 %v1026
      %1049 = vmatpush1.msra.mxu0 %v1025
      %1050 = vmatprep.subr.mxu0 %v1028
      %1051 = vmatpush1.msra.mxu0 %v1027
      %1052 = vmatprep.subr.mxu0 %v1030
      %1053 = vmatpush1.msra.mxu0 %v1029
      %1054 = vmatprep.subr.mxu0 %v1032
      %1055 = vmatpush1.msra.mxu0 %v1031
      %1056 = vmatprep.subr.mxu0 %v1034
      %1057 = vmatpush1.msra.mxu0 %v1033
      %1058 = vmatprep.subr.mxu0 %v1036
      %1059 = vmatpush1.msra.mxu0 %v1035
      %1060 = vmatprep.subr.mxu0 %v1038
      %1061 = vmatpush1.msra.mxu0 %v1037
      %1062 = vmatprep.subr.mxu0 %v1040
      %1063 = vmatpush1.msra.mxu0 %v1039
      %1064 = vmatprep.subr.mxu0 0.0
      %1065 = vmatpush1.msra.mxu0 0.0
      %1066 = vmatprep.subr.mxu0 0.0
      %1067 = vmatpush1.msra.mxu0 0.0
      %1068 = vmatprep.subr.mxu0 0.0
      %1069 = vmatpush1.msra.mxu0 0.0
      %1070 = vmatprep.subr.mxu0 0.0
      %1071 = vmatpush1.msra.mxu0 0.0
      %1072 = vmatprep.subr.mxu0 0.0
      %1073 = vmatpush1.msra.mxu0 0.0
      %1074 = vmatprep.subr.mxu0 0.0
      %1075 = vmatpush1.msra.mxu0 0.0
      %1076 = vmatprep.subr.mxu0 0.0
      %1077 = vmatpush1.msra.mxu0 0.0
      %1078 = vmatprep.subr.mxu0 0.0
      %1079 = vmatpush1.msra.mxu0 0.0
      %1080 = vmatprep.subr.mxu0 0.0
      %1081 = vmatpush1.msra.mxu0 0.0
      %1082 = vmatprep.subr.mxu0 0.0
      %1083 = vmatpush1.msra.mxu0 0.0
      %1084 = vmatprep.subr.mxu0 0.0
      %1085 = vmatpush1.msra.mxu0 0.0
      %1086 = vmatprep.subr.mxu0 0.0
      %1087 = vmatpush1.msra.mxu0 0.0
      %1088 = vmatprep.subr.mxu0 0.0
      %1089 = vmatpush1.msra.mxu0 0.0
      %1090 = vmatprep.subr.mxu0 0.0
      %1091 = vmatpush1.msra.mxu0 0.0
      %1092 = vmatprep.subr.mxu0 0.0
      %1093 = vmatpush1.msra.mxu0 0.0
      %1094 = vmatprep.subr.mxu0 0.0
      %1095 = vmatpush1.msra.mxu0 0.0
      %1096 = vmatprep.subr.mxu0 0.0
      %1097 = vmatpush1.msra.mxu0 0.0
      %1098 = vmatprep.subr.mxu0 0.0
      %1099 = vmatpush1.msra.mxu0 0.0
      %1100 = vmatprep.subr.mxu0 0.0
      %1101 = vmatpush1.msra.mxu0 0.0
      %1102 = vmatprep.subr.mxu0 0.0
      %1103 = vmatpush1.msra.mxu0 0.0
      %1104 = vmatprep.subr.mxu0 0.0
      %1105 = vmatpush1.msra.mxu0 0.0
      %1106 = vmatprep.subr.mxu0 0.0
      %1107 = vmatpush1.msra.mxu0 0.0
      %1108 = vmatprep.subr.mxu0 0.0
      %1109 = vmatpush1.msra.mxu0 0.0
      %1110 = vmatprep.subr.mxu0 0.0
      %1111 = vmatpush1.msra.mxu0 0.0
      %1112 = vmatprep.mubr.f32.mxu0 0.0
      %1113 = vmatmul.mubr.f32.gmra.mrb[0].mxu0 %v1043
      %v1114 = vpop.f32.mrb[0].mxu0
      %v1115 = vadd.f32 0.0, %v1114
      %v1116 = vpop.f32.mrb[0].mxu0
      %v1117 = vadd.f32 0.0, %v1116
      %1118 = vmatprep.mubr.f32.mxu0 0.0
      %1119 = vmatmul.mubr.f32.gmra.mrb[0].mxu0 %v1046
      %v1120 = vpop.f32.mrb[0].mxu0
      %v1121 = vadd.f32 0.0, %v1120
      %v1122 = vpop.f32.mrb[0].mxu0
      %v1123 = vadd.f32 0.0, %v1122
      %1124 = vdwg.mxu0
      %v1126 = vsel %vm1041, %v923, 0
      %v1129 = vsel %vm1041, %v924, 0
      %1131 = vmatprep.subr.mxu0 %v927
      %1132 = vmatpush1.msra.mxu0 %v926
      %1133 = vmatprep.subr.mxu0 %v929
      %1134 = vmatpush1.msra.mxu0 %v928
      %1135 = vmatprep.subr.mxu0 %v931
      %1136 = vmatpush1.msra.mxu0 %v930
      %1137 = vmatprep.subr.mxu0 %v933
      %1138 = vmatpush1.msra.mxu0 %v932
      %1139 = vmatprep.subr.mxu0 %v935
      %1140 = vmatpush1.msra.mxu0 %v934
      %1141 = vmatprep.subr.mxu0 %v937
      %1142 = vmatpush1.msra.mxu0 %v936
      %1143 = vmatprep.subr.mxu0 %v939
      %1144 = vmatpush1.msra.mxu0 %v938
      %1145 = vmatprep.subr.mxu0 %v941
      %1146 = vmatpush1.msra.mxu0 %v940
      %1147 = vmatprep.subr.mxu0 0.0
      %1148 = vmatpush1.msra.mxu0 0.0
      %1149 = vmatprep.subr.mxu0 0.0
      %1150 = vmatpush1.msra.mxu0 0.0
      %1151 = vmatprep.subr.mxu0 0.0
      %1152 = vmatpush1.msra.mxu0 0.0
      %1153 = vmatprep.subr.mxu0 0.0
      %1154 = vmatpush1.msra.mxu0 0.0
      %1155 = vmatprep.subr.mxu0 0.0
      %1156 = vmatpush1.msra.mxu0 0.0
      %1157 = vmatprep.subr.mxu0 0.0
      %1158 = vmatpush1.msra.mxu0 0.0
      %1159 = vmatprep.subr.mxu0 0.0
      %1160 = vmatpush1.msra.mxu0 0.0
      %1161 = vmatprep.subr.mxu0 0.0
      %1162 = vmatpush1.msra.mxu0 0.0
      %1163 = vmatprep.subr.mxu0 0.0
      %1164 = vmatpush1.msra.mxu0 0.0
      %1165 = vmatprep.subr.mxu0 0.0
      %1166 = vmatpush1.msra.mxu0 0.0
      %1167 = vmatprep.subr.mxu0 0.0
      %1168 = vmatpush1.msra.mxu0 0.0
      %1169 = vmatprep.subr.mxu0 0.0
      %1170 = vmatpush1.msra.mxu0 0.0
      %1171 = vmatprep.subr.mxu0 0.0
      %1172 = vmatpush1.msra.mxu0 0.0
      %1173 = vmatprep.subr.mxu0 0.0
      %1174 = vmatpush1.msra.mxu0 0.0
      %1175 = vmatprep.subr.mxu0 0.0
      %1176 = vmatpush1.msra.mxu0 0.0
      %1177 = vmatprep.subr.mxu0 0.0
      %1178 = vmatpush1.msra.mxu0 0.0
      %1179 = vmatprep.subr.mxu0 0.0
      %1180 = vmatpush1.msra.mxu0 0.0
      %1181 = vmatprep.subr.mxu0 0.0
      %1182 = vmatpush1.msra.mxu0 0.0
      %1183 = vmatprep.subr.mxu0 0.0
      %1184 = vmatpush1.msra.mxu0 0.0
      %1185 = vmatprep.subr.mxu0 0.0
      %1186 = vmatpush1.msra.mxu0 0.0
      %1187 = vmatprep.subr.mxu0 0.0
      %1188 = vmatpush1.msra.mxu0 0.0
      %1189 = vmatprep.subr.mxu0 0.0
      %1190 = vmatpush1.msra.mxu0 0.0
      %1191 = vmatprep.subr.mxu0 0.0
      %1192 = vmatpush1.msra.mxu0 0.0
      %1193 = vmatprep.subr.mxu0 0.0
      %1194 = vmatpush1.msra.mxu0 0.0
      %1195 = vmatprep.mubr.f32.mxu0 0.0
      %1196 = vmatmul.mubr.f32.gmra.mrb[0].mxu0 %v1126
      %v1197 = vpop.f32.mrb[0].mxu0
      %v1198 = vadd.f32 %v1115, %v1197
      %v1199 = vpop.f32.mrb[0].mxu0
      %v1200 = vadd.f32 %v1117, %v1199
      %1201 = vmatprep.mubr.f32.mxu0 0.0
      %1202 = vmatmul.mubr.f32.gmra.mrb[0].mxu0 %v1129
      %v1203 = vpop.f32.mrb[0].mxu0
      %v1204 = vadd.f32 %v1121, %v1203
      %v1205 = vpop.f32.mrb[0].mxu0
      %v1206 = vadd.f32 %v1123, %v1205
      %1207 = vdwg.mxu0
      %s1208 = scalar_lea.vmem %s2, 16
      %v1209 = vld [vmem:[%s1208] sm:$0xff]
      %v1210 = vld [vmem:[%s1208 + $0x8] sm:$0xff]
      %v1212 = vsel %vm584, %v1209, 0
      %v1215 = vsel %vm584, %v1210, 0
      %1217 = vmatprep.subr.mxu0 0.0
      %1218 = vmatpush1.msra.mxu0 %v923
      %1219 = vmatprep.subr.mxu0 0.0
      %1220 = vmatpush1.msra.mxu0 %v924
      %1221 = vmatprep.subr.mxu0 0.0
      %1222 = vmatpush1.msra.mxu0 0.0
      %1223 = vmatprep.subr.mxu0 0.0
      %1224 = vmatpush1.msra.mxu0 0.0
      %1225 = vmatprep.subr.mxu0 0.0
      %1226 = vmatpush1.msra.mxu0 0.0
      %1227 = vmatprep.subr.mxu0 0.0
      %1228 = vmatpush1.msra.mxu0 0.0
      %1229 = vmatprep.subr.mxu0 0.0
      %1230 = vmatpush1.msra.mxu0 0.0
      %1231 = vmatprep.subr.mxu0 0.0
      %1232 = vmatpush1.msra.mxu0 0.0
      %1233 = vmatprep.subr.mxu0 0.0
      %1234 = vmatpush1.msra.mxu0 0.0
      %1235 = vmatprep.subr.mxu0 0.0
      %1236 = vmatpush1.msra.mxu0 0.0
      %1237 = vmatprep.subr.mxu0 0.0
      %1238 = vmatpush1.msra.mxu0 0.0
      %1239 = vmatprep.subr.mxu0 0.0
      %1240 = vmatpush1.msra.mxu0 0.0
      %1241 = vmatprep.subr.mxu0 0.0
      %1242 = vmatpush1.msra.mxu0 0.0
      %1243 = vmatprep.subr.mxu0 0.0
      %1244 = vmatpush1.msra.mxu0 0.0
      %1245 = vmatprep.subr.mxu0 0.0
      %1246 = vmatpush1.msra.mxu0 0.0
      %1247 = vmatprep.subr.mxu0 0.0
      %1248 = vmatpush1.msra.mxu0 0.0
      %1249 = vmatprep.subr.mxu0 0.0
      %1250 = vmatpush1.msra.mxu0 0.0
      %1251 = vmatprep.subr.mxu0 0.0
      %1252 = vmatpush1.msra.mxu0 0.0
      %1253 = vmatprep.subr.mxu0 0.0
      %1254 = vmatpush1.msra.mxu0 0.0
      %1255 = vmatprep.subr.mxu0 0.0
      %1256 = vmatpush1.msra.mxu0 0.0
      %1257 = vmatprep.subr.mxu0 0.0
      %1258 = vmatpush1.msra.mxu0 0.0
      %1259 = vmatprep.subr.mxu0 0.0
      %1260 = vmatpush1.msra.mxu0 0.0
      %1261 = vmatprep.subr.mxu0 0.0
      %1262 = vmatpush1.msra.mxu0 0.0
      %1263 = vmatprep.subr.mxu0 0.0
      %1264 = vmatpush1.msra.mxu0 0.0
      %1265 = vmatprep.subr.mxu0 0.0
      %1266 = vmatpush1.msra.mxu0 0.0
      %1267 = vmatprep.subr.mxu0 0.0
      %1268 = vmatpush1.msra.mxu0 0.0
      %1269 = vmatprep.subr.mxu0 0.0
      %1270 = vmatpush1.msra.mxu0 0.0
      %1271 = vmatprep.subr.mxu0 0.0
      %1272 = vmatpush1.msra.mxu0 0.0
      %1273 = vmatprep.subr.mxu0 0.0
      %1274 = vmatpush1.msra.mxu0 0.0
      %1275 = vmatprep.subr.mxu0 0.0
      %1276 = vmatpush1.msra.mxu0 0.0
      %1277 = vmatprep.subr.mxu0 0.0
      %1278 = vmatpush1.msra.mxu0 0.0
      %1279 = vmatprep.subr.mxu0 0.0
      %1280 = vmatpush1.msra.mxu0 0.0
      %1281 = vmatprep.mubr.f32.mxu0 0.0
      %1282 = vmatmul.mubr.f32.gmra.mrb[0].mxu0 %v1212
      %v1283 = vpop.f32.mrb[0].mxu0
      %v1284 = vadd.f32 0.0, %v1283
      %v1285 = vpop.f32.mrb[0].mxu0
      %1286 = vmatprep.mubr.f32.mxu0 0.0
      %1287 = vmatmul.mubr.f32.gmra.mrb[0].mxu0 %v1215
      %v1288 = vpop.f32.mrb[0].mxu0
      %v1289 = vadd.f32 0.0, %v1288
      %v1290 = vpop.f32.mrb[0].mxu0
      %1291 = vdwg.mxu0
      %s1292 = scalar_lea.vmem %s3, 256
      %v1293 = vld [vmem:[%s1292] sm:$0xff]
      %v1294 = vld [vmem:[%s1292 + $0x8] sm:$0xff]
      %v1295 = vld [vmem:[%s1292 + $0x10] sm:$0xff]
      %v1296 = vld [vmem:[%s1292 + $0x18] sm:$0xff]
      %v1297 = vld [vmem:[%s1292 + $0x20] sm:$0xff]
      %v1298 = vld [vmem:[%s1292 + $0x28] sm:$0xff]
      %v1299 = vld [vmem:[%s1292 + $0x30] sm:$0xff]
      %v1300 = vld [vmem:[%s1292 + $0x38] sm:$0xff]
      %v1301 = vld [vmem:[%s1292 + $0x40] sm:$0xff]
      %v1302 = vld [vmem:[%s1292 + $0x48] sm:$0xff]
      %v1303 = vld [vmem:[%s1292 + $0x50] sm:$0xff]
      %v1304 = vld [vmem:[%s1292 + $0x58] sm:$0xff]
      %v1305 = vld [vmem:[%s1292 + $0x60] sm:$0xff]
      %v1306 = vld [vmem:[%s1292 + $0x68] sm:$0xff]
      %v1307 = vld [vmem:[%s1292 + $0x70] sm:$0xff]
      %v1308 = vld [vmem:[%s1292 + $0x78] sm:$0xff]
      %v1310 = vsel %vm1041, %v1284, 0
      %v1313 = vsel %vm1041, %v1289, 0
      %1315 = vmatprep.subr.mxu0 %v1294
      %1316 = vmatpush1.msra.mxu0 %v1293
      %1317 = vmatprep.subr.mxu0 %v1296
      %1318 = vmatpush1.msra.mxu0 %v1295
      %1319 = vmatprep.subr.mxu0 %v1298
      %1320 = vmatpush1.msra.mxu0 %v1297
      %1321 = vmatprep.subr.mxu0 %v1300
      %1322 = vmatpush1.msra.mxu0 %v1299
      %1323 = vmatprep.subr.mxu0 %v1302
      %1324 = vmatpush1.msra.mxu0 %v1301
      %1325 = vmatprep.subr.mxu0 %v1304
      %1326 = vmatpush1.msra.mxu0 %v1303
      %1327 = vmatprep.subr.mxu0 %v1306
      %1328 = vmatpush1.msra.mxu0 %v1305
      %1329 = vmatprep.subr.mxu0 %v1308
      %1330 = vmatpush1.msra.mxu0 %v1307
      %1331 = vmatprep.subr.mxu0 0.0
      %1332 = vmatpush1.msra.mxu0 0.0
      %1333 = vmatprep.subr.mxu0 0.0
      %1334 = vmatpush1.msra.mxu0 0.0
      %1335 = vmatprep.subr.mxu0 0.0
      %1336 = vmatpush1.msra.mxu0 0.0
      %1337 = vmatprep.subr.mxu0 0.0
      %1338 = vmatpush1.msra.mxu0 0.0
      %1339 = vmatprep.subr.mxu0 0.0
      %1340 = vmatpush1.msra.mxu0 0.0
      %1341 = vmatprep.subr.mxu0 0.0
      %1342 = vmatpush1.msra.mxu0 0.0
      %1343 = vmatprep.subr.mxu0 0.0
      %1344 = vmatpush1.msra.mxu0 0.0
      %1345 = vmatprep.subr.mxu0 0.0
      %1346 = vmatpush1.msra.mxu0 0.0
      %1347 = vmatprep.subr.mxu0 0.0
      %1348 = vmatpush1.msra.mxu0 0.0
      %1349 = vmatprep.subr.mxu0 0.0
      %1350 = vmatpush1.msra.mxu0 0.0
      %1351 = vmatprep.subr.mxu0 0.0
      %1352 = vmatpush1.msra.mxu0 0.0
      %1353 = vmatprep.subr.mxu0 0.0
      %1354 = vmatpush1.msra.mxu0 0.0
      %1355 = vmatprep.subr.mxu0 0.0
      %1356 = vmatpush1.msra.mxu0 0.0
      %1357 = vmatprep.subr.mxu0 0.0
      %1358 = vmatpush1.msra.mxu0 0.0
      %1359 = vmatprep.subr.mxu0 0.0
      %1360 = vmatpush1.msra.mxu0 0.0
      %1361 = vmatprep.subr.mxu0 0.0
      %1362 = vmatpush1.msra.mxu0 0.0
      %1363 = vmatprep.subr.mxu0 0.0
      %1364 = vmatpush1.msra.mxu0 0.0
      %1365 = vmatprep.subr.mxu0 0.0
      %1366 = vmatpush1.msra.mxu0 0.0
      %1367 = vmatprep.subr.mxu0 0.0
      %1368 = vmatpush1.msra.mxu0 0.0
      %1369 = vmatprep.subr.mxu0 0.0
      %1370 = vmatpush1.msra.mxu0 0.0
      %1371 = vmatprep.subr.mxu0 0.0
      %1372 = vmatpush1.msra.mxu0 0.0
      %1373 = vmatprep.subr.mxu0 0.0
      %1374 = vmatpush1.msra.mxu0 0.0
      %1375 = vmatprep.subr.mxu0 0.0
      %1376 = vmatpush1.msra.mxu0 0.0
      %1377 = vmatprep.subr.mxu0 0.0
      %1378 = vmatpush1.msra.mxu0 0.0
      %1379 = vmatprep.mubr.f32.mxu0 0.0
      %1380 = vmatmul.mubr.f32.gmra.mrb[0].mxu0 %v1310
      %v1381 = vpop.f32.mrb[0].mxu0
      %v1382 = vadd.f32 0.0, %v1381
      %v1383 = vpop.f32.mrb[0].mxu0
      %v1384 = vadd.f32 0.0, %v1383
      %1385 = vmatprep.mubr.f32.mxu0 0.0
      %1386 = vmatmul.mubr.f32.gmra.mrb[0].mxu0 %v1313
      %v1387 = vpop.f32.mrb[0].mxu0
      %v1388 = vadd.f32 0.0, %v1387
      %v1389 = vpop.f32.mrb[0].mxu0
      %v1390 = vadd.f32 0.0, %v1389
      %1391 = vdwg.mxu0
      %v1392 = vadd.f32 %v1198, %v1382
      %v1393 = vadd.f32 %v1200, %v1384
      %v1394 = vadd.f32 %v1204, %v1388
      %v1395 = vadd.f32 %v1206, %v1390
      %v1396 = vld [vmem:[%s4] sm:$0x3]
      %v1398 = vlaneseq
      %v1399 = vshrl.u32 %v1398, 7
      %v1400 = vsub.s32 0, %v1399
      %v1401 = vrot.slane %v1396, %v1400
      %v1402 = vlaneseq
      %v1403 = vshrl.u32 %v1402, 7
      %v1404 = vsub.s32 1, %v1403
      %v1405 = vrot.slane %v1396, %v1404
      %v1408 = vadd.f32 %v1392, %v1401
      %v1409 = vadd.f32 %v1393, %v1405
      %v1410 = vadd.f32 %v1394, %v1401
      %v1411 = vadd.f32 %v1395, %v1405
      %v1412 = vmax.f32 %v1408, 0.0
      %v1413 = vmax.f32 %v1409, 0.0
      %v1414 = vmax.f32 %v1410, 0.0
      %v1415 = vmax.f32 %v1411, 0.0
      %v1416 = vld [vmem:[%s5] sm:$0xff]
      %v1418 = vsel %vm584, %v1416, 0
      %1420 = vmatprep.subr.mxu0 %v1413
      %1421 = vmatpush1.msra.mxu0 %v1412
      %1422 = vmatprep.subr.mxu0 %v1415
      %1423 = vmatpush1.msra.mxu0 %v1414
      %1424 = vmatprep.subr.mxu0 0.0
      %1425 = vmatpush1.msra.mxu0 0.0
      %1426 = vmatprep.subr.mxu0 0.0
      %1427 = vmatpush1.msra.mxu0 0.0
      %1428 = vmatprep.subr.mxu0 0.0
      %1429 = vmatpush1.msra.mxu0 0.0
      %1430 = vmatprep.subr.mxu0 0.0
      %1431 = vmatpush1.msra.mxu0 0.0
      %1432 = vmatprep.subr.mxu0 0.0
      %1433 = vmatpush1.msra.mxu0 0.0
      %1434 = vmatprep.subr.mxu0 0.0
      %1435 = vmatpush1.msra.mxu0 0.0
      %1436 = vmatprep.subr.mxu0 0.0
      %1437 = vmatpush1.msra.mxu0 0.0
      %1438 = vmatprep.subr.mxu0 0.0
      %1439 = vmatpush1.msra.mxu0 0.0
      %1440 = vmatprep.subr.mxu0 0.0
      %1441 = vmatpush1.msra.mxu0 0.0
      %1442 = vmatprep.subr.mxu0 0.0
      %1443 = vmatpush1.msra.mxu0 0.0
      %1444 = vmatprep.subr.mxu0 0.0
      %1445 = vmatpush1.msra.mxu0 0.0
      %1446 = vmatprep.subr.mxu0 0.0
      %1447 = vmatpush1.msra.mxu0 0.0
      %1448 = vmatprep.subr.mxu0 0.0
      %1449 = vmatpush1.msra.mxu0 0.0
      %1450 = vmatprep.subr.mxu0 0.0
      %1451 = vmatpush1.msra.mxu0 0.0
      %1452 = vmatprep.subr.mxu0 0.0
      %1453 = vmatpush1.msra.mxu0 0.0
      %1454 = vmatprep.subr.mxu0 0.0
      %1455 = vmatpush1.msra.mxu0 0.0
      %1456 = vmatprep.subr.mxu0 0.0
      %1457 = vmatpush1.msra.mxu0 0.0
      %1458 = vmatprep.subr.mxu0 0.0
      %1459 = vmatpush1.msra.mxu0 0.0
      %1460 = vmatprep.subr.mxu0 0.0
      %1461 = vmatpush1.msra.mxu0 0.0
      %1462 = vmatprep.subr.mxu0 0.0
      %1463 = vmatpush1.msra.mxu0 0.0
      %1464 = vmatprep.subr.mxu0 0.0
      %1465 = vmatpush1.msra.mxu0 0.0
      %1466 = vmatprep.subr.mxu0 0.0
      %1467 = vmatpush1.msra.mxu0 0.0
      %1468 = vmatprep.subr.mxu0 0.0
      %1469 = vmatpush1.msra.mxu0 0.0
      %1470 = vmatprep.subr.mxu0 0.0
      %1471 = vmatpush1.msra.mxu0 0.0
      %1472 = vmatprep.subr.mxu0 0.0
      %1473 = vmatpush1.msra.mxu0 0.0
      %1474 = vmatprep.subr.mxu0 0.0
      %1475 = vmatpush1.msra.mxu0 0.0
      %1476 = vmatprep.subr.mxu0 0.0
      %1477 = vmatpush1.msra.mxu0 0.0
      %1478 = vmatprep.subr.mxu0 0.0
      %1479 = vmatpush1.msra.mxu0 0.0
      %1480 = vmatprep.subr.mxu0 0.0
      %1481 = vmatpush1.msra.mxu0 0.0
      %1482 = vmatprep.subr.mxu0 0.0
      %1483 = vmatpush1.msra.mxu0 0.0
      %1484 = vmatprep.mubr.f32.mxu0 0.0
      %1485 = vmatmul.mubr.f32.gmra.mrb[0].mxu0 %v1418
      %v1486 = vpop.f32.mrb[0].mxu0
      %v1487 = vadd.f32 0.0, %v1486
      %v1488 = vpop.f32.mrb[0].mxu0
      %v1489 = vadd.f32 0.0, %v1488
      %1490 = vdwg.mxu0
      %s1491 = scalar_lea.vmem %s5, 8
      %v1492 = vld [vmem:[%s1491] sm:$0xff]
      %v1494 = vsel %vm584, %v1492, 0
      %1496 = vmatprep.subr.mxu0 %v1413
      %1497 = vmatpush1.msra.mxu0 %v1412
      %1498 = vmatprep.subr.mxu0 %v1415
      %1499 = vmatpush1.msra.mxu0 %v1414
      %1500 = vmatprep.subr.mxu0 0.0
      %1501 = vmatpush1.msra.mxu0 0.0
      %1502 = vmatprep.subr.mxu0 0.0
      %1503 = vmatpush1.msra.mxu0 0.0
      %1504 = vmatprep.subr.mxu0 0.0
      %1505 = vmatpush1.msra.mxu0 0.0
      %1506 = vmatprep.subr.mxu0 0.0
      %1507 = vmatpush1.msra.mxu0 0.0
      %1508 = vmatprep.subr.mxu0 0.0
      %1509 = vmatpush1.msra.mxu0 0.0
      %1510 = vmatprep.subr.mxu0 0.0
      %1511 = vmatpush1.msra.mxu0 0.0
      %1512 = vmatprep.subr.mxu0 0.0
      %1513 = vmatpush1.msra.mxu0 0.0
      %1514 = vmatprep.subr.mxu0 0.0
      %1515 = vmatpush1.msra.mxu0 0.0
      %1516 = vmatprep.subr.mxu0 0.0
      %1517 = vmatpush1.msra.mxu0 0.0
      %1518 = vmatprep.subr.mxu0 0.0
      %1519 = vmatpush1.msra.mxu0 0.0
      %1520 = vmatprep.subr.mxu0 0.0
      %1521 = vmatpush1.msra.mxu0 0.0
      %1522 = vmatprep.subr.mxu0 0.0
      %1523 = vmatpush1.msra.mxu0 0.0
      %1524 = vmatprep.subr.mxu0 0.0
      %1525 = vmatpush1.msra.mxu0 0.0
      %1526 = vmatprep.subr.mxu0 0.0
      %1527 = vmatpush1.msra.mxu0 0.0
      %1528 = vmatprep.subr.mxu0 0.0
      %1529 = vmatpush1.msra.mxu0 0.0
      %1530 = vmatprep.subr.mxu0 0.0
      %1531 = vmatpush1.msra.mxu0 0.0
      %1532 = vmatprep.subr.mxu0 0.0
      %1533 = vmatpush1.msra.mxu0 0.0
      %1534 = vmatprep.subr.mxu0 0.0
      %1535 = vmatpush1.msra.mxu0 0.0
      %1536 = vmatprep.subr.mxu0 0.0
      %1537 = vmatpush1.msra.mxu0 0.0
      %1538 = vmatprep.subr.mxu0 0.0
      %1539 = vmatpush1.msra.mxu0 0.0
      %1540 = vmatprep.subr.mxu0 0.0
      %1541 = vmatpush1.msra.mxu0 0.0
      %1542 = vmatprep.subr.mxu0 0.0
      %1543 = vmatpush1.msra.mxu0 0.0
      %1544 = vmatprep.subr.mxu0 0.0
      %1545 = vmatpush1.msra.mxu0 0.0
      %1546 = vmatprep.subr.mxu0 0.0
      %1547 = vmatpush1.msra.mxu0 0.0
      %1548 = vmatprep.subr.mxu0 0.0
      %1549 = vmatpush1.msra.mxu0 0.0
      %1550 = vmatprep.subr.mxu0 0.0
      %1551 = vmatpush1.msra.mxu0 0.0
      %1552 = vmatprep.subr.mxu0 0.0
      %1553 = vmatpush1.msra.mxu0 0.0
      %1554 = vmatprep.subr.mxu0 0.0
      %1555 = vmatpush1.msra.mxu0 0.0
      %1556 = vmatprep.subr.mxu0 0.0
      %1557 = vmatpush1.msra.mxu0 0.0
      %1558 = vmatprep.subr.mxu0 0.0
      %1559 = vmatpush1.msra.mxu0 0.0
      %1560 = vmatprep.mubr.f32.mxu0 0.0
      %1561 = vmatmul.mubr.f32.gmra.mrb[0].mxu0 %v1494
      %v1562 = vpop.f32.mrb[0].mxu0
      %v1563 = vadd.f32 0.0, %v1562
      %v1564 = vpop.f32.mrb[0].mxu0
      %v1565 = vadd.f32 0.0, %v1564
      %1566 = vdwg.mxu0
      %v1567 = vmax.f32 %v1487, %v1563
      %v1568 = vmax.f32 %v1489, %v1565
      %v1569 = vld [vmem:[%s6] sm:$0xff]
      %v1570 = vld [vmem:[%s6 + $0x8] sm:$0xff]
      %v1571 = vld [vmem:[%s6 + $0x10] sm:$0xff]
      %v1572 = vld [vmem:[%s6 + $0x18] sm:$0xff]
      %v1573 = vld [vmem:[%s6 + $0x20] sm:$0xff]
      %v1574 = vld [vmem:[%s6 + $0x28] sm:$0xff]
      %v1575 = vld [vmem:[%s6 + $0x30] sm:$0xff]
      %v1576 = vld [vmem:[%s6 + $0x38] sm:$0xff]
      %v1577 = vld [vmem:[%s6 + $0x40] sm:$0xff]
      %v1578 = vld [vmem:[%s6 + $0x48] sm:$0xff]
      %v1579 = vld [vmem:[%s6 + $0x50] sm:$0xff]
      %v1580 = vld [vmem:[%s6 + $0x58] sm:$0xff]
      %v1581 = vld [vmem:[%s6 + $0x60] sm:$0xff]
      %v1582 = vld [vmem:[%s6 + $0x68] sm:$0xff]
      %v1583 = vld [vmem:[%s6 + $0x70] sm:$0xff]
      %v1584 = vld [vmem:[%s6 + $0x78] sm:$0xff]
      %v1585 = vld [vmem:[%s6 + $0x80] sm:$0xff]
      %v1586 = vld [vmem:[%s6 + $0x88] sm:$0xff]
      %v1587 = vld [vmem:[%s6 + $0x90] sm:$0xff]
      %v1588 = vld [vmem:[%s6 + $0x98] sm:$0xff]
      %v1589 = vld [vmem:[%s6 + $0xa0] sm:$0xff]
      %v1590 = vld [vmem:[%s6 + $0xa8] sm:$0xff]
      %v1591 = vld [vmem:[%s6 + $0xb0] sm:$0xff]
      %v1592 = vld [vmem:[%s6 + $0xb8] sm:$0xff]
      %v1593 = vld [vmem:[%s6 + $0xc0] sm:$0xff]
      %v1594 = vld [vmem:[%s6 + $0xc8] sm:$0xff]
      %v1595 = vld [vmem:[%s6 + $0xd0] sm:$0xff]
      %v1596 = vld [vmem:[%s6 + $0xd8] sm:$0xff]
      %v1597 = vld [vmem:[%s6 + $0xe0] sm:$0xff]
      %v1598 = vld [vmem:[%s6 + $0xe8] sm:$0xff]
      %v1599 = vld [vmem:[%s6 + $0xf0] sm:$0xff]
      %v1600 = vld [vmem:[%s6 + $0xf8] sm:$0xff]
      %1601 = vmatprep.subr.mxu0 0.0
      %1602 = vmatpush1.msra.mxu0 %v1569
      %1603 = vmatprep.subr.mxu0 0.0
      %1604 = vmatpush1.msra.mxu0 %v1570
      %1605 = vmatprep.subr.mxu0 0.0
      %1606 = vmatpush1.msra.mxu0 %v1571
      %1607 = vmatprep.subr.mxu0 0.0
      %1608 = vmatpush1.msra.mxu0 %v1572
      %1609 = vmatprep.subr.mxu0 0.0
      %1610 = vmatpush1.msra.mxu0 %v1573
      %1611 = vmatprep.subr.mxu0 0.0
      %1612 = vmatpush1.msra.mxu0 %v1574
      %1613 = vmatprep.subr.mxu0 0.0
      %1614 = vmatpush1.msra.mxu0 %v1575
      %1615 = vmatprep.subr.mxu0 0.0
      %1616 = vmatpush1.msra.mxu0 %v1576
      %1617 = vmatprep.subr.mxu0 0.0
      %1618 = vmatpush1.msra.mxu0 %v1577
      %1619 = vmatprep.subr.mxu0 0.0
      %1620 = vmatpush1.msra.mxu0 %v1578
      %1621 = vmatprep.subr.mxu0 0.0
      %1622 = vmatpush1.msra.mxu0 %v1579
      %1623 = vmatprep.subr.mxu0 0.0
      %1624 = vmatpush1.msra.mxu0 %v1580
      %1625 = vmatprep.subr.mxu0 0.0
      %1626 = vmatpush1.msra.mxu0 %v1581
      %1627 = vmatprep.subr.mxu0 0.0
      %1628 = vmatpush1.msra.mxu0 %v1582
      %1629 = vmatprep.subr.mxu0 0.0
      %1630 = vmatpush1.msra.mxu0 %v1583
      %1631 = vmatprep.subr.mxu0 0.0
      %1632 = vmatpush1.msra.mxu0 %v1584
      %1633 = vmatprep.subr.mxu0 0.0
      %1634 = vmatpush1.msra.mxu0 %v1585
      %1635 = vmatprep.subr.mxu0 0.0
      %1636 = vmatpush1.msra.mxu0 %v1586
      %1637 = vmatprep.subr.mxu0 0.0
      %1638 = vmatpush1.msra.mxu0 %v1587
      %1639 = vmatprep.subr.mxu0 0.0
      %1640 = vmatpush1.msra.mxu0 %v1588
      %1641 = vmatprep.subr.mxu0 0.0
      %1642 = vmatpush1.msra.mxu0 %v1589
      %1643 = vmatprep.subr.mxu0 0.0
      %1644 = vmatpush1.msra.mxu0 %v1590
      %1645 = vmatprep.subr.mxu0 0.0
      %1646 = vmatpush1.msra.mxu0 %v1591
      %1647 = vmatprep.subr.mxu0 0.0
      %1648 = vmatpush1.msra.mxu0 %v1592
      %1649 = vmatprep.subr.mxu0 0.0
      %1650 = vmatpush1.msra.mxu0 %v1593
      %1651 = vmatprep.subr.mxu0 0.0
      %1652 = vmatpush1.msra.mxu0 %v1594
      %1653 = vmatprep.subr.mxu0 0.0
      %1654 = vmatpush1.msra.mxu0 %v1595
      %1655 = vmatprep.subr.mxu0 0.0
      %1656 = vmatpush1.msra.mxu0 %v1596
      %1657 = vmatprep.subr.mxu0 0.0
      %1658 = vmatpush1.msra.mxu0 %v1597
      %1659 = vmatprep.subr.mxu0 0.0
      %1660 = vmatpush1.msra.mxu0 %v1598
      %1661 = vmatprep.subr.mxu0 0.0
      %1662 = vmatpush1.msra.mxu0 %v1599
      %1663 = vmatprep.subr.mxu0 0.0
      %1664 = vmatpush1.msra.mxu0 %v1600
      %1665 = vmatprep.mubr.f32.mxu0 %v1568
      %1666 = vmatmul.mubr.f32.gmra.mrb[0].mxu0 %v1567
      %v1667 = vpop.f32.mrb[0].mxu0
      %v1668 = vadd.f32 0.0, %v1667
      %v1669 = vpop.f32.mrb[0].mxu0
      %1670 = vdwg.mxu0
      %s1671 = scalar_lea.vmem %s6, 256
      %v1672 = vld [vmem:[%s1671] sm:$0xff]
      %v1673 = vld [vmem:[%s1671 + $0x8] sm:$0xff]
      %v1674 = vld [vmem:[%s1671 + $0x10] sm:$0xff]
      %v1675 = vld [vmem:[%s1671 + $0x18] sm:$0xff]
      %v1676 = vld [vmem:[%s1671 + $0x20] sm:$0xff]
      %v1677 = vld [vmem:[%s1671 + $0x28] sm:$0xff]
      %v1678 = vld [vmem:[%s1671 + $0x30] sm:$0xff]
      %v1679 = vld [vmem:[%s1671 + $0x38] sm:$0xff]
      %v1680 = vld [vmem:[%s1671 + $0x40] sm:$0xff]
      %v1681 = vld [vmem:[%s1671 + $0x48] sm:$0xff]
      %v1682 = vld [vmem:[%s1671 + $0x50] sm:$0xff]
      %v1683 = vld [vmem:[%s1671 + $0x58] sm:$0xff]
      %v1684 = vld [vmem:[%s1671 + $0x60] sm:$0xff]
      %v1685 = vld [vmem:[%s1671 + $0x68] sm:$0xff]
      %v1686 = vld [vmem:[%s1671 + $0x70] sm:$0xff]
      %v1687 = vld [vmem:[%s1671 + $0x78] sm:$0xff]
      %v1688 = vld [vmem:[%s1671 + $0x80] sm:$0xff]
      %v1689 = vld [vmem:[%s1671 + $0x88] sm:$0xff]
      %v1690 = vld [vmem:[%s1671 + $0x90] sm:$0xff]
      %v1691 = vld [vmem:[%s1671 + $0x98] sm:$0xff]
      %v1692 = vld [vmem:[%s1671 + $0xa0] sm:$0xff]
      %v1693 = vld [vmem:[%s1671 + $0xa8] sm:$0xff]
      %v1694 = vld [vmem:[%s1671 + $0xb0] sm:$0xff]
      %v1695 = vld [vmem:[%s1671 + $0xb8] sm:$0xff]
      %v1696 = vld [vmem:[%s1671 + $0xc0] sm:$0xff]
      %v1697 = vld [vmem:[%s1671 + $0xc8] sm:$0xff]
      %v1698 = vld [vmem:[%s1671 + $0xd0] sm:$0xff]
      %v1699 = vld [vmem:[%s1671 + $0xd8] sm:$0xff]
      %v1700 = vld [vmem:[%s1671 + $0xe0] sm:$0xff]
      %v1701 = vld [vmem:[%s1671 + $0xe8] sm:$0xff]
      %v1702 = vld [vmem:[%s1671 + $0xf0] sm:$0xff]
      %v1703 = vld [vmem:[%s1671 + $0xf8] sm:$0xff]
      %1704 = vmatprep.subr.mxu0 0.0
      %1705 = vmatpush1.msra.mxu0 %v1672
      %1706 = vmatprep.subr.mxu0 0.0
      %1707 = vmatpush1.msra.mxu0 %v1673
      %1708 = vmatprep.subr.mxu0 0.0
      %1709 = vmatpush1.msra.mxu0 %v1674
      %1710 = vmatprep.subr.mxu0 0.0
      %1711 = vmatpush1.msra.mxu0 %v1675
      %1712 = vmatprep.subr.mxu0 0.0
      %1713 = vmatpush1.msra.mxu0 %v1676
      %1714 = vmatprep.subr.mxu0 0.0
      %1715 = vmatpush1.msra.mxu0 %v1677
      %1716 = vmatprep.subr.mxu0 0.0
      %1717 = vmatpush1.msra.mxu0 %v1678
      %1718 = vmatprep.subr.mxu0 0.0
      %1719 = vmatpush1.msra.mxu0 %v1679
      %1720 = vmatprep.subr.mxu0 0.0
      %1721 = vmatpush1.msra.mxu0 %v1680
      %1722 = vmatprep.subr.mxu0 0.0
      %1723 = vmatpush1.msra.mxu0 %v1681
      %1724 = vmatprep.subr.mxu0 0.0
      %1725 = vmatpush1.msra.mxu0 %v1682
      %1726 = vmatprep.subr.mxu0 0.0
      %1727 = vmatpush1.msra.mxu0 %v1683
      %1728 = vmatprep.subr.mxu0 0.0
      %1729 = vmatpush1.msra.mxu0 %v1684
      %1730 = vmatprep.subr.mxu0 0.0
      %1731 = vmatpush1.msra.mxu0 %v1685
      %1732 = vmatprep.subr.mxu0 0.0
      %1733 = vmatpush1.msra.mxu0 %v1686
      %1734 = vmatprep.subr.mxu0 0.0
      %1735 = vmatpush1.msra.mxu0 %v1687
      %1736 = vmatprep.subr.mxu0 0.0
      %1737 = vmatpush1.msra.mxu0 %v1688
      %1738 = vmatprep.subr.mxu0 0.0
      %1739 = vmatpush1.msra.mxu0 %v1689
      %1740 = vmatprep.subr.mxu0 0.0
      %1741 = vmatpush1.msra.mxu0 %v1690
      %1742 = vmatprep.subr.mxu0 0.0
      %1743 = vmatpush1.msra.mxu0 %v1691
      %1744 = vmatprep.subr.mxu0 0.0
      %1745 = vmatpush1.msra.mxu0 %v1692
      %1746 = vmatprep.subr.mxu0 0.0
      %1747 = vmatpush1.msra.mxu0 %v1693
      %1748 = vmatprep.subr.mxu0 0.0
      %1749 = vmatpush1.msra.mxu0 %v1694
      %1750 = vmatprep.subr.mxu0 0.0
      %1751 = vmatpush1.msra.mxu0 %v1695
      %1752 = vmatprep.subr.mxu0 0.0
      %1753 = vmatpush1.msra.mxu0 %v1696
      %1754 = vmatprep.subr.mxu0 0.0
      %1755 = vmatpush1.msra.mxu0 %v1697
      %1756 = vmatprep.subr.mxu0 0.0
      %1757 = vmatpush1.msra.mxu0 %v1698
      %1758 = vmatprep.subr.mxu0 0.0
      %1759 = vmatpush1.msra.mxu0 %v1699
      %1760 = vmatprep.subr.mxu0 0.0
      %1761 = vmatpush1.msra.mxu0 %v1700
      %1762 = vmatprep.subr.mxu0 0.0
      %1763 = vmatpush1.msra.mxu0 %v1701
      %1764 = vmatprep.subr.mxu0 0.0
      %1765 = vmatpush1.msra.mxu0 %v1702
      %1766 = vmatprep.subr.mxu0 0.0
      %1767 = vmatpush1.msra.mxu0 %v1703
      %1768 = vmatprep.mubr.f32.mxu0 %v1568
      %1769 = vmatmul.mubr.f32.gmra.mrb[0].mxu0 %v1567
      %v1770 = vpop.f32.mrb[0].mxu0
      %v1771 = vadd.f32 0.0, %v1770
      %v1772 = vpop.f32.mrb[0].mxu0
      %1773 = vdwg.mxu0
      %v1774 = vmax.f32 %v1668, %v1771
      %s1775 = scalar_lea.vmem %s8, 256
      %v1776 = vld [vmem:[%s1775] sm:$0xff]
      %v1777 = vld [vmem:[%s1775 + $0x8] sm:$0xff]
      %v1778 = vld [vmem:[%s1775 + $0x10] sm:$0xff]
      %v1779 = vld [vmem:[%s1775 + $0x18] sm:$0xff]
      %v1780 = vld [vmem:[%s1775 + $0x20] sm:$0xff]
      %v1781 = vld [vmem:[%s1775 + $0x28] sm:$0xff]
      %v1782 = vld [vmem:[%s1775 + $0x30] sm:$0xff]
      %v1783 = vld [vmem:[%s1775 + $0x38] sm:$0xff]
      %v1784 = vld [vmem:[%s1775 + $0x40] sm:$0xff]
      %v1785 = vld [vmem:[%s1775 + $0x48] sm:$0xff]
      %v1786 = vld [vmem:[%s1775 + $0x50] sm:$0xff]
      %v1787 = vld [vmem:[%s1775 + $0x58] sm:$0xff]
      %v1788 = vld [vmem:[%s1775 + $0x60] sm:$0xff]
      %v1789 = vld [vmem:[%s1775 + $0x68] sm:$0xff]
      %v1790 = vld [vmem:[%s1775 + $0x70] sm:$0xff]
      %v1791 = vld [vmem:[%s1775 + $0x78] sm:$0xff]
      %v1792 = vld [vmem:[%s1775 + $0x80] sm:$0xff]
      %v1793 = vld [vmem:[%s1775 + $0x88] sm:$0xff]
      %v1794 = vld [vmem:[%s1775 + $0x90] sm:$0xff]
      %v1795 = vld [vmem:[%s1775 + $0x98] sm:$0xff]
      %v1796 = vld [vmem:[%s1775 + $0xa0] sm:$0xff]
      %v1797 = vld [vmem:[%s1775 + $0xa8] sm:$0xff]
      %v1798 = vld [vmem:[%s1775 + $0xb0] sm:$0xff]
      %v1799 = vld [vmem:[%s1775 + $0xb8] sm:$0xff]
      %v1800 = vld [vmem:[%s1775 + $0xc0] sm:$0xff]
      %v1801 = vld [vmem:[%s1775 + $0xc8] sm:$0xff]
      %v1802 = vld [vmem:[%s1775 + $0xd0] sm:$0xff]
      %v1803 = vld [vmem:[%s1775 + $0xd8] sm:$0xff]
      %v1804 = vld [vmem:[%s1775 + $0xe0] sm:$0xff]
      %v1805 = vld [vmem:[%s1775 + $0xe8] sm:$0xff]
      %v1806 = vld [vmem:[%s1775 + $0xf0] sm:$0xff]
      %v1807 = vld [vmem:[%s1775 + $0xf8] sm:$0xff]
      %v1808 = vld [vmem:[%s7] sm:$0xff]
      %vm1809 = vcmask 64512
      %v1811 = vsel %vm1809, %v1808, 0
      %1813 = vmatprep.subr.mxu0 0.0
      %1814 = vmatpush1.msra.mxu0 %v1774
      %1815 = vmatprep.subr.mxu0 0.0
      %1816 = vmatpush1.msra.mxu0 0.0
      %1817 = vmatprep.subr.mxu0 0.0
      %1818 = vmatpush1.msra.mxu0 0.0
      %1819 = vmatprep.subr.mxu0 0.0
      %1820 = vmatpush1.msra.mxu0 0.0
      %1821 = vmatprep.subr.mxu0 0.0
      %1822 = vmatpush1.msra.mxu0 0.0
      %1823 = vmatprep.subr.mxu0 0.0
      %1824 = vmatpush1.msra.mxu0 0.0
      %1825 = vmatprep.subr.mxu0 0.0
      %1826 = vmatpush1.msra.mxu0 0.0
      %1827 = vmatprep.subr.mxu0 0.0
      %1828 = vmatpush1.msra.mxu0 0.0
      %1829 = vmatprep.subr.mxu0 0.0
      %1830 = vmatpush1.msra.mxu0 0.0
      %1831 = vmatprep.subr.mxu0 0.0
      %1832 = vmatpush1.msra.mxu0 0.0
      %1833 = vmatprep.subr.mxu0 0.0
      %1834 = vmatpush1.msra.mxu0 0.0
      %1835 = vmatprep.subr.mxu0 0.0
      %1836 = vmatpush1.msra.mxu0 0.0
      %1837 = vmatprep.subr.mxu0 0.0
      %1838 = vmatpush1.msra.mxu0 0.0
      %1839 = vmatprep.subr.mxu0 0.0
      %1840 = vmatpush1.msra.mxu0 0.0
      %1841 = vmatprep.subr.mxu0 0.0
      %1842 = vmatpush1.msra.mxu0 0.0
      %1843 = vmatprep.subr.mxu0 0.0
      %1844 = vmatpush1.msra.mxu0 0.0
      %1845 = vmatprep.subr.mxu0 0.0
      %1846 = vmatpush1.msra.mxu0 0.0
      %1847 = vmatprep.subr.mxu0 0.0
      %1848 = vmatpush1.msra.mxu0 0.0
      %1849 = vmatprep.subr.mxu0 0.0
      %1850 = vmatpush1.msra.mxu0 0.0
      %1851 = vmatprep.subr.mxu0 0.0
      %1852 = vmatpush1.msra.mxu0 0.0
      %1853 = vmatprep.subr.mxu0 0.0
      %1854 = vmatpush1.msra.mxu0 0.0
      %1855 = vmatprep.subr.mxu0 0.0
      %1856 = vmatpush1.msra.mxu0 0.0
      %1857 = vmatprep.subr.mxu0 0.0
      %1858 = vmatpush1.msra.mxu0 0.0
      %1859 = vmatprep.subr.mxu0 0.0
      %1860 = vmatpush1.msra.mxu0 0.0
      %1861 = vmatprep.subr.mxu0 0.0
      %1862 = vmatpush1.msra.mxu0 0.0
      %1863 = vmatprep.subr.mxu0 0.0
      %1864 = vmatpush1.msra.mxu0 0.0
      %1865 = vmatprep.subr.mxu0 0.0
      %1866 = vmatpush1.msra.mxu0 0.0
      %1867 = vmatprep.subr.mxu0 0.0
      %1868 = vmatpush1.msra.mxu0 0.0
      %1869 = vmatprep.subr.mxu0 0.0
      %1870 = vmatpush1.msra.mxu0 0.0
      %1871 = vmatprep.subr.mxu0 0.0
      %1872 = vmatpush1.msra.mxu0 0.0
      %1873 = vmatprep.subr.mxu0 0.0
      %1874 = vmatpush1.msra.mxu0 0.0
      %1875 = vmatprep.subr.mxu0 0.0
      %1876 = vmatpush1.msra.mxu0 0.0
      %1877 = vmatprep.mubr.f32.mxu0 0.0
      %1878 = vmatmul.mubr.f32.gmra.mrb[0].mxu0 %v1811
      %v1879 = vpop.f32.mrb[0].mxu0
      %v1880 = vadd.f32 0.0, %v1879
      %v1881 = vpop.f32.mrb[0].mxu0
      %1882 = vdwg.mxu0
      %v1883 = vld [vmem:[%s8] sm:$0xff]
      %v1884 = vld [vmem:[%s8 + $0x8] sm:$0xff]
      %v1885 = vld [vmem:[%s8 + $0x10] sm:$0xff]
      %v1886 = vld [vmem:[%s8 + $0x18] sm:$0xff]
      %v1887 = vld [vmem:[%s8 + $0x20] sm:$0xff]
      %v1888 = vld [vmem:[%s8 + $0x28] sm:$0xff]
      %v1889 = vld [vmem:[%s8 + $0x30] sm:$0xff]
      %v1890 = vld [vmem:[%s8 + $0x38] sm:$0xff]
      %v1891 = vld [vmem:[%s8 + $0x40] sm:$0xff]
      %v1892 = vld [vmem:[%s8 + $0x48] sm:$0xff]
      %v1893 = vld [vmem:[%s8 + $0x50] sm:$0xff]
      %v1894 = vld [vmem:[%s8 + $0x58] sm:$0xff]
      %v1895 = vld [vmem:[%s8 + $0x60] sm:$0xff]
      %v1896 = vld [vmem:[%s8 + $0x68] sm:$0xff]
      %v1897 = vld [vmem:[%s8 + $0x70] sm:$0xff]
      %v1898 = vld [vmem:[%s8 + $0x78] sm:$0xff]
      %v1899 = vld [vmem:[%s8 + $0x80] sm:$0xff]
      %v1900 = vld [vmem:[%s8 + $0x88] sm:$0xff]
      %v1901 = vld [vmem:[%s8 + $0x90] sm:$0xff]
      %v1902 = vld [vmem:[%s8 + $0x98] sm:$0xff]
      %v1903 = vld [vmem:[%s8 + $0xa0] sm:$0xff]
      %v1904 = vld [vmem:[%s8 + $0xa8] sm:$0xff]
      %v1905 = vld [vmem:[%s8 + $0xb0] sm:$0xff]
      %v1906 = vld [vmem:[%s8 + $0xb8] sm:$0xff]
      %v1907 = vld [vmem:[%s8 + $0xc0] sm:$0xff]
      %v1908 = vld [vmem:[%s8 + $0xc8] sm:$0xff]
      %v1909 = vld [vmem:[%s8 + $0xd0] sm:$0xff]
      %v1910 = vld [vmem:[%s8 + $0xd8] sm:$0xff]
      %v1911 = vld [vmem:[%s8 + $0xe0] sm:$0xff]
      %v1912 = vld [vmem:[%s8 + $0xe8] sm:$0xff]
      %v1913 = vld [vmem:[%s8 + $0xf0] sm:$0xff]
      %v1914 = vld [vmem:[%s8 + $0xf8] sm:$0xff]
      %1915 = vmatprep.subr.mxu0 %v1884
      %1916 = vmatpush1.msra.mxu0 %v1883
      %1917 = vmatprep.subr.mxu0 %v1886
      %1918 = vmatpush1.msra.mxu0 %v1885
      %1919 = vmatprep.subr.mxu0 %v1888
      %1920 = vmatpush1.msra.mxu0 %v1887
      %1921 = vmatprep.subr.mxu0 %v1890
      %1922 = vmatpush1.msra.mxu0 %v1889
      %1923 = vmatprep.subr.mxu0 %v1892
      %1924 = vmatpush1.msra.mxu0 %v1891
      %1925 = vmatprep.subr.mxu0 %v1894
      %1926 = vmatpush1.msra.mxu0 %v1893
      %1927 = vmatprep.subr.mxu0 %v1896
      %1928 = vmatpush1.msra.mxu0 %v1895
      %1929 = vmatprep.subr.mxu0 %v1898
      %1930 = vmatpush1.msra.mxu0 %v1897
      %1931 = vmatprep.subr.mxu0 %v1900
      %1932 = vmatpush1.msra.mxu0 %v1899
      %1933 = vmatprep.subr.mxu0 %v1902
      %1934 = vmatpush1.msra.mxu0 %v1901
      %1935 = vmatprep.subr.mxu0 %v1904
      %1936 = vmatpush1.msra.mxu0 %v1903
      %1937 = vmatprep.subr.mxu0 %v1906
      %1938 = vmatpush1.msra.mxu0 %v1905
      %1939 = vmatprep.subr.mxu0 %v1908
      %1940 = vmatpush1.msra.mxu0 %v1907
      %1941 = vmatprep.subr.mxu0 %v1910
      %1942 = vmatpush1.msra.mxu0 %v1909
      %1943 = vmatprep.subr.mxu0 %v1912
      %1944 = vmatpush1.msra.mxu0 %v1911
      %1945 = vmatprep.subr.mxu0 %v1914
      %1946 = vmatpush1.msra.mxu0 %v1913
      %1947 = vmatprep.subr.mxu0 0.0
      %1948 = vmatpush1.msra.mxu0 0.0
      %1949 = vmatprep.subr.mxu0 0.0
      %1950 = vmatpush1.msra.mxu0 0.0
      %1951 = vmatprep.subr.mxu0 0.0
      %1952 = vmatpush1.msra.mxu0 0.0
      %1953 = vmatprep.subr.mxu0 0.0
      %1954 = vmatpush1.msra.mxu0 0.0
      %1955 = vmatprep.subr.mxu0 0.0
      %1956 = vmatpush1.msra.mxu0 0.0
      %1957 = vmatprep.subr.mxu0 0.0
      %1958 = vmatpush1.msra.mxu0 0.0
      %1959 = vmatprep.subr.mxu0 0.0
      %1960 = vmatpush1.msra.mxu0 0.0
      %1961 = vmatprep.subr.mxu0 0.0
      %1962 = vmatpush1.msra.mxu0 0.0
      %1963 = vmatprep.subr.mxu0 0.0
      %1964 = vmatpush1.msra.mxu0 0.0
      %1965 = vmatprep.subr.mxu0 0.0
      %1966 = vmatpush1.msra.mxu0 0.0
      %1967 = vmatprep.subr.mxu0 0.0
      %1968 = vmatpush1.msra.mxu0 0.0
      %1969 = vmatprep.subr.mxu0 0.0
      %1970 = vmatpush1.msra.mxu0 0.0
      %1971 = vmatprep.subr.mxu0 0.0
      %1972 = vmatpush1.msra.mxu0 0.0
      %1973 = vmatprep.subr.mxu0 0.0
      %1974 = vmatpush1.msra.mxu0 0.0
      %1975 = vmatprep.subr.mxu0 0.0
      %1976 = vmatpush1.msra.mxu0 0.0
      %1977 = vmatprep.subr.mxu0 0.0
      %1978 = vmatpush1.msra.mxu0 0.0
      %1979 = vmatprep.mubr.f32.mxu0 0.0
      %1980 = vmatmul.mubr.f32.gmra.mrb[0].mxu0 %v1880
      %v1981 = vpop.f32.mrb[0].mxu0
      %v1982 = vadd.f32 0.0, %v1981
      %v1983 = vpop.f32.mrb[0].mxu0
      %v1984 = vadd.f32 0.0, %v1983
      %1985 = vdwg.mxu0
      %1986 = vmatprep.subr.mxu0 %v1777
      %1987 = vmatpush1.msra.mxu0 %v1776
      %1988 = vmatprep.subr.mxu0 %v1779
      %1989 = vmatpush1.msra.mxu0 %v1778
      %1990 = vmatprep.subr.mxu0 %v1781
      %1991 = vmatpush1.msra.mxu0 %v1780
      %1992 = vmatprep.subr.mxu0 %v1783
      %1993 = vmatpush1.msra.mxu0 %v1782
      %1994 = vmatprep.subr.mxu0 %v1785
      %1995 = vmatpush1.msra.mxu0 %v1784
      %1996 = vmatprep.subr.mxu0 %v1787
      %1997 = vmatpush1.msra.mxu0 %v1786
      %1998 = vmatprep.subr.mxu0 %v1789
      %1999 = vmatpush1.msra.mxu0 %v1788
      %2000 = vmatprep.subr.mxu0 %v1791
      %2001 = vmatpush1.msra.mxu0 %v1790
      %2002 = vmatprep.subr.mxu0 %v1793
      %2003 = vmatpush1.msra.mxu0 %v1792
      %2004 = vmatprep.subr.mxu0 %v1795
      %2005 = vmatpush1.msra.mxu0 %v1794
      %2006 = vmatprep.subr.mxu0 %v1797
      %2007 = vmatpush1.msra.mxu0 %v1796
      %2008 = vmatprep.subr.mxu0 %v1799
      %2009 = vmatpush1.msra.mxu0 %v1798
      %2010 = vmatprep.subr.mxu0 %v1801
      %2011 = vmatpush1.msra.mxu0 %v1800
      %2012 = vmatprep.subr.mxu0 %v1803
      %2013 = vmatpush1.msra.mxu0 %v1802
      %2014 = vmatprep.subr.mxu0 %v1805
      %2015 = vmatpush1.msra.mxu0 %v1804
      %2016 = vmatprep.subr.mxu0 %v1807
      %2017 = vmatpush1.msra.mxu0 %v1806
      %2018 = vmatprep.subr.mxu0 0.0
      %2019 = vmatpush1.msra.mxu0 0.0
      %2020 = vmatprep.subr.mxu0 0.0
      %2021 = vmatpush1.msra.mxu0 0.0
      %2022 = vmatprep.subr.mxu0 0.0
      %2023 = vmatpush1.msra.mxu0 0.0
      %2024 = vmatprep.subr.mxu0 0.0
      %2025 = vmatpush1.msra.mxu0 0.0
      %2026 = vmatprep.subr.mxu0 0.0
      %2027 = vmatpush1.msra.mxu0 0.0
      %2028 = vmatprep.subr.mxu0 0.0
      %2029 = vmatpush1.msra.mxu0 0.0
      %2030 = vmatprep.subr.mxu0 0.0
      %2031 = vmatpush1.msra.mxu0 0.0
      %2032 = vmatprep.subr.mxu0 0.0
      %2033 = vmatpush1.msra.mxu0 0.0
      %2034 = vmatprep.subr.mxu0 0.0
      %2035 = vmatpush1.msra.mxu0 0.0
      %2036 = vmatprep.subr.mxu0 0.0
      %2037 = vmatpush1.msra.mxu0 0.0
      %2038 = vmatprep.subr.mxu0 0.0
      %2039 = vmatpush1.msra.mxu0 0.0
      %2040 = vmatprep.subr.mxu0 0.0
      %2041 = vmatpush1.msra.mxu0 0.0
      %2042 = vmatprep.subr.mxu0 0.0
      %2043 = vmatpush1.msra.mxu0 0.0
      %2044 = vmatprep.subr.mxu0 0.0
      %2045 = vmatpush1.msra.mxu0 0.0
      %2046 = vmatprep.subr.mxu0 0.0
      %2047 = vmatpush1.msra.mxu0 0.0
      %2048 = vmatprep.subr.mxu0 0.0
      %2049 = vmatpush1.msra.mxu0 0.0
      %2050 = vmatprep.mubr.f32.mxu0 0.0
      %2051 = vmatmul.mubr.f32.gmra.mrb[0].mxu0 %v1774
      %v2052 = vpop.f32.mrb[0].mxu0
      %v2053 = vadd.f32 %v1982, %v2052
      %v2054 = vpop.f32.mrb[0].mxu0
      %v2055 = vadd.f32 %v1984, %v2054
      %2056 = vdwg.mxu0
      %s2057 = scalar_lea.vmem %s7, 8
      %v2058 = vld [vmem:[%s2057] sm:$0xff]
      %v2060 = vsel %vm1809, %v2058, 0
      %2062 = vmatprep.subr.mxu0 0.0
      %2063 = vmatpush1.msra.mxu0 %v1774
      %2064 = vmatprep.subr.mxu0 0.0
      %2065 = vmatpush1.msra.mxu0 0.0
      %2066 = vmatprep.subr.mxu0 0.0
      %2067 = vmatpush1.msra.mxu0 0.0
      %2068 = vmatprep.subr.mxu0 0.0
      %2069 = vmatpush1.msra.mxu0 0.0
      %2070 = vmatprep.subr.mxu0 0.0
      %2071 = vmatpush1.msra.mxu0 0.0
      %2072 = vmatprep.subr.mxu0 0.0
      %2073 = vmatpush1.msra.mxu0 0.0
      %2074 = vmatprep.subr.mxu0 0.0
      %2075 = vmatpush1.msra.mxu0 0.0
      %2076 = vmatprep.subr.mxu0 0.0
      %2077 = vmatpush1.msra.mxu0 0.0
      %2078 = vmatprep.subr.mxu0 0.0
      %2079 = vmatpush1.msra.mxu0 0.0
      %2080 = vmatprep.subr.mxu0 0.0
      %2081 = vmatpush1.msra.mxu0 0.0
      %2082 = vmatprep.subr.mxu0 0.0
      %2083 = vmatpush1.msra.mxu0 0.0
      %2084 = vmatprep.subr.mxu0 0.0
      %2085 = vmatpush1.msra.mxu0 0.0
      %2086 = vmatprep.subr.mxu0 0.0
      %2087 = vmatpush1.msra.mxu0 0.0
      %2088 = vmatprep.subr.mxu0 0.0
      %2089 = vmatpush1.msra.mxu0 0.0
      %2090 = vmatprep.subr.mxu0 0.0
      %2091 = vmatpush1.msra.mxu0 0.0
      %2092 = vmatprep.subr.mxu0 0.0
      %2093 = vmatpush1.msra.mxu0 0.0
      %2094 = vmatprep.subr.mxu0 0.0
      %2095 = vmatpush1.msra.mxu0 0.0
      %2096 = vmatprep.subr.mxu0 0.0
      %2097 = vmatpush1.msra.mxu0 0.0
      %2098 = vmatprep.subr.mxu0 0.0
      %2099 = vmatpush1.msra.mxu0 0.0
      %2100 = vmatprep.subr.mxu0 0.0
      %2101 = vmatpush1.msra.mxu0 0.0
      %2102 = vmatprep.subr.mxu0 0.0
      %2103 = vmatpush1.msra.mxu0 0.0
      %2104 = vmatprep.subr.mxu0 0.0
      %2105 = vmatpush1.msra.mxu0 0.0
      %2106 = vmatprep.subr.mxu0 0.0
      %2107 = vmatpush1.msra.mxu0 0.0
      %2108 = vmatprep.subr.mxu0 0.0
      %2109 = vmatpush1.msra.mxu0 0.0
      %2110 = vmatprep.subr.mxu0 0.0
      %2111 = vmatpush1.msra.mxu0 0.0
      %2112 = vmatprep.subr.mxu0 0.0
      %2113 = vmatpush1.msra.mxu0 0.0
      %2114 = vmatprep.subr.mxu0 0.0
      %2115 = vmatpush1.msra.mxu0 0.0
      %2116 = vmatprep.subr.mxu0 0.0
      %2117 = vmatpush1.msra.mxu0 0.0
      %2118 = vmatprep.subr.mxu0 0.0
      %2119 = vmatpush1.msra.mxu0 0.0
      %2120 = vmatprep.subr.mxu0 0.0
      %2121 = vmatpush1.msra.mxu0 0.0
      %2122 = vmatprep.subr.mxu0 0.0
      %2123 = vmatpush1.msra.mxu0 0.0
      %2124 = vmatprep.subr.mxu0 0.0
      %2125 = vmatpush1.msra.mxu0 0.0
      %2126 = vmatprep.mubr.f32.mxu0 0.0
      %2127 = vmatmul.mubr.f32.gmra.mrb[0].mxu0 %v2060
      %v2128 = vpop.f32.mrb[0].mxu0
      %v2129 = vadd.f32 0.0, %v2128
      %v2130 = vpop.f32.mrb[0].mxu0
      %2131 = vdwg.mxu0
      %s2132 = scalar_lea.vmem %s8, 512
      %v2133 = vld [vmem:[%s2132] sm:$0xff]
      %v2134 = vld [vmem:[%s2132 + $0x8] sm:$0xff]
      %v2135 = vld [vmem:[%s2132 + $0x10] sm:$0xff]
      %v2136 = vld [vmem:[%s2132 + $0x18] sm:$0xff]
      %v2137 = vld [vmem:[%s2132 + $0x20] sm:$0xff]
      %v2138 = vld [vmem:[%s2132 + $0x28] sm:$0xff]
      %v2139 = vld [vmem:[%s2132 + $0x30] sm:$0xff]
      %v2140 = vld [vmem:[%s2132 + $0x38] sm:$0xff]
      %v2141 = vld [vmem:[%s2132 + $0x40] sm:$0xff]
      %v2142 = vld [vmem:[%s2132 + $0x48] sm:$0xff]
      %v2143 = vld [vmem:[%s2132 + $0x50] sm:$0xff]
      %v2144 = vld [vmem:[%s2132 + $0x58] sm:$0xff]
      %v2145 = vld [vmem:[%s2132 + $0x60] sm:$0xff]
      %v2146 = vld [vmem:[%s2132 + $0x68] sm:$0xff]
      %v2147 = vld [vmem:[%s2132 + $0x70] sm:$0xff]
      %v2148 = vld [vmem:[%s2132 + $0x78] sm:$0xff]
      %v2149 = vld [vmem:[%s2132 + $0x80] sm:$0xff]
      %v2150 = vld [vmem:[%s2132 + $0x88] sm:$0xff]
      %v2151 = vld [vmem:[%s2132 + $0x90] sm:$0xff]
      %v2152 = vld [vmem:[%s2132 + $0x98] sm:$0xff]
      %v2153 = vld [vmem:[%s2132 + $0xa0] sm:$0xff]
      %v2154 = vld [vmem:[%s2132 + $0xa8] sm:$0xff]
      %v2155 = vld [vmem:[%s2132 + $0xb0] sm:$0xff]
      %v2156 = vld [vmem:[%s2132 + $0xb8] sm:$0xff]
      %v2157 = vld [vmem:[%s2132 + $0xc0] sm:$0xff]
      %v2158 = vld [vmem:[%s2132 + $0xc8] sm:$0xff]
      %v2159 = vld [vmem:[%s2132 + $0xd0] sm:$0xff]
      %v2160 = vld [vmem:[%s2132 + $0xd8] sm:$0xff]
      %v2161 = vld [vmem:[%s2132 + $0xe0] sm:$0xff]
      %v2162 = vld [vmem:[%s2132 + $0xe8] sm:$0xff]
      %v2163 = vld [vmem:[%s2132 + $0xf0] sm:$0xff]
      %v2164 = vld [vmem:[%s2132 + $0xf8] sm:$0xff]
      %2165 = vmatprep.subr.mxu0 %v2134
      %2166 = vmatpush1.msra.mxu0 %v2133
      %2167 = vmatprep.subr.mxu0 %v2136
      %2168 = vmatpush1.msra.mxu0 %v2135
      %2169 = vmatprep.subr.mxu0 %v2138
      %2170 = vmatpush1.msra.mxu0 %v2137
      %2171 = vmatprep.subr.mxu0 %v2140
      %2172 = vmatpush1.msra.mxu0 %v2139
      %2173 = vmatprep.subr.mxu0 %v2142
      %2174 = vmatpush1.msra.mxu0 %v2141
      %2175 = vmatprep.subr.mxu0 %v2144
      %2176 = vmatpush1.msra.mxu0 %v2143
      %2177 = vmatprep.subr.mxu0 %v2146
      %2178 = vmatpush1.msra.mxu0 %v2145
      %2179 = vmatprep.subr.mxu0 %v2148
      %2180 = vmatpush1.msra.mxu0 %v2147
      %2181 = vmatprep.subr.mxu0 %v2150
      %2182 = vmatpush1.msra.mxu0 %v2149
      %2183 = vmatprep.subr.mxu0 %v2152
      %2184 = vmatpush1.msra.mxu0 %v2151
      %2185 = vmatprep.subr.mxu0 %v2154
      %2186 = vmatpush1.msra.mxu0 %v2153
      %2187 = vmatprep.subr.mxu0 %v2156
      %2188 = vmatpush1.msra.mxu0 %v2155
      %2189 = vmatprep.subr.mxu0 %v2158
      %2190 = vmatpush1.msra.mxu0 %v2157
      %2191 = vmatprep.subr.mxu0 %v2160
      %2192 = vmatpush1.msra.mxu0 %v2159
      %2193 = vmatprep.subr.mxu0 %v2162
      %2194 = vmatpush1.msra.mxu0 %v2161
      %2195 = vmatprep.subr.mxu0 %v2164
      %2196 = vmatpush1.msra.mxu0 %v2163
      %2197 = vmatprep.subr.mxu0 0.0
      %2198 = vmatpush1.msra.mxu0 0.0
      %2199 = vmatprep.subr.mxu0 0.0
      %2200 = vmatpush1.msra.mxu0 0.0
      %2201 = vmatprep.subr.mxu0 0.0
      %2202 = vmatpush1.msra.mxu0 0.0
      %2203 = vmatprep.subr.mxu0 0.0
      %2204 = vmatpush1.msra.mxu0 0.0
      %2205 = vmatprep.subr.mxu0 0.0
      %2206 = vmatpush1.msra.mxu0 0.0
      %2207 = vmatprep.subr.mxu0 0.0
      %2208 = vmatpush1.msra.mxu0 0.0
      %2209 = vmatprep.subr.mxu0 0.0
      %2210 = vmatpush1.msra.mxu0 0.0
      %2211 = vmatprep.subr.mxu0 0.0
      %2212 = vmatpush1.msra.mxu0 0.0
      %2213 = vmatprep.subr.mxu0 0.0
      %2214 = vmatpush1.msra.mxu0 0.0
      %2215 = vmatprep.subr.mxu0 0.0
      %2216 = vmatpush1.msra.mxu0 0.0
      %2217 = vmatprep.subr.mxu0 0.0
      %2218 = vmatpush1.msra.mxu0 0.0
      %2219 = vmatprep.subr.mxu0 0.0
      %2220 = vmatpush1.msra.mxu0 0.0
      %2221 = vmatprep.subr.mxu0 0.0
      %2222 = vmatpush1.msra.mxu0 0.0
      %2223 = vmatprep.subr.mxu0 0.0
      %2224 = vmatpush1.msra.mxu0 0.0
      %2225 = vmatprep.subr.mxu0 0.0
      %2226 = vmatpush1.msra.mxu0 0.0
      %2227 = vmatprep.subr.mxu0 0.0
      %2228 = vmatpush1.msra.mxu0 0.0
      %2229 = vmatprep.mubr.f32.mxu0 0.0
      %2230 = vmatmul.mubr.f32.gmra.mrb[0].mxu0 %v2129
      %v2231 = vpop.f32.mrb[0].mxu0
      %v2232 = vadd.f32 0.0, %v2231
      %v2233 = vpop.f32.mrb[0].mxu0
      %v2234 = vadd.f32 0.0, %v2233
      %2235 = vdwg.mxu0
      %v2236 = vadd.f32 %v2053, %v2232
      %v2237 = vadd.f32 %v2055, %v2234
      %v2238 = vld [vmem:[%s9] sm:$0x3]
      %v2240 = vlaneseq
      %v2241 = vshrl.u32 %v2240, 7
      %v2242 = vsub.s32 0, %v2241
      %v2243 = vrot.slane %v2238, %v2242
      %v2244 = vlaneseq
      %v2245 = vshrl.u32 %v2244, 7
      %v2246 = vsub.s32 1, %v2245
      %v2247 = vrot.slane %v2238, %v2246
      %v2250 = vadd.f32 %v2236, %v2243
      %v2251 = vadd.f32 %v2237, %v2247
      %v2252 = vmax.f32 %v2250, 0.0
      %v2253 = vmax.f32 %v2251, 0.0
      %v2254 = vld [vmem:[%s10] sm:$0xf]
      %v2256 = vsel %vm1809, %v2254, 0
      %2258 = vmatprep.subr.mxu0 %v2253
      %2259 = vmatpush1.msra.mxu0 %v2252
      %2260 = vmatprep.subr.mxu0 0.0
      %2261 = vmatpush1.msra.mxu0 0.0
      %2262 = vmatprep.subr.mxu0 0.0
      %2263 = vmatpush1.msra.mxu0 0.0
      %2264 = vmatprep.subr.mxu0 0.0
      %2265 = vmatpush1.msra.mxu0 0.0
      %2266 = vmatprep.subr.mxu0 0.0
      %2267 = vmatpush1.msra.mxu0 0.0
      %2268 = vmatprep.subr.mxu0 0.0
      %2269 = vmatpush1.msra.mxu0 0.0
      %2270 = vmatprep.subr.mxu0 0.0
      %2271 = vmatpush1.msra.mxu0 0.0
      %2272 = vmatprep.subr.mxu0 0.0
      %2273 = vmatpush1.msra.mxu0 0.0
      %2274 = vmatprep.subr.mxu0 0.0
      %2275 = vmatpush1.msra.mxu0 0.0
      %2276 = vmatprep.subr.mxu0 0.0
      %2277 = vmatpush1.msra.mxu0 0.0
      %2278 = vmatprep.subr.mxu0 0.0
      %2279 = vmatpush1.msra.mxu0 0.0
      %2280 = vmatprep.subr.mxu0 0.0
      %2281 = vmatpush1.msra.mxu0 0.0
      %2282 = vmatprep.subr.mxu0 0.0
      %2283 = vmatpush1.msra.mxu0 0.0
      %2284 = vmatprep.subr.mxu0 0.0
      %2285 = vmatpush1.msra.mxu0 0.0
      %2286 = vmatprep.subr.mxu0 0.0
      %2287 = vmatpush1.msra.mxu0 0.0
      %2288 = vmatprep.subr.mxu0 0.0
      %2289 = vmatpush1.msra.mxu0 0.0
      %2290 = vmatprep.subr.mxu0 0.0
      %2291 = vmatpush1.msra.mxu0 0.0
      %2292 = vmatprep.subr.mxu0 0.0
      %2293 = vmatpush1.msra.mxu0 0.0
      %2294 = vmatprep.subr.mxu0 0.0
      %2295 = vmatpush1.msra.mxu0 0.0
      %2296 = vmatprep.subr.mxu0 0.0
      %2297 = vmatpush1.msra.mxu0 0.0
      %2298 = vmatprep.subr.mxu0 0.0
      %2299 = vmatpush1.msra.mxu0 0.0
      %2300 = vmatprep.subr.mxu0 0.0
      %2301 = vmatpush1.msra.mxu0 0.0
      %2302 = vmatprep.subr.mxu0 0.0
      %2303 = vmatpush1.msra.mxu0 0.0
      %2304 = vmatprep.subr.mxu0 0.0
      %2305 = vmatpush1.msra.mxu0 0.0
      %2306 = vmatprep.subr.mxu0 0.0
      %2307 = vmatpush1.msra.mxu0 0.0
      %2308 = vmatprep.subr.mxu0 0.0
      %2309 = vmatpush1.msra.mxu0 0.0
      %2310 = vmatprep.subr.mxu0 0.0
      %2311 = vmatpush1.msra.mxu0 0.0
      %2312 = vmatprep.subr.mxu0 0.0
      %2313 = vmatpush1.msra.mxu0 0.0
      %2314 = vmatprep.subr.mxu0 0.0
      %2315 = vmatpush1.msra.mxu0 0.0
      %2316 = vmatprep.subr.mxu0 0.0
      %2317 = vmatpush1.msra.mxu0 0.0
      %2318 = vmatprep.subr.mxu0 0.0
      %2319 = vmatpush1.msra.mxu0 0.0
      %2320 = vmatprep.subr.mxu0 0.0
      %2321 = vmatpush1.msra.mxu0 0.0
      %2322 = vmatprep.mubr.f32.mxu0 0.0
      %2323 = vmatmul.mubr.f32.gmra.mrb[0].mxu0 %v2256
      %v2324 = vpop.f32.mrb[0].mxu0
      %v2325 = vadd.f32 0.0, %v2324
      %v2326 = vpop.f32.mrb[0].mxu0
      %v2327 = vadd.f32 0.0, %v2326
      %2328 = vdwg.mxu0
      %s2329 = scalar_lea.vmem %s10, 4
      %v2330 = vld [vmem:[%s2329] sm:$0xf]
      %v2332 = vsel %vm1809, %v2330, 0
      %2334 = vmatprep.subr.mxu0 %v2253
      %2335 = vmatpush1.msra.mxu0 %v2252
      %2336 = vmatprep.subr.mxu0 0.0
      %2337 = vmatpush1.msra.mxu0 0.0
      %2338 = vmatprep.subr.mxu0 0.0
      %2339 = vmatpush1.msra.mxu0 0.0
      %2340 = vmatprep.subr.mxu0 0.0
      %2341 = vmatpush1.msra.mxu0 0.0
      %2342 = vmatprep.subr.mxu0 0.0
      %2343 = vmatpush1.msra.mxu0 0.0
      %2344 = vmatprep.subr.mxu0 0.0
      %2345 = vmatpush1.msra.mxu0 0.0
      %2346 = vmatprep.subr.mxu0 0.0
      %2347 = vmatpush1.msra.mxu0 0.0
      %2348 = vmatprep.subr.mxu0 0.0
      %2349 = vmatpush1.msra.mxu0 0.0
      %2350 = vmatprep.subr.mxu0 0.0
      %2351 = vmatpush1.msra.mxu0 0.0
      %2352 = vmatprep.subr.mxu0 0.0
      %2353 = vmatpush1.msra.mxu0 0.0
      %2354 = vmatprep.subr.mxu0 0.0
      %2355 = vmatpush1.msra.mxu0 0.0
      %2356 = vmatprep.subr.mxu0 0.0
      %2357 = vmatpush1.msra.mxu0 0.0
      %2358 = vmatprep.subr.mxu0 0.0
      %2359 = vmatpush1.msra.mxu0 0.0
      %2360 = vmatprep.subr.mxu0 0.0
      %2361 = vmatpush1.msra.mxu0 0.0
      %2362 = vmatprep.subr.mxu0 0.0
      %2363 = vmatpush1.msra.mxu0 0.0
      %2364 = vmatprep.subr.mxu0 0.0
      %2365 = vmatpush1.msra.mxu0 0.0
      %2366 = vmatprep.subr.mxu0 0.0
      %2367 = vmatpush1.msra.mxu0 0.0
      %2368 = vmatprep.subr.mxu0 0.0
      %2369 = vmatpush1.msra.mxu0 0.0
      %2370 = vmatprep.subr.mxu0 0.0
      %2371 = vmatpush1.msra.mxu0 0.0
      %2372 = vmatprep.subr.mxu0 0.0
      %2373 = vmatpush1.msra.mxu0 0.0
      %2374 = vmatprep.subr.mxu0 0.0
      %2375 = vmatpush1.msra.mxu0 0.0
      %2376 = vmatprep.subr.mxu0 0.0
      %2377 = vmatpush1.msra.mxu0 0.0
      %2378 = vmatprep.subr.mxu0 0.0
      %2379 = vmatpush1.msra.mxu0 0.0
      %2380 = vmatprep.subr.mxu0 0.0
      %2381 = vmatpush1.msra.mxu0 0.0
      %2382 = vmatprep.subr.mxu0 0.0
      %2383 = vmatpush1.msra.mxu0 0.0
      %2384 = vmatprep.subr.mxu0 0.0
      %2385 = vmatpush1.msra.mxu0 0.0
      %2386 = vmatprep.subr.mxu0 0.0
      %2387 = vmatpush1.msra.mxu0 0.0
      %2388 = vmatprep.subr.mxu0 0.0
      %2389 = vmatpush1.msra.mxu0 0.0
      %2390 = vmatprep.subr.mxu0 0.0
      %2391 = vmatpush1.msra.mxu0 0.0
      %2392 = vmatprep.subr.mxu0 0.0
      %2393 = vmatpush1.msra.mxu0 0.0
      %2394 = vmatprep.subr.mxu0 0.0
      %2395 = vmatpush1.msra.mxu0 0.0
      %2396 = vmatprep.subr.mxu0 0.0
      %2397 = vmatpush1.msra.mxu0 0.0
      %2398 = vmatprep.mubr.f32.mxu0 0.0
      %2399 = vmatmul.mubr.f32.gmra.mrb[0].mxu0 %v2332
      %v2400 = vpop.f32.mrb[0].mxu0
      %v2401 = vadd.f32 0.0, %v2400
      %v2402 = vpop.f32.mrb[0].mxu0
      %v2403 = vadd.f32 0.0, %v2402
      %2404 = vdwg.mxu0
      %v2405 = vmax.f32 %v2325, %v2401
      %v2406 = vmax.f32 %v2327, %v2403
      %v2407 = vld [vmem:[%s11] sm:$0xff]
      %v2408 = vld [vmem:[%s11 + $0x8] sm:$0xff]
      %v2409 = vld [vmem:[%s11 + $0x10] sm:$0xff]
      %v2410 = vld [vmem:[%s11 + $0x18] sm:$0xff]
      %v2411 = vld [vmem:[%s11 + $0x20] sm:$0xff]
      %v2412 = vld [vmem:[%s11 + $0x28] sm:$0xff]
      %v2413 = vld [vmem:[%s11 + $0x30] sm:$0xff]
      %v2414 = vld [vmem:[%s11 + $0x38] sm:$0xff]
      %v2415 = vld [vmem:[%s11 + $0x40] sm:$0xff]
      %v2416 = vld [vmem:[%s11 + $0x48] sm:$0xff]
      %v2417 = vld [vmem:[%s11 + $0x50] sm:$0xff]
      %v2418 = vld [vmem:[%s11 + $0x58] sm:$0xff]
      %v2419 = vld [vmem:[%s11 + $0x60] sm:$0xff]
      %v2420 = vld [vmem:[%s11 + $0x68] sm:$0xff]
      %v2421 = vld [vmem:[%s11 + $0x70] sm:$0xff]
      %v2422 = vld [vmem:[%s11 + $0x78] sm:$0xff]
      %v2423 = vld [vmem:[%s11 + $0x80] sm:$0xff]
      %v2424 = vld [vmem:[%s11 + $0x88] sm:$0xff]
      %v2425 = vld [vmem:[%s11 + $0x90] sm:$0xff]
      %v2426 = vld [vmem:[%s11 + $0x98] sm:$0xff]
      %v2427 = vld [vmem:[%s11 + $0xa0] sm:$0xff]
      %v2428 = vld [vmem:[%s11 + $0xa8] sm:$0xff]
      %v2429 = vld [vmem:[%s11 + $0xb0] sm:$0xff]
      %v2430 = vld [vmem:[%s11 + $0xb8] sm:$0xff]
      %v2431 = vld [vmem:[%s11 + $0xc0] sm:$0xff]
      %v2432 = vld [vmem:[%s11 + $0xc8] sm:$0xff]
      %v2433 = vld [vmem:[%s11 + $0xd0] sm:$0xff]
      %v2434 = vld [vmem:[%s11 + $0xd8] sm:$0xff]
      %v2435 = vld [vmem:[%s11 + $0xe0] sm:$0xff]
      %v2436 = vld [vmem:[%s11 + $0xe8] sm:$0xff]
      %v2437 = vld [vmem:[%s11 + $0xf0] sm:$0xff]
      %v2438 = vld [vmem:[%s11 + $0xf8] sm:$0xff]
      %2439 = vmatprep.subr.mxu0 0.0
      %2440 = vmatpush1.msra.mxu0 %v2407
      %2441 = vmatprep.subr.mxu0 0.0
      %2442 = vmatpush1.msra.mxu0 %v2408
      %2443 = vmatprep.subr.mxu0 0.0
      %2444 = vmatpush1.msra.mxu0 %v2409
      %2445 = vmatprep.subr.mxu0 0.0
      %2446 = vmatpush1.msra.mxu0 %v2410
      %2447 = vmatprep.subr.mxu0 0.0
      %2448 = vmatpush1.msra.mxu0 %v2411
      %2449 = vmatprep.subr.mxu0 0.0
      %2450 = vmatpush1.msra.mxu0 %v2412
      %2451 = vmatprep.subr.mxu0 0.0
      %2452 = vmatpush1.msra.mxu0 %v2413
      %2453 = vmatprep.subr.mxu0 0.0
      %2454 = vmatpush1.msra.mxu0 %v2414
      %2455 = vmatprep.subr.mxu0 0.0
      %2456 = vmatpush1.msra.mxu0 %v2415
      %2457 = vmatprep.subr.mxu0 0.0
      %2458 = vmatpush1.msra.mxu0 %v2416
      %2459 = vmatprep.subr.mxu0 0.0
      %2460 = vmatpush1.msra.mxu0 %v2417
      %2461 = vmatprep.subr.mxu0 0.0
      %2462 = vmatpush1.msra.mxu0 %v2418
      %2463 = vmatprep.subr.mxu0 0.0
      %2464 = vmatpush1.msra.mxu0 %v2419
      %2465 = vmatprep.subr.mxu0 0.0
      %2466 = vmatpush1.msra.mxu0 %v2420
      %2467 = vmatprep.subr.mxu0 0.0
      %2468 = vmatpush1.msra.mxu0 %v2421
      %2469 = vmatprep.subr.mxu0 0.0
      %2470 = vmatpush1.msra.mxu0 %v2422
      %2471 = vmatprep.subr.mxu0 0.0
      %2472 = vmatpush1.msra.mxu0 %v2423
      %2473 = vmatprep.subr.mxu0 0.0
      %2474 = vmatpush1.msra.mxu0 %v2424
      %2475 = vmatprep.subr.mxu0 0.0
      %2476 = vmatpush1.msra.mxu0 %v2425
      %2477 = vmatprep.subr.mxu0 0.0
      %2478 = vmatpush1.msra.mxu0 %v2426
      %2479 = vmatprep.subr.mxu0 0.0
      %2480 = vmatpush1.msra.mxu0 %v2427
      %2481 = vmatprep.subr.mxu0 0.0
      %2482 = vmatpush1.msra.mxu0 %v2428
      %2483 = vmatprep.subr.mxu0 0.0
      %2484 = vmatpush1.msra.mxu0 %v2429
      %2485 = vmatprep.subr.mxu0 0.0
      %2486 = vmatpush1.msra.mxu0 %v2430
      %2487 = vmatprep.subr.mxu0 0.0
      %2488 = vmatpush1.msra.mxu0 %v2431
      %2489 = vmatprep.subr.mxu0 0.0
      %2490 = vmatpush1.msra.mxu0 %v2432
      %2491 = vmatprep.subr.mxu0 0.0
      %2492 = vmatpush1.msra.mxu0 %v2433
      %2493 = vmatprep.subr.mxu0 0.0
      %2494 = vmatpush1.msra.mxu0 %v2434
      %2495 = vmatprep.subr.mxu0 0.0
      %2496 = vmatpush1.msra.mxu0 %v2435
      %2497 = vmatprep.subr.mxu0 0.0
      %2498 = vmatpush1.msra.mxu0 %v2436
      %2499 = vmatprep.subr.mxu0 0.0
      %2500 = vmatpush1.msra.mxu0 %v2437
      %2501 = vmatprep.subr.mxu0 0.0
      %2502 = vmatpush1.msra.mxu0 %v2438
      %2503 = vmatprep.mubr.f32.mxu0 %v2406
      %2504 = vmatmul.mubr.f32.gmra.mrb[0].mxu0 %v2405
      %v2505 = vpop.f32.mrb[0].mxu0
      %v2506 = vadd.f32 0.0, %v2505
      %v2507 = vpop.f32.mrb[0].mxu0
      %2508 = vdwg.mxu0
      %s2509 = scalar_lea.vmem %s11, 256
      %v2510 = vld [vmem:[%s2509] sm:$0xff]
      %v2511 = vld [vmem:[%s2509 + $0x8] sm:$0xff]
      %v2512 = vld [vmem:[%s2509 + $0x10] sm:$0xff]
      %v2513 = vld [vmem:[%s2509 + $0x18] sm:$0xff]
      %v2514 = vld [vmem:[%s2509 + $0x20] sm:$0xff]
      %v2515 = vld [vmem:[%s2509 + $0x28] sm:$0xff]
      %v2516 = vld [vmem:[%s2509 + $0x30] sm:$0xff]
      %v2517 = vld [vmem:[%s2509 + $0x38] sm:$0xff]
      %v2518 = vld [vmem:[%s2509 + $0x40] sm:$0xff]
      %v2519 = vld [vmem:[%s2509 + $0x48] sm:$0xff]
      %v2520 = vld [vmem:[%s2509 + $0x50] sm:$0xff]
      %v2521 = vld [vmem:[%s2509 + $0x58] sm:$0xff]
      %v2522 = vld [vmem:[%s2509 + $0x60] sm:$0xff]
      %v2523 = vld [vmem:[%s2509 + $0x68] sm:$0xff]
      %v2524 = vld [vmem:[%s2509 + $0x70] sm:$0xff]
      %v2525 = vld [vmem:[%s2509 + $0x78] sm:$0xff]
      %v2526 = vld [vmem:[%s2509 + $0x80] sm:$0xff]
      %v2527 = vld [vmem:[%s2509 + $0x88] sm:$0xff]
      %v2528 = vld [vmem:[%s2509 + $0x90] sm:$0xff]
      %v2529 = vld [vmem:[%s2509 + $0x98] sm:$0xff]
      %v2530 = vld [vmem:[%s2509 + $0xa0] sm:$0xff]
      %v2531 = vld [vmem:[%s2509 + $0xa8] sm:$0xff]
      %v2532 = vld [vmem:[%s2509 + $0xb0] sm:$0xff]
      %v2533 = vld [vmem:[%s2509 + $0xb8] sm:$0xff]
      %v2534 = vld [vmem:[%s2509 + $0xc0] sm:$0xff]
      %v2535 = vld [vmem:[%s2509 + $0xc8] sm:$0xff]
      %v2536 = vld [vmem:[%s2509 + $0xd0] sm:$0xff]
      %v2537 = vld [vmem:[%s2509 + $0xd8] sm:$0xff]
      %v2538 = vld [vmem:[%s2509 + $0xe0] sm:$0xff]
      %v2539 = vld [vmem:[%s2509 + $0xe8] sm:$0xff]
      %v2540 = vld [vmem:[%s2509 + $0xf0] sm:$0xff]
      %v2541 = vld [vmem:[%s2509 + $0xf8] sm:$0xff]
      %2542 = vmatprep.subr.mxu0 0.0
      %2543 = vmatpush1.msra.mxu0 %v2510
      %2544 = vmatprep.subr.mxu0 0.0
      %2545 = vmatpush1.msra.mxu0 %v2511
      %2546 = vmatprep.subr.mxu0 0.0
      %2547 = vmatpush1.msra.mxu0 %v2512
      %2548 = vmatprep.subr.mxu0 0.0
      %2549 = vmatpush1.msra.mxu0 %v2513
      %2550 = vmatprep.subr.mxu0 0.0
      %2551 = vmatpush1.msra.mxu0 %v2514
      %2552 = vmatprep.subr.mxu0 0.0
      %2553 = vmatpush1.msra.mxu0 %v2515
      %2554 = vmatprep.subr.mxu0 0.0
      %2555 = vmatpush1.msra.mxu0 %v2516
      %2556 = vmatprep.subr.mxu0 0.0
      %2557 = vmatpush1.msra.mxu0 %v2517
      %2558 = vmatprep.subr.mxu0 0.0
      %2559 = vmatpush1.msra.mxu0 %v2518
      %2560 = vmatprep.subr.mxu0 0.0
      %2561 = vmatpush1.msra.mxu0 %v2519
      %2562 = vmatprep.subr.mxu0 0.0
      %2563 = vmatpush1.msra.mxu0 %v2520
      %2564 = vmatprep.subr.mxu0 0.0
      %2565 = vmatpush1.msra.mxu0 %v2521
      %2566 = vmatprep.subr.mxu0 0.0
      %2567 = vmatpush1.msra.mxu0 %v2522
      %2568 = vmatprep.subr.mxu0 0.0
      %2569 = vmatpush1.msra.mxu0 %v2523
      %2570 = vmatprep.subr.mxu0 0.0
      %2571 = vmatpush1.msra.mxu0 %v2524
      %2572 = vmatprep.subr.mxu0 0.0
      %2573 = vmatpush1.msra.mxu0 %v2525
      %2574 = vmatprep.subr.mxu0 0.0
      %2575 = vmatpush1.msra.mxu0 %v2526
      %2576 = vmatprep.subr.mxu0 0.0
      %2577 = vmatpush1.msra.mxu0 %v2527
      %2578 = vmatprep.subr.mxu0 0.0
      %2579 = vmatpush1.msra.mxu0 %v2528
      %2580 = vmatprep.subr.mxu0 0.0
      %2581 = vmatpush1.msra.mxu0 %v2529
      %2582 = vmatprep.subr.mxu0 0.0
      %2583 = vmatpush1.msra.mxu0 %v2530
      %2584 = vmatprep.subr.mxu0 0.0
      %2585 = vmatpush1.msra.mxu0 %v2531
      %2586 = vmatprep.subr.mxu0 0.0
      %2587 = vmatpush1.msra.mxu0 %v2532
      %2588 = vmatprep.subr.mxu0 0.0
      %2589 = vmatpush1.msra.mxu0 %v2533
      %2590 = vmatprep.subr.mxu0 0.0
      %2591 = vmatpush1.msra.mxu0 %v2534
      %2592 = vmatprep.subr.mxu0 0.0
      %2593 = vmatpush1.msra.mxu0 %v2535
      %2594 = vmatprep.subr.mxu0 0.0
      %2595 = vmatpush1.msra.mxu0 %v2536
      %2596 = vmatprep.subr.mxu0 0.0
      %2597 = vmatpush1.msra.mxu0 %v2537
      %2598 = vmatprep.subr.mxu0 0.0
      %2599 = vmatpush1.msra.mxu0 %v2538
      %2600 = vmatprep.subr.mxu0 0.0
      %2601 = vmatpush1.msra.mxu0 %v2539
      %2602 = vmatprep.subr.mxu0 0.0
      %2603 = vmatpush1.msra.mxu0 %v2540
      %2604 = vmatprep.subr.mxu0 0.0
      %2605 = vmatpush1.msra.mxu0 %v2541
      %2606 = vmatprep.mubr.f32.mxu0 %v2406
      %2607 = vmatmul.mubr.f32.gmra.mrb[0].mxu0 %v2405
      %v2608 = vpop.f32.mrb[0].mxu0
      %v2609 = vadd.f32 0.0, %v2608
      %v2610 = vpop.f32.mrb[0].mxu0
      %2611 = vdwg.mxu0
      %v2612 = vmax.f32 %v2506, %v2609
      %v2613 = vld [vmem:[%s13] sm:$0xf]
      %v2614 = vld [vmem:[%s12] sm:$0xff]
      %v2615 = vld [vmem:[%s12 + $0x8] sm:$0xff]
      %v2616 = vld [vmem:[%s12 + $0x10] sm:$0xff]
      %v2617 = vld [vmem:[%s12 + $0x18] sm:$0xff]
      %v2618 = vld [vmem:[%s12 + $0x20] sm:$0xff]
      %v2619 = vld [vmem:[%s12 + $0x28] sm:$0xff]
      %v2620 = vld [vmem:[%s12 + $0x30] sm:$0xff]
      %v2621 = vld [vmem:[%s12 + $0x38] sm:$0xff]
      %v2622 = vld [vmem:[%s12 + $0x40] sm:$0xff]
      %v2623 = vld [vmem:[%s12 + $0x48] sm:$0xff]
      %v2624 = vld [vmem:[%s12 + $0x50] sm:$0xff]
      %v2625 = vld [vmem:[%s12 + $0x58] sm:$0xff]
      %v2626 = vld [vmem:[%s12 + $0x60] sm:$0xff]
      %v2627 = vld [vmem:[%s12 + $0x68] sm:$0xff]
      %v2628 = vld [vmem:[%s12 + $0x70] sm:$0xff]
      %v2629 = vld [vmem:[%s12 + $0x78] sm:$0xff]
      %v2630 = vld [vmem:[%s12 + $0x80] sm:$0xff]
      %v2631 = vld [vmem:[%s12 + $0x88] sm:$0xff]
      %v2632 = vld [vmem:[%s12 + $0x90] sm:$0xff]
      %v2633 = vld [vmem:[%s12 + $0x98] sm:$0xff]
      %v2634 = vld [vmem:[%s12 + $0xa0] sm:$0xff]
      %v2635 = vld [vmem:[%s12 + $0xa8] sm:$0xff]
      %v2636 = vld [vmem:[%s12 + $0xb0] sm:$0xff]
      %v2637 = vld [vmem:[%s12 + $0xb8] sm:$0xff]
      %v2638 = vld [vmem:[%s12 + $0xc0] sm:$0xff]
      %v2639 = vld [vmem:[%s12 + $0xc8] sm:$0xff]
      %v2640 = vld [vmem:[%s12 + $0xd0] sm:$0xff]
      %v2641 = vld [vmem:[%s12 + $0xd8] sm:$0xff]
      %v2642 = vld [vmem:[%s12 + $0xe0] sm:$0xff]
      %v2643 = vld [vmem:[%s12 + $0xe8] sm:$0xff]
      %v2644 = vld [vmem:[%s12 + $0xf0] sm:$0xff]
      %v2645 = vld [vmem:[%s12 + $0xf8] sm:$0xff]
      %v2646 = vld [vmem:[%s12 + $0x100] sm:$0xff]
      %v2647 = vld [vmem:[%s12 + $0x108] sm:$0xff]
      %v2648 = vld [vmem:[%s12 + $0x110] sm:$0xff]
      %v2649 = vld [vmem:[%s12 + $0x118] sm:$0xff]
      %v2650 = vld [vmem:[%s12 + $0x120] sm:$0xff]
      %v2651 = vld [vmem:[%s12 + $0x128] sm:$0xff]
      %v2652 = vld [vmem:[%s12 + $0x130] sm:$0xff]
      %v2653 = vld [vmem:[%s12 + $0x138] sm:$0xff]
      %v2654 = vld [vmem:[%s12 + $0x140] sm:$0xff]
      %v2655 = vld [vmem:[%s12 + $0x148] sm:$0xff]
      %v2656 = vld [vmem:[%s12 + $0x150] sm:$0xff]
      %v2657 = vld [vmem:[%s12 + $0x158] sm:$0xff]
      %v2658 = vld [vmem:[%s12 + $0x160] sm:$0xff]
      %v2659 = vld [vmem:[%s12 + $0x168] sm:$0xff]
      %v2660 = vld [vmem:[%s12 + $0x170] sm:$0xff]
      %v2661 = vld [vmem:[%s12 + $0x178] sm:$0xff]
      %v2662 = vld [vmem:[%s12 + $0x180] sm:$0xff]
      %v2663 = vld [vmem:[%s12 + $0x188] sm:$0xff]
      %v2664 = vld [vmem:[%s12 + $0x190] sm:$0xff]
      %v2665 = vld [vmem:[%s12 + $0x198] sm:$0xff]
      %v2666 = vld [vmem:[%s12 + $0x1a0] sm:$0xff]
      %v2667 = vld [vmem:[%s12 + $0x1a8] sm:$0xff]
      %v2668 = vld [vmem:[%s12 + $0x1b0] sm:$0xff]
      %v2669 = vld [vmem:[%s12 + $0x1b8] sm:$0xff]
      %v2670 = vld [vmem:[%s12 + $0x1c0] sm:$0xff]
      %v2671 = vld [vmem:[%s12 + $0x1c8] sm:$0xff]
      %v2672 = vld [vmem:[%s12 + $0x1d0] sm:$0xff]
      %v2673 = vld [vmem:[%s12 + $0x1d8] sm:$0xff]
      %v2674 = vld [vmem:[%s12 + $0x1e0] sm:$0xff]
      %v2675 = vld [vmem:[%s12 + $0x1e8] sm:$0xff]
      %v2676 = vld [vmem:[%s12 + $0x1f0] sm:$0xff]
      %v2677 = vld [vmem:[%s12 + $0x1f8] sm:$0xff]
      %2678 = vmatprep.subr.mxu0 %v2615
      %2679 = vmatpush1.msra.mxu0 %v2614
      %2680 = vmatprep.subr.mxu0 %v2619
      %2681 = vmatpush1.msra.mxu0 %v2618
      %2682 = vmatprep.subr.mxu0 %v2623
      %2683 = vmatpush1.msra.mxu0 %v2622
      %2684 = vmatprep.subr.mxu0 %v2627
      %2685 = vmatpush1.msra.mxu0 %v2626
      %2686 = vmatprep.subr.mxu0 %v2631
      %2687 = vmatpush1.msra.mxu0 %v2630
      %2688 = vmatprep.subr.mxu0 %v2635
      %2689 = vmatpush1.msra.mxu0 %v2634
      %2690 = vmatprep.subr.mxu0 %v2639
      %2691 = vmatpush1.msra.mxu0 %v2638
      %2692 = vmatprep.subr.mxu0 %v2643
      %2693 = vmatpush1.msra.mxu0 %v2642
      %2694 = vmatprep.subr.mxu0 %v2647
      %2695 = vmatpush1.msra.mxu0 %v2646
      %2696 = vmatprep.subr.mxu0 %v2651
      %2697 = vmatpush1.msra.mxu0 %v2650
      %2698 = vmatprep.subr.mxu0 %v2655
      %2699 = vmatpush1.msra.mxu0 %v2654
      %2700 = vmatprep.subr.mxu0 %v2659
      %2701 = vmatpush1.msra.mxu0 %v2658
      %2702 = vmatprep.subr.mxu0 %v2663
      %2703 = vmatpush1.msra.mxu0 %v2662
      %2704 = vmatprep.subr.mxu0 %v2667
      %2705 = vmatpush1.msra.mxu0 %v2666
      %2706 = vmatprep.subr.mxu0 %v2671
      %2707 = vmatpush1.msra.mxu0 %v2670
      %2708 = vmatprep.subr.mxu0 %v2675
      %2709 = vmatpush1.msra.mxu0 %v2674
      %2710 = vmatprep.subr.mxu0 0.0
      %2711 = vmatpush1.msra.mxu0 0.0
      %2712 = vmatprep.subr.mxu0 0.0
      %2713 = vmatpush1.msra.mxu0 0.0
      %2714 = vmatprep.subr.mxu0 0.0
      %2715 = vmatpush1.msra.mxu0 0.0
      %2716 = vmatprep.subr.mxu0 0.0
      %2717 = vmatpush1.msra.mxu0 0.0
      %2718 = vmatprep.subr.mxu0 0.0
      %2719 = vmatpush1.msra.mxu0 0.0
      %2720 = vmatprep.subr.mxu0 0.0
      %2721 = vmatpush1.msra.mxu0 0.0
      %2722 = vmatprep.subr.mxu0 0.0
      %2723 = vmatpush1.msra.mxu0 0.0
      %2724 = vmatprep.subr.mxu0 0.0
      %2725 = vmatpush1.msra.mxu0 0.0
      %2726 = vmatprep.subr.mxu0 0.0
      %2727 = vmatpush1.msra.mxu0 0.0
      %2728 = vmatprep.subr.mxu0 0.0
      %2729 = vmatpush1.msra.mxu0 0.0
      %2730 = vmatprep.subr.mxu0 0.0
      %2731 = vmatpush1.msra.mxu0 0.0
      %2732 = vmatprep.subr.mxu0 0.0
      %2733 = vmatpush1.msra.mxu0 0.0
      %2734 = vmatprep.subr.mxu0 0.0
      %2735 = vmatpush1.msra.mxu0 0.0
      %2736 = vmatprep.subr.mxu0 0.0
      %2737 = vmatpush1.msra.mxu0 0.0
      %2738 = vmatprep.subr.mxu0 0.0
      %2739 = vmatpush1.msra.mxu0 0.0
      %2740 = vmatprep.subr.mxu0 0.0
      %2741 = vmatpush1.msra.mxu0 0.0
      %2742 = vmatprep.mubr.f32.mxu0 0.0
      %2743 = vmatmul.mubr.f32.gmra.mrb[0].mxu0 %v2612
      %v2744 = vpop.f32.mrb[0].mxu0
      %v2745 = vadd.f32 0.0, %v2744
      %v2746 = vpop.f32.mrb[0].mxu0
      %v2747 = vadd.f32 0.0, %v2746
      %2748 = vdwg.mxu0
      %2749 = vmatprep.subr.mxu0 %v2617
      %2750 = vmatpush1.msra.mxu0 %v2616
      %2751 = vmatprep.subr.mxu0 %v2621
      %2752 = vmatpush1.msra.mxu0 %v2620
      %2753 = vmatprep.subr.mxu0 %v2625
      %2754 = vmatpush1.msra.mxu0 %v2624
      %2755 = vmatprep.subr.mxu0 %v2629
      %2756 = vmatpush1.msra.mxu0 %v2628
      %2757 = vmatprep.subr.mxu0 %v2633
      %2758 = vmatpush1.msra.mxu0 %v2632
      %2759 = vmatprep.subr.mxu0 %v2637
      %2760 = vmatpush1.msra.mxu0 %v2636
      %2761 = vmatprep.subr.mxu0 %v2641
      %2762 = vmatpush1.msra.mxu0 %v2640
      %2763 = vmatprep.subr.mxu0 %v2645
      %2764 = vmatpush1.msra.mxu0 %v2644
      %2765 = vmatprep.subr.mxu0 %v2649
      %2766 = vmatpush1.msra.mxu0 %v2648
      %2767 = vmatprep.subr.mxu0 %v2653
      %2768 = vmatpush1.msra.mxu0 %v2652
      %2769 = vmatprep.subr.mxu0 %v2657
      %2770 = vmatpush1.msra.mxu0 %v2656
      %2771 = vmatprep.subr.mxu0 %v2661
      %2772 = vmatpush1.msra.mxu0 %v2660
      %2773 = vmatprep.subr.mxu0 %v2665
      %2774 = vmatpush1.msra.mxu0 %v2664
      %2775 = vmatprep.subr.mxu0 %v2669
      %2776 = vmatpush1.msra.mxu0 %v2668
      %2777 = vmatprep.subr.mxu0 %v2673
      %2778 = vmatpush1.msra.mxu0 %v2672
      %2779 = vmatprep.subr.mxu0 %v2677
      %2780 = vmatpush1.msra.mxu0 %v2676
      %2781 = vmatprep.subr.mxu0 0.0
      %2782 = vmatpush1.msra.mxu0 0.0
      %2783 = vmatprep.subr.mxu0 0.0
      %2784 = vmatpush1.msra.mxu0 0.0
      %2785 = vmatprep.subr.mxu0 0.0
      %2786 = vmatpush1.msra.mxu0 0.0
      %2787 = vmatprep.subr.mxu0 0.0
      %2788 = vmatpush1.msra.mxu0 0.0
      %2789 = vmatprep.subr.mxu0 0.0
      %2790 = vmatpush1.msra.mxu0 0.0
      %2791 = vmatprep.subr.mxu0 0.0
      %2792 = vmatpush1.msra.mxu0 0.0
      %2793 = vmatprep.subr.mxu0 0.0
      %2794 = vmatpush1.msra.mxu0 0.0
      %2795 = vmatprep.subr.mxu0 0.0
      %2796 = vmatpush1.msra.mxu0 0.0
      %2797 = vmatprep.subr.mxu0 0.0
      %2798 = vmatpush1.msra.mxu0 0.0
      %2799 = vmatprep.subr.mxu0 0.0
      %2800 = vmatpush1.msra.mxu0 0.0
      %2801 = vmatprep.subr.mxu0 0.0
      %2802 = vmatpush1.msra.mxu0 0.0
      %2803 = vmatprep.subr.mxu0 0.0
      %2804 = vmatpush1.msra.mxu0 0.0
      %2805 = vmatprep.subr.mxu0 0.0
      %2806 = vmatpush1.msra.mxu0 0.0
      %2807 = vmatprep.subr.mxu0 0.0
      %2808 = vmatpush1.msra.mxu0 0.0
      %2809 = vmatprep.subr.mxu0 0.0
      %2810 = vmatpush1.msra.mxu0 0.0
      %2811 = vmatprep.subr.mxu0 0.0
      %2812 = vmatpush1.msra.mxu0 0.0
      %2813 = vmatprep.mubr.f32.mxu0 0.0
      %2814 = vmatmul.mubr.f32.gmra.mrb[0].mxu0 %v2612
      %v2815 = vpop.f32.mrb[0].mxu0
      %v2816 = vadd.f32 0.0, %v2815
      %v2817 = vpop.f32.mrb[0].mxu0
      %v2818 = vadd.f32 0.0, %v2817
      %2819 = vdwg.mxu0
      %v2824 = vcombine.low %v2745, %v2747
      %v2825 = vcombine.low %v2816, %v2818
      %v2827 = vunpack.c.l.s4 1966171168
      %v2828 = vunpack.c.0.s8 %v2827
      %v2829 = vlaneseq
      %v2830 = vshrl.u32 %v2829, 7
      %v2831 = vsub.s32 %v2828, %v2830
      %v2832 = vrot.slane %v2824, %v2831
      %v2834 = vunpack.c.l.s4 1966171168
      %v2835 = vunpack.c.0.s8 %v2834
      %v2836 = vlaneseq
      %v2837 = vshrl.u32 %v2836, 7
      %v2838 = vsub.s32 %v2835, %v2837
      %v2839 = vrot.slane %v2825, %v2838
      %v2840 = vcombine.low %v2832, %v2839
      %v2842 = vunpack.c.l.s4 1966171168
      %v2843 = vunpack.c.0.s8 %v2842
      %v2844 = vlaneseq
      %v2845 = vshrl.u32 %v2844, 7
      %v2846 = vsub.s32 %v2843, %v2845
      %v2847 = vrot.slane %v2840, %v2846
      %v2849 = vadd.f32 %v2613, %v2847
      %s2850 = scalar_lea.vmem %s12, 512
      %v2851 = vld [vmem:[%s2850] sm:$0xff]
      %v2852 = vld [vmem:[%s2850 + $0x8] sm:$0xff]
      %v2853 = vld [vmem:[%s2850 + $0x10] sm:$0xff]
      %v2854 = vld [vmem:[%s2850 + $0x18] sm:$0xff]
      %v2855 = vld [vmem:[%s2850 + $0x20] sm:$0xff]
      %v2856 = vld [vmem:[%s2850 + $0x28] sm:$0xff]
      %v2857 = vld [vmem:[%s2850 + $0x30] sm:$0xff]
      %v2858 = vld [vmem:[%s2850 + $0x38] sm:$0xff]
      %v2859 = vld [vmem:[%s2850 + $0x40] sm:$0xff]
      %v2860 = vld [vmem:[%s2850 + $0x48] sm:$0xff]
      %v2861 = vld [vmem:[%s2850 + $0x50] sm:$0xff]
      %v2862 = vld [vmem:[%s2850 + $0x58] sm:$0xff]
      %v2863 = vld [vmem:[%s2850 + $0x60] sm:$0xff]
      %v2864 = vld [vmem:[%s2850 + $0x68] sm:$0xff]
      %v2865 = vld [vmem:[%s2850 + $0x70] sm:$0xff]
      %v2866 = vld [vmem:[%s2850 + $0x78] sm:$0xff]
      %v2867 = vld [vmem:[%s2850 + $0x80] sm:$0xff]
      %v2868 = vld [vmem:[%s2850 + $0x88] sm:$0xff]
      %v2869 = vld [vmem:[%s2850 + $0x90] sm:$0xff]
      %v2870 = vld [vmem:[%s2850 + $0x98] sm:$0xff]
      %v2871 = vld [vmem:[%s2850 + $0xa0] sm:$0xff]
      %v2872 = vld [vmem:[%s2850 + $0xa8] sm:$0xff]
      %v2873 = vld [vmem:[%s2850 + $0xb0] sm:$0xff]
      %v2874 = vld [vmem:[%s2850 + $0xb8] sm:$0xff]
      %v2875 = vld [vmem:[%s2850 + $0xc0] sm:$0xff]
      %v2876 = vld [vmem:[%s2850 + $0xc8] sm:$0xff]
      %v2877 = vld [vmem:[%s2850 + $0xd0] sm:$0xff]
      %v2878 = vld [vmem:[%s2850 + $0xd8] sm:$0xff]
      %v2879 = vld [vmem:[%s2850 + $0xe0] sm:$0xff]
      %v2880 = vld [vmem:[%s2850 + $0xe8] sm:$0xff]
      %v2881 = vld [vmem:[%s2850 + $0xf0] sm:$0xff]
      %v2882 = vld [vmem:[%s2850 + $0xf8] sm:$0xff]
      %v2883 = vld [vmem:[%s2850 + $0x100] sm:$0xff]
      %v2884 = vld [vmem:[%s2850 + $0x108] sm:$0xff]
      %v2885 = vld [vmem:[%s2850 + $0x110] sm:$0xff]
      %v2886 = vld [vmem:[%s2850 + $0x118] sm:$0xff]
      %v2887 = vld [vmem:[%s2850 + $0x120] sm:$0xff]
      %v2888 = vld [vmem:[%s2850 + $0x128] sm:$0xff]
      %v2889 = vld [vmem:[%s2850 + $0x130] sm:$0xff]
      %v2890 = vld [vmem:[%s2850 + $0x138] sm:$0xff]
      %v2891 = vld [vmem:[%s2850 + $0x140] sm:$0xff]
      %v2892 = vld [vmem:[%s2850 + $0x148] sm:$0xff]
      %v2893 = vld [vmem:[%s2850 + $0x150] sm:$0xff]
      %v2894 = vld [vmem:[%s2850 + $0x158] sm:$0xff]
      %v2895 = vld [vmem:[%s2850 + $0x160] sm:$0xff]
      %v2896 = vld [vmem:[%s2850 + $0x168] sm:$0xff]
      %v2897 = vld [vmem:[%s2850 + $0x170] sm:$0xff]
      %v2898 = vld [vmem:[%s2850 + $0x178] sm:$0xff]
      %v2899 = vld [vmem:[%s2850 + $0x180] sm:$0xff]
      %v2900 = vld [vmem:[%s2850 + $0x188] sm:$0xff]
      %v2901 = vld [vmem:[%s2850 + $0x190] sm:$0xff]
      %v2902 = vld [vmem:[%s2850 + $0x198] sm:$0xff]
      %v2903 = vld [vmem:[%s2850 + $0x1a0] sm:$0xff]
      %v2904 = vld [vmem:[%s2850 + $0x1a8] sm:$0xff]
      %v2905 = vld [vmem:[%s2850 + $0x1b0] sm:$0xff]
      %v2906 = vld [vmem:[%s2850 + $0x1b8] sm:$0xff]
      %v2907 = vld [vmem:[%s2850 + $0x1c0] sm:$0xff]
      %v2908 = vld [vmem:[%s2850 + $0x1c8] sm:$0xff]
      %v2909 = vld [vmem:[%s2850 + $0x1d0] sm:$0xff]
      %v2910 = vld [vmem:[%s2850 + $0x1d8] sm:$0xff]
      %v2911 = vld [vmem:[%s2850 + $0x1e0] sm:$0xff]
      %v2912 = vld [vmem:[%s2850 + $0x1e8] sm:$0xff]
      %v2913 = vld [vmem:[%s2850 + $0x1f0] sm:$0xff]
      %v2914 = vld [vmem:[%s2850 + $0x1f8] sm:$0xff]
      %v2916 = vrot.slane %v2612, 1
      %2918 = vmatprep.subr.mxu0 %v2852
      %2919 = vmatpush1.msra.mxu0 %v2851
      %2920 = vmatprep.subr.mxu0 %v2856
      %2921 = vmatpush1.msra.mxu0 %v2855
      %2922 = vmatprep.subr.mxu0 %v2860
      %2923 = vmatpush1.msra.mxu0 %v2859
      %2924 = vmatprep.subr.mxu0 %v2864
      %2925 = vmatpush1.msra.mxu0 %v2863
      %2926 = vmatprep.subr.mxu0 %v2868
      %2927 = vmatpush1.msra.mxu0 %v2867
      %2928 = vmatprep.subr.mxu0 %v2872
      %2929 = vmatpush1.msra.mxu0 %v2871
      %2930 = vmatprep.subr.mxu0 %v2876
      %2931 = vmatpush1.msra.mxu0 %v2875
      %2932 = vmatprep.subr.mxu0 %v2880
      %2933 = vmatpush1.msra.mxu0 %v2879
      %2934 = vmatprep.subr.mxu0 %v2884
      %2935 = vmatpush1.msra.mxu0 %v2883
      %2936 = vmatprep.subr.mxu0 %v2888
      %2937 = vmatpush1.msra.mxu0 %v2887
      %2938 = vmatprep.subr.mxu0 %v2892
      %2939 = vmatpush1.msra.mxu0 %v2891
      %2940 = vmatprep.subr.mxu0 %v2896
      %2941 = vmatpush1.msra.mxu0 %v2895
      %2942 = vmatprep.subr.mxu0 %v2900
      %2943 = vmatpush1.msra.mxu0 %v2899
      %2944 = vmatprep.subr.mxu0 %v2904
      %2945 = vmatpush1.msra.mxu0 %v2903
      %2946 = vmatprep.subr.mxu0 %v2908
      %2947 = vmatpush1.msra.mxu0 %v2907
      %2948 = vmatprep.subr.mxu0 %v2912
      %2949 = vmatpush1.msra.mxu0 %v2911
      %2950 = vmatprep.subr.mxu0 0.0
      %2951 = vmatpush1.msra.mxu0 0.0
      %2952 = vmatprep.subr.mxu0 0.0
      %2953 = vmatpush1.msra.mxu0 0.0
      %2954 = vmatprep.subr.mxu0 0.0
      %2955 = vmatpush1.msra.mxu0 0.0
      %2956 = vmatprep.subr.mxu0 0.0
      %2957 = vmatpush1.msra.mxu0 0.0
      %2958 = vmatprep.subr.mxu0 0.0
      %2959 = vmatpush1.msra.mxu0 0.0
      %2960 = vmatprep.subr.mxu0 0.0
      %2961 = vmatpush1.msra.mxu0 0.0
      %2962 = vmatprep.subr.mxu0 0.0
      %2963 = vmatpush1.msra.mxu0 0.0
      %2964 = vmatprep.subr.mxu0 0.0
      %2965 = vmatpush1.msra.mxu0 0.0
      %2966 = vmatprep.subr.mxu0 0.0
      %2967 = vmatpush1.msra.mxu0 0.0
      %2968 = vmatprep.subr.mxu0 0.0
      %2969 = vmatpush1.msra.mxu0 0.0
      %2970 = vmatprep.subr.mxu0 0.0
      %2971 = vmatpush1.msra.mxu0 0.0
      %2972 = vmatprep.subr.mxu0 0.0
      %2973 = vmatpush1.msra.mxu0 0.0
      %2974 = vmatprep.subr.mxu0 0.0
      %2975 = vmatpush1.msra.mxu0 0.0
      %2976 = vmatprep.subr.mxu0 0.0
      %2977 = vmatpush1.msra.mxu0 0.0
      %2978 = vmatprep.subr.mxu0 0.0
      %2979 = vmatpush1.msra.mxu0 0.0
      %2980 = vmatprep.subr.mxu0 0.0
      %2981 = vmatpush1.msra.mxu0 0.0
      %2982 = vmatprep.mubr.f32.mxu0 0.0
      %2983 = vmatmul.mubr.f32.gmra.mrb[0].mxu0 %v2916
      %v2984 = vpop.f32.mrb[0].mxu0
      %v2985 = vadd.f32 0.0, %v2984
      %v2986 = vpop.f32.mrb[0].mxu0
      %v2987 = vadd.f32 0.0, %v2986
      %2988 = vdwg.mxu0
      %2989 = vmatprep.subr.mxu0 %v2854
      %2990 = vmatpush1.msra.mxu0 %v2853
      %2991 = vmatprep.subr.mxu0 %v2858
      %2992 = vmatpush1.msra.mxu0 %v2857
      %2993 = vmatprep.subr.mxu0 %v2862
      %2994 = vmatpush1.msra.mxu0 %v2861
      %2995 = vmatprep.subr.mxu0 %v2866
      %2996 = vmatpush1.msra.mxu0 %v2865
      %2997 = vmatprep.subr.mxu0 %v2870
      %2998 = vmatpush1.msra.mxu0 %v2869
      %2999 = vmatprep.subr.mxu0 %v2874
      %3000 = vmatpush1.msra.mxu0 %v2873
      %3001 = vmatprep.subr.mxu0 %v2878
      %3002 = vmatpush1.msra.mxu0 %v2877
      %3003 = vmatprep.subr.mxu0 %v2882
      %3004 = vmatpush1.msra.mxu0 %v2881
      %3005 = vmatprep.subr.mxu0 %v2886
      %3006 = vmatpush1.msra.mxu0 %v2885
      %3007 = vmatprep.subr.mxu0 %v2890
      %3008 = vmatpush1.msra.mxu0 %v2889
      %3009 = vmatprep.subr.mxu0 %v2894
      %3010 = vmatpush1.msra.mxu0 %v2893
      %3011 = vmatprep.subr.mxu0 %v2898
      %3012 = vmatpush1.msra.mxu0 %v2897
      %3013 = vmatprep.subr.mxu0 %v2902
      %3014 = vmatpush1.msra.mxu0 %v2901
      %3015 = vmatprep.subr.mxu0 %v2906
      %3016 = vmatpush1.msra.mxu0 %v2905
      %3017 = vmatprep.subr.mxu0 %v2910
      %3018 = vmatpush1.msra.mxu0 %v2909
      %3019 = vmatprep.subr.mxu0 %v2914
      %3020 = vmatpush1.msra.mxu0 %v2913
      %3021 = vmatprep.subr.mxu0 0.0
      %3022 = vmatpush1.msra.mxu0 0.0
      %3023 = vmatprep.subr.mxu0 0.0
      %3024 = vmatpush1.msra.mxu0 0.0
      %3025 = vmatprep.subr.mxu0 0.0
      %3026 = vmatpush1.msra.mxu0 0.0
      %3027 = vmatprep.subr.mxu0 0.0
      %3028 = vmatpush1.msra.mxu0 0.0
      %3029 = vmatprep.subr.mxu0 0.0
      %3030 = vmatpush1.msra.mxu0 0.0
      %3031 = vmatprep.subr.mxu0 0.0
      %3032 = vmatpush1.msra.mxu0 0.0
      %3033 = vmatprep.subr.mxu0 0.0
      %3034 = vmatpush1.msra.mxu0 0.0
      %3035 = vmatprep.subr.mxu0 0.0
      %3036 = vmatpush1.msra.mxu0 0.0
      %3037 = vmatprep.subr.mxu0 0.0
      %3038 = vmatpush1.msra.mxu0 0.0
      %3039 = vmatprep.subr.mxu0 0.0
      %3040 = vmatpush1.msra.mxu0 0.0
      %3041 = vmatprep.subr.mxu0 0.0
      %3042 = vmatpush1.msra.mxu0 0.0
      %3043 = vmatprep.subr.mxu0 0.0
      %3044 = vmatpush1.msra.mxu0 0.0
      %3045 = vmatprep.subr.mxu0 0.0
      %3046 = vmatpush1.msra.mxu0 0.0
      %3047 = vmatprep.subr.mxu0 0.0
      %3048 = vmatpush1.msra.mxu0 0.0
      %3049 = vmatprep.subr.mxu0 0.0
      %3050 = vmatpush1.msra.mxu0 0.0
      %3051 = vmatprep.subr.mxu0 0.0
      %3052 = vmatpush1.msra.mxu0 0.0
      %3053 = vmatprep.mubr.f32.mxu0 0.0
      %3054 = vmatmul.mubr.f32.gmra.mrb[0].mxu0 %v2916
      %v3055 = vpop.f32.mrb[0].mxu0
      %v3056 = vadd.f32 0.0, %v3055
      %v3057 = vpop.f32.mrb[0].mxu0
      %v3058 = vadd.f32 0.0, %v3057
      %3059 = vdwg.mxu0
      %v3064 = vcombine.low %v2985, %v2987
      %v3065 = vcombine.low %v3056, %v3058
      %v3067 = vunpack.c.l.s4 1966171168
      %v3068 = vunpack.c.0.s8 %v3067
      %v3069 = vlaneseq
      %v3070 = vshrl.u32 %v3069, 7
      %v3071 = vsub.s32 %v3068, %v3070
      %v3072 = vrot.slane %v3064, %v3071
      %v3074 = vunpack.c.l.s4 1966171168
      %v3075 = vunpack.c.0.s8 %v3074
      %v3076 = vlaneseq
      %v3077 = vshrl.u32 %v3076, 7
      %v3078 = vsub.s32 %v3075, %v3077
      %v3079 = vrot.slane %v3065, %v3078
      %v3080 = vcombine.low %v3072, %v3079
      %v3082 = vunpack.c.l.s4 1966171168
      %v3083 = vunpack.c.0.s8 %v3082
      %v3084 = vlaneseq
      %v3085 = vshrl.u32 %v3084, 7
      %v3086 = vsub.s32 %v3083, %v3085
      %v3087 = vrot.slane %v3080, %v3086
      %v3089 = vadd.f32 %v2849, %v3087
      %s3090 = scalar_lea.vmem %s12, 1024
      %v3091 = vld [vmem:[%s3090] sm:$0xff]
      %v3092 = vld [vmem:[%s3090 + $0x8] sm:$0xff]
      %v3093 = vld [vmem:[%s3090 + $0x10] sm:$0xff]
      %v3094 = vld [vmem:[%s3090 + $0x18] sm:$0xff]
      %v3095 = vld [vmem:[%s3090 + $0x20] sm:$0xff]
      %v3096 = vld [vmem:[%s3090 + $0x28] sm:$0xff]
      %v3097 = vld [vmem:[%s3090 + $0x30] sm:$0xff]
      %v3098 = vld [vmem:[%s3090 + $0x38] sm:$0xff]
      %v3099 = vld [vmem:[%s3090 + $0x40] sm:$0xff]
      %v3100 = vld [vmem:[%s3090 + $0x48] sm:$0xff]
      %v3101 = vld [vmem:[%s3090 + $0x50] sm:$0xff]
      %v3102 = vld [vmem:[%s3090 + $0x58] sm:$0xff]
      %v3103 = vld [vmem:[%s3090 + $0x60] sm:$0xff]
      %v3104 = vld [vmem:[%s3090 + $0x68] sm:$0xff]
      %v3105 = vld [vmem:[%s3090 + $0x70] sm:$0xff]
      %v3106 = vld [vmem:[%s3090 + $0x78] sm:$0xff]
      %v3107 = vld [vmem:[%s3090 + $0x80] sm:$0xff]
      %v3108 = vld [vmem:[%s3090 + $0x88] sm:$0xff]
      %v3109 = vld [vmem:[%s3090 + $0x90] sm:$0xff]
      %v3110 = vld [vmem:[%s3090 + $0x98] sm:$0xff]
      %v3111 = vld [vmem:[%s3090 + $0xa0] sm:$0xff]
      %v3112 = vld [vmem:[%s3090 + $0xa8] sm:$0xff]
      %v3113 = vld [vmem:[%s3090 + $0xb0] sm:$0xff]
      %v3114 = vld [vmem:[%s3090 + $0xb8] sm:$0xff]
      %v3115 = vld [vmem:[%s3090 + $0xc0] sm:$0xff]
      %v3116 = vld [vmem:[%s3090 + $0xc8] sm:$0xff]
      %v3117 = vld [vmem:[%s3090 + $0xd0] sm:$0xff]
      %v3118 = vld [vmem:[%s3090 + $0xd8] sm:$0xff]
      %v3119 = vld [vmem:[%s3090 + $0xe0] sm:$0xff]
      %v3120 = vld [vmem:[%s3090 + $0xe8] sm:$0xff]
      %v3121 = vld [vmem:[%s3090 + $0xf0] sm:$0xff]
      %v3122 = vld [vmem:[%s3090 + $0xf8] sm:$0xff]
      %v3123 = vld [vmem:[%s3090 + $0x100] sm:$0xff]
      %v3124 = vld [vmem:[%s3090 + $0x108] sm:$0xff]
      %v3125 = vld [vmem:[%s3090 + $0x110] sm:$0xff]
      %v3126 = vld [vmem:[%s3090 + $0x118] sm:$0xff]
      %v3127 = vld [vmem:[%s3090 + $0x120] sm:$0xff]
      %v3128 = vld [vmem:[%s3090 + $0x128] sm:$0xff]
      %v3129 = vld [vmem:[%s3090 + $0x130] sm:$0xff]
      %v3130 = vld [vmem:[%s3090 + $0x138] sm:$0xff]
      %v3131 = vld [vmem:[%s3090 + $0x140] sm:$0xff]
      %v3132 = vld [vmem:[%s3090 + $0x148] sm:$0xff]
      %v3133 = vld [vmem:[%s3090 + $0x150] sm:$0xff]
      %v3134 = vld [vmem:[%s3090 + $0x158] sm:$0xff]
      %v3135 = vld [vmem:[%s3090 + $0x160] sm:$0xff]
      %v3136 = vld [vmem:[%s3090 + $0x168] sm:$0xff]
      %v3137 = vld [vmem:[%s3090 + $0x170] sm:$0xff]
      %v3138 = vld [vmem:[%s3090 + $0x178] sm:$0xff]
      %v3139 = vld [vmem:[%s3090 + $0x180] sm:$0xff]
      %v3140 = vld [vmem:[%s3090 + $0x188] sm:$0xff]
      %v3141 = vld [vmem:[%s3090 + $0x190] sm:$0xff]
      %v3142 = vld [vmem:[%s3090 + $0x198] sm:$0xff]
      %v3143 = vld [vmem:[%s3090 + $0x1a0] sm:$0xff]
      %v3144 = vld [vmem:[%s3090 + $0x1a8] sm:$0xff]
      %v3145 = vld [vmem:[%s3090 + $0x1b0] sm:$0xff]
      %v3146 = vld [vmem:[%s3090 + $0x1b8] sm:$0xff]
      %v3147 = vld [vmem:[%s3090 + $0x1c0] sm:$0xff]
      %v3148 = vld [vmem:[%s3090 + $0x1c8] sm:$0xff]
      %v3149 = vld [vmem:[%s3090 + $0x1d0] sm:$0xff]
      %v3150 = vld [vmem:[%s3090 + $0x1d8] sm:$0xff]
      %v3151 = vld [vmem:[%s3090 + $0x1e0] sm:$0xff]
      %v3152 = vld [vmem:[%s3090 + $0x1e8] sm:$0xff]
      %v3153 = vld [vmem:[%s3090 + $0x1f0] sm:$0xff]
      %v3154 = vld [vmem:[%s3090 + $0x1f8] sm:$0xff]
      %v3155 = vrot.slane %v2612, 2
      %3157 = vmatprep.subr.mxu0 %v3092
      %3158 = vmatpush1.msra.mxu0 %v3091
      %3159 = vmatprep.subr.mxu0 %v3096
      %3160 = vmatpush1.msra.mxu0 %v3095
      %3161 = vmatprep.subr.mxu0 %v3100
      %3162 = vmatpush1.msra.mxu0 %v3099
      %3163 = vmatprep.subr.mxu0 %v3104
      %3164 = vmatpush1.msra.mxu0 %v3103
      %3165 = vmatprep.subr.mxu0 %v3108
      %3166 = vmatpush1.msra.mxu0 %v3107
      %3167 = vmatprep.subr.mxu0 %v3112
      %3168 = vmatpush1.msra.mxu0 %v3111
      %3169 = vmatprep.subr.mxu0 %v3116
      %3170 = vmatpush1.msra.mxu0 %v3115
      %3171 = vmatprep.subr.mxu0 %v3120
      %3172 = vmatpush1.msra.mxu0 %v3119
      %3173 = vmatprep.subr.mxu0 %v3124
      %3174 = vmatpush1.msra.mxu0 %v3123
      %3175 = vmatprep.subr.mxu0 %v3128
      %3176 = vmatpush1.msra.mxu0 %v3127
      %3177 = vmatprep.subr.mxu0 %v3132
      %3178 = vmatpush1.msra.mxu0 %v3131
      %3179 = vmatprep.subr.mxu0 %v3136
      %3180 = vmatpush1.msra.mxu0 %v3135
      %3181 = vmatprep.subr.mxu0 %v3140
      %3182 = vmatpush1.msra.mxu0 %v3139
      %3183 = vmatprep.subr.mxu0 %v3144
      %3184 = vmatpush1.msra.mxu0 %v3143
      %3185 = vmatprep.subr.mxu0 %v3148
      %3186 = vmatpush1.msra.mxu0 %v3147
      %3187 = vmatprep.subr.mxu0 %v3152
      %3188 = vmatpush1.msra.mxu0 %v3151
      %3189 = vmatprep.subr.mxu0 0.0
      %3190 = vmatpush1.msra.mxu0 0.0
      %3191 = vmatprep.subr.mxu0 0.0
      %3192 = vmatpush1.msra.mxu0 0.0
      %3193 = vmatprep.subr.mxu0 0.0
      %3194 = vmatpush1.msra.mxu0 0.0
      %3195 = vmatprep.subr.mxu0 0.0
      %3196 = vmatpush1.msra.mxu0 0.0
      %3197 = vmatprep.subr.mxu0 0.0
      %3198 = vmatpush1.msra.mxu0 0.0
      %3199 = vmatprep.subr.mxu0 0.0
      %3200 = vmatpush1.msra.mxu0 0.0
      %3201 = vmatprep.subr.mxu0 0.0
      %3202 = vmatpush1.msra.mxu0 0.0
      %3203 = vmatprep.subr.mxu0 0.0
      %3204 = vmatpush1.msra.mxu0 0.0
      %3205 = vmatprep.subr.mxu0 0.0
      %3206 = vmatpush1.msra.mxu0 0.0
      %3207 = vmatprep.subr.mxu0 0.0
      %3208 = vmatpush1.msra.mxu0 0.0
      %3209 = vmatprep.subr.mxu0 0.0
      %3210 = vmatpush1.msra.mxu0 0.0
      %3211 = vmatprep.subr.mxu0 0.0
      %3212 = vmatpush1.msra.mxu0 0.0
      %3213 = vmatprep.subr.mxu0 0.0
      %3214 = vmatpush1.msra.mxu0 0.0
      %3215 = vmatprep.subr.mxu0 0.0
      %3216 = vmatpush1.msra.mxu0 0.0
      %3217 = vmatprep.subr.mxu0 0.0
      %3218 = vmatpush1.msra.mxu0 0.0
      %3219 = vmatprep.subr.mxu0 0.0
      %3220 = vmatpush1.msra.mxu0 0.0
      %3221 = vmatprep.mubr.f32.mxu0 0.0
      %3222 = vmatmul.mubr.f32.gmra.mrb[0].mxu0 %v3155
      %v3223 = vpop.f32.mrb[0].mxu0
      %v3224 = vadd.f32 0.0, %v3223
      %v3225 = vpop.f32.mrb[0].mxu0
      %v3226 = vadd.f32 0.0, %v3225
      %3227 = vdwg.mxu0
      %3228 = vmatprep.subr.mxu0 %v3094
      %3229 = vmatpush1.msra.mxu0 %v3093
      %3230 = vmatprep.subr.mxu0 %v3098
      %3231 = vmatpush1.msra.mxu0 %v3097
      %3232 = vmatprep.subr.mxu0 %v3102
      %3233 = vmatpush1.msra.mxu0 %v3101
      %3234 = vmatprep.subr.mxu0 %v3106
      %3235 = vmatpush1.msra.mxu0 %v3105
      %3236 = vmatprep.subr.mxu0 %v3110
      %3237 = vmatpush1.msra.mxu0 %v3109
      %3238 = vmatprep.subr.mxu0 %v3114
      %3239 = vmatpush1.msra.mxu0 %v3113
      %3240 = vmatprep.subr.mxu0 %v3118
      %3241 = vmatpush1.msra.mxu0 %v3117
      %3242 = vmatprep.subr.mxu0 %v3122
      %3243 = vmatpush1.msra.mxu0 %v3121
      %3244 = vmatprep.subr.mxu0 %v3126
      %3245 = vmatpush1.msra.mxu0 %v3125
      %3246 = vmatprep.subr.mxu0 %v3130
      %3247 = vmatpush1.msra.mxu0 %v3129
      %3248 = vmatprep.subr.mxu0 %v3134
      %3249 = vmatpush1.msra.mxu0 %v3133
      %3250 = vmatprep.subr.mxu0 %v3138
      %3251 = vmatpush1.msra.mxu0 %v3137
      %3252 = vmatprep.subr.mxu0 %v3142
      %3253 = vmatpush1.msra.mxu0 %v3141
      %3254 = vmatprep.subr.mxu0 %v3146
      %3255 = vmatpush1.msra.mxu0 %v3145
      %3256 = vmatprep.subr.mxu0 %v3150
      %3257 = vmatpush1.msra.mxu0 %v3149
      %3258 = vmatprep.subr.mxu0 %v3154
      %3259 = vmatpush1.msra.mxu0 %v3153
      %3260 = vmatprep.subr.mxu0 0.0
      %3261 = vmatpush1.msra.mxu0 0.0
      %3262 = vmatprep.subr.mxu0 0.0
      %3263 = vmatpush1.msra.mxu0 0.0
      %3264 = vmatprep.subr.mxu0 0.0
      %3265 = vmatpush1.msra.mxu0 0.0
      %3266 = vmatprep.subr.mxu0 0.0
      %3267 = vmatpush1.msra.mxu0 0.0
      %3268 = vmatprep.subr.mxu0 0.0
      %3269 = vmatpush1.msra.mxu0 0.0
      %3270 = vmatprep.subr.mxu0 0.0
      %3271 = vmatpush1.msra.mxu0 0.0
      %3272 = vmatprep.subr.mxu0 0.0
      %3273 = vmatpush1.msra.mxu0 0.0
      %3274 = vmatprep.subr.mxu0 0.0
      %3275 = vmatpush1.msra.mxu0 0.0
      %3276 = vmatprep.subr.mxu0 0.0
      %3277 = vmatpush1.msra.mxu0 0.0
      %3278 = vmatprep.subr.mxu0 0.0
      %3279 = vmatpush1.msra.mxu0 0.0
      %3280 = vmatprep.subr.mxu0 0.0
      %3281 = vmatpush1.msra.mxu0 0.0
      %3282 = vmatprep.subr.mxu0 0.0
      %3283 = vmatpush1.msra.mxu0 0.0
      %3284 = vmatprep.subr.mxu0 0.0
      %3285 = vmatpush1.msra.mxu0 0.0
      %3286 = vmatprep.subr.mxu0 0.0
      %3287 = vmatpush1.msra.mxu0 0.0
      %3288 = vmatprep.subr.mxu0 0.0
      %3289 = vmatpush1.msra.mxu0 0.0
      %3290 = vmatprep.subr.mxu0 0.0
      %3291 = vmatpush1.msra.mxu0 0.0
      %3292 = vmatprep.mubr.f32.mxu0 0.0
      %3293 = vmatmul.mubr.f32.gmra.mrb[0].mxu0 %v3155
      %v3294 = vpop.f32.mrb[0].mxu0
      %v3295 = vadd.f32 0.0, %v3294
      %v3296 = vpop.f32.mrb[0].mxu0
      %v3297 = vadd.f32 0.0, %v3296
      %3298 = vdwg.mxu0
      %v3303 = vcombine.low %v3224, %v3226
      %v3304 = vcombine.low %v3295, %v3297
      %v3306 = vunpack.c.l.s4 1966171168
      %v3307 = vunpack.c.0.s8 %v3306
      %v3308 = vlaneseq
      %v3309 = vshrl.u32 %v3308, 7
      %v3310 = vsub.s32 %v3307, %v3309
      %v3311 = vrot.slane %v3303, %v3310
      %v3313 = vunpack.c.l.s4 1966171168
      %v3314 = vunpack.c.0.s8 %v3313
      %v3315 = vlaneseq
      %v3316 = vshrl.u32 %v3315, 7
      %v3317 = vsub.s32 %v3314, %v3316
      %v3318 = vrot.slane %v3304, %v3317
      %v3319 = vcombine.low %v3311, %v3318
      %v3321 = vunpack.c.l.s4 1966171168
      %v3322 = vunpack.c.0.s8 %v3321
      %v3323 = vlaneseq
      %v3324 = vshrl.u32 %v3323, 7
      %v3325 = vsub.s32 %v3322, %v3324
      %v3326 = vrot.slane %v3319, %v3325
      %v3328 = vadd.f32 %v3089, %v3326
      %s3329 = scalar_lea.vmem %s12, 1536
      %v3330 = vld [vmem:[%s3329] sm:$0xff]
      %v3331 = vld [vmem:[%s3329 + $0x8] sm:$0xff]
      %v3332 = vld [vmem:[%s3329 + $0x10] sm:$0xff]
      %v3333 = vld [vmem:[%s3329 + $0x18] sm:$0xff]
      %v3334 = vld [vmem:[%s3329 + $0x20] sm:$0xff]
      %v3335 = vld [vmem:[%s3329 + $0x28] sm:$0xff]
      %v3336 = vld [vmem:[%s3329 + $0x30] sm:$0xff]
      %v3337 = vld [vmem:[%s3329 + $0x38] sm:$0xff]
      %v3338 = vld [vmem:[%s3329 + $0x40] sm:$0xff]
      %v3339 = vld [vmem:[%s3329 + $0x48] sm:$0xff]
      %v3340 = vld [vmem:[%s3329 + $0x50] sm:$0xff]
      %v3341 = vld [vmem:[%s3329 + $0x58] sm:$0xff]
      %v3342 = vld [vmem:[%s3329 + $0x60] sm:$0xff]
      %v3343 = vld [vmem:[%s3329 + $0x68] sm:$0xff]
      %v3344 = vld [vmem:[%s3329 + $0x70] sm:$0xff]
      %v3345 = vld [vmem:[%s3329 + $0x78] sm:$0xff]
      %v3346 = vld [vmem:[%s3329 + $0x80] sm:$0xff]
      %v3347 = vld [vmem:[%s3329 + $0x88] sm:$0xff]
      %v3348 = vld [vmem:[%s3329 + $0x90] sm:$0xff]
      %v3349 = vld [vmem:[%s3329 + $0x98] sm:$0xff]
      %v3350 = vld [vmem:[%s3329 + $0xa0] sm:$0xff]
      %v3351 = vld [vmem:[%s3329 + $0xa8] sm:$0xff]
      %v3352 = vld [vmem:[%s3329 + $0xb0] sm:$0xff]
      %v3353 = vld [vmem:[%s3329 + $0xb8] sm:$0xff]
      %v3354 = vld [vmem:[%s3329 + $0xc0] sm:$0xff]
      %v3355 = vld [vmem:[%s3329 + $0xc8] sm:$0xff]
      %v3356 = vld [vmem:[%s3329 + $0xd0] sm:$0xff]
      %v3357 = vld [vmem:[%s3329 + $0xd8] sm:$0xff]
      %v3358 = vld [vmem:[%s3329 + $0xe0] sm:$0xff]
      %v3359 = vld [vmem:[%s3329 + $0xe8] sm:$0xff]
      %v3360 = vld [vmem:[%s3329 + $0xf0] sm:$0xff]
      %v3361 = vld [vmem:[%s3329 + $0xf8] sm:$0xff]
      %v3362 = vld [vmem:[%s3329 + $0x100] sm:$0xff]
      %v3363 = vld [vmem:[%s3329 + $0x108] sm:$0xff]
      %v3364 = vld [vmem:[%s3329 + $0x110] sm:$0xff]
      %v3365 = vld [vmem:[%s3329 + $0x118] sm:$0xff]
      %v3366 = vld [vmem:[%s3329 + $0x120] sm:$0xff]
      %v3367 = vld [vmem:[%s3329 + $0x128] sm:$0xff]
      %v3368 = vld [vmem:[%s3329 + $0x130] sm:$0xff]
      %v3369 = vld [vmem:[%s3329 + $0x138] sm:$0xff]
      %v3370 = vld [vmem:[%s3329 + $0x140] sm:$0xff]
      %v3371 = vld [vmem:[%s3329 + $0x148] sm:$0xff]
      %v3372 = vld [vmem:[%s3329 + $0x150] sm:$0xff]
      %v3373 = vld [vmem:[%s3329 + $0x158] sm:$0xff]
      %v3374 = vld [vmem:[%s3329 + $0x160] sm:$0xff]
      %v3375 = vld [vmem:[%s3329 + $0x168] sm:$0xff]
      %v3376 = vld [vmem:[%s3329 + $0x170] sm:$0xff]
      %v3377 = vld [vmem:[%s3329 + $0x178] sm:$0xff]
      %v3378 = vld [vmem:[%s3329 + $0x180] sm:$0xff]
      %v3379 = vld [vmem:[%s3329 + $0x188] sm:$0xff]
      %v3380 = vld [vmem:[%s3329 + $0x190] sm:$0xff]
      %v3381 = vld [vmem:[%s3329 + $0x198] sm:$0xff]
      %v3382 = vld [vmem:[%s3329 + $0x1a0] sm:$0xff]
      %v3383 = vld [vmem:[%s3329 + $0x1a8] sm:$0xff]
      %v3384 = vld [vmem:[%s3329 + $0x1b0] sm:$0xff]
      %v3385 = vld [vmem:[%s3329 + $0x1b8] sm:$0xff]
      %v3386 = vld [vmem:[%s3329 + $0x1c0] sm:$0xff]
      %v3387 = vld [vmem:[%s3329 + $0x1c8] sm:$0xff]
      %v3388 = vld [vmem:[%s3329 + $0x1d0] sm:$0xff]
      %v3389 = vld [vmem:[%s3329 + $0x1d8] sm:$0xff]
      %v3390 = vld [vmem:[%s3329 + $0x1e0] sm:$0xff]
      %v3391 = vld [vmem:[%s3329 + $0x1e8] sm:$0xff]
      %v3392 = vld [vmem:[%s3329 + $0x1f0] sm:$0xff]
      %v3393 = vld [vmem:[%s3329 + $0x1f8] sm:$0xff]
      %v3394 = vrot.slane %v2612, 3
      %3396 = vmatprep.subr.mxu0 %v3331
      %3397 = vmatpush1.msra.mxu0 %v3330
      %3398 = vmatprep.subr.mxu0 %v3335
      %3399 = vmatpush1.msra.mxu0 %v3334
      %3400 = vmatprep.subr.mxu0 %v3339
      %3401 = vmatpush1.msra.mxu0 %v3338
      %3402 = vmatprep.subr.mxu0 %v3343
      %3403 = vmatpush1.msra.mxu0 %v3342
      %3404 = vmatprep.subr.mxu0 %v3347
      %3405 = vmatpush1.msra.mxu0 %v3346
      %3406 = vmatprep.subr.mxu0 %v3351
      %3407 = vmatpush1.msra.mxu0 %v3350
      %3408 = vmatprep.subr.mxu0 %v3355
      %3409 = vmatpush1.msra.mxu0 %v3354
      %3410 = vmatprep.subr.mxu0 %v3359
      %3411 = vmatpush1.msra.mxu0 %v3358
      %3412 = vmatprep.subr.mxu0 %v3363
      %3413 = vmatpush1.msra.mxu0 %v3362
      %3414 = vmatprep.subr.mxu0 %v3367
      %3415 = vmatpush1.msra.mxu0 %v3366
      %3416 = vmatprep.subr.mxu0 %v3371
      %3417 = vmatpush1.msra.mxu0 %v3370
      %3418 = vmatprep.subr.mxu0 %v3375
      %3419 = vmatpush1.msra.mxu0 %v3374
      %3420 = vmatprep.subr.mxu0 %v3379
      %3421 = vmatpush1.msra.mxu0 %v3378
      %3422 = vmatprep.subr.mxu0 %v3383
      %3423 = vmatpush1.msra.mxu0 %v3382
      %3424 = vmatprep.subr.mxu0 %v3387
      %3425 = vmatpush1.msra.mxu0 %v3386
      %3426 = vmatprep.subr.mxu0 %v3391
      %3427 = vmatpush1.msra.mxu0 %v3390
      %3428 = vmatprep.subr.mxu0 0.0
      %3429 = vmatpush1.msra.mxu0 0.0
      %3430 = vmatprep.subr.mxu0 0.0
      %3431 = vmatpush1.msra.mxu0 0.0
      %3432 = vmatprep.subr.mxu0 0.0
      %3433 = vmatpush1.msra.mxu0 0.0
      %3434 = vmatprep.subr.mxu0 0.0
      %3435 = vmatpush1.msra.mxu0 0.0
      %3436 = vmatprep.subr.mxu0 0.0
      %3437 = vmatpush1.msra.mxu0 0.0
      %3438 = vmatprep.subr.mxu0 0.0
      %3439 = vmatpush1.msra.mxu0 0.0
      %3440 = vmatprep.subr.mxu0 0.0
      %3441 = vmatpush1.msra.mxu0 0.0
      %3442 = vmatprep.subr.mxu0 0.0
      %3443 = vmatpush1.msra.mxu0 0.0
      %3444 = vmatprep.subr.mxu0 0.0
      %3445 = vmatpush1.msra.mxu0 0.0
      %3446 = vmatprep.subr.mxu0 0.0
      %3447 = vmatpush1.msra.mxu0 0.0
      %3448 = vmatprep.subr.mxu0 0.0
      %3449 = vmatpush1.msra.mxu0 0.0
      %3450 = vmatprep.subr.mxu0 0.0
      %3451 = vmatpush1.msra.mxu0 0.0
      %3452 = vmatprep.subr.mxu0 0.0
      %3453 = vmatpush1.msra.mxu0 0.0
      %3454 = vmatprep.subr.mxu0 0.0
      %3455 = vmatpush1.msra.mxu0 0.0
      %3456 = vmatprep.subr.mxu0 0.0
      %3457 = vmatpush1.msra.mxu0 0.0
      %3458 = vmatprep.subr.mxu0 0.0
      %3459 = vmatpush1.msra.mxu0 0.0
      %3460 = vmatprep.mubr.f32.mxu0 0.0
      %3461 = vmatmul.mubr.f32.gmra.mrb[0].mxu0 %v3394
      %v3462 = vpop.f32.mrb[0].mxu0
      %v3463 = vadd.f32 0.0, %v3462
      %v3464 = vpop.f32.mrb[0].mxu0
      %v3465 = vadd.f32 0.0, %v3464
      %3466 = vdwg.mxu0
      %3467 = vmatprep.subr.mxu0 %v3333
      %3468 = vmatpush1.msra.mxu0 %v3332
      %3469 = vmatprep.subr.mxu0 %v3337
      %3470 = vmatpush1.msra.mxu0 %v3336
      %3471 = vmatprep.subr.mxu0 %v3341
      %3472 = vmatpush1.msra.mxu0 %v3340
      %3473 = vmatprep.subr.mxu0 %v3345
      %3474 = vmatpush1.msra.mxu0 %v3344
      %3475 = vmatprep.subr.mxu0 %v3349
      %3476 = vmatpush1.msra.mxu0 %v3348
      %3477 = vmatprep.subr.mxu0 %v3353
      %3478 = vmatpush1.msra.mxu0 %v3352
      %3479 = vmatprep.subr.mxu0 %v3357
      %3480 = vmatpush1.msra.mxu0 %v3356
      %3481 = vmatprep.subr.mxu0 %v3361
      %3482 = vmatpush1.msra.mxu0 %v3360
      %3483 = vmatprep.subr.mxu0 %v3365
      %3484 = vmatpush1.msra.mxu0 %v3364
      %3485 = vmatprep.subr.mxu0 %v3369
      %3486 = vmatpush1.msra.mxu0 %v3368
      %3487 = vmatprep.subr.mxu0 %v3373
      %3488 = vmatpush1.msra.mxu0 %v3372
      %3489 = vmatprep.subr.mxu0 %v3377
      %3490 = vmatpush1.msra.mxu0 %v3376
      %3491 = vmatprep.subr.mxu0 %v3381
      %3492 = vmatpush1.msra.mxu0 %v3380
      %3493 = vmatprep.subr.mxu0 %v3385
      %3494 = vmatpush1.msra.mxu0 %v3384
      %3495 = vmatprep.subr.mxu0 %v3389
      %3496 = vmatpush1.msra.mxu0 %v3388
      %3497 = vmatprep.subr.mxu0 %v3393
      %3498 = vmatpush1.msra.mxu0 %v3392
      %3499 = vmatprep.subr.mxu0 0.0
      %3500 = vmatpush1.msra.mxu0 0.0
      %3501 = vmatprep.subr.mxu0 0.0
      %3502 = vmatpush1.msra.mxu0 0.0
      %3503 = vmatprep.subr.mxu0 0.0
      %3504 = vmatpush1.msra.mxu0 0.0
      %3505 = vmatprep.subr.mxu0 0.0
      %3506 = vmatpush1.msra.mxu0 0.0
      %3507 = vmatprep.subr.mxu0 0.0
      %3508 = vmatpush1.msra.mxu0 0.0
      %3509 = vmatprep.subr.mxu0 0.0
      %3510 = vmatpush1.msra.mxu0 0.0
      %3511 = vmatprep.subr.mxu0 0.0
      %3512 = vmatpush1.msra.mxu0 0.0
      %3513 = vmatprep.subr.mxu0 0.0
      %3514 = vmatpush1.msra.mxu0 0.0
      %3515 = vmatprep.subr.mxu0 0.0
      %3516 = vmatpush1.msra.mxu0 0.0
      %3517 = vmatprep.subr.mxu0 0.0
      %3518 = vmatpush1.msra.mxu0 0.0
      %3519 = vmatprep.subr.mxu0 0.0
      %3520 = vmatpush1.msra.mxu0 0.0
      %3521 = vmatprep.subr.mxu0 0.0
      %3522 = vmatpush1.msra.mxu0 0.0
      %3523 = vmatprep.subr.mxu0 0.0
      %3524 = vmatpush1.msra.mxu0 0.0
      %3525 = vmatprep.subr.mxu0 0.0
      %3526 = vmatpush1.msra.mxu0 0.0
      %3527 = vmatprep.subr.mxu0 0.0
      %3528 = vmatpush1.msra.mxu0 0.0
      %3529 = vmatprep.subr.mxu0 0.0
      %3530 = vmatpush1.msra.mxu0 0.0
      %3531 = vmatprep.mubr.f32.mxu0 0.0
      %3532 = vmatmul.mubr.f32.gmra.mrb[0].mxu0 %v3394
      %v3533 = vpop.f32.mrb[0].mxu0
      %v3534 = vadd.f32 0.0, %v3533
      %v3535 = vpop.f32.mrb[0].mxu0
      %v3536 = vadd.f32 0.0, %v3535
      %3537 = vdwg.mxu0
      %v3542 = vcombine.low %v3463, %v3465
      %v3543 = vcombine.low %v3534, %v3536
      %v3545 = vunpack.c.l.s4 1966171168
      %v3546 = vunpack.c.0.s8 %v3545
      %v3547 = vlaneseq
      %v3548 = vshrl.u32 %v3547, 7
      %v3549 = vsub.s32 %v3546, %v3548
      %v3550 = vrot.slane %v3542, %v3549
      %v3552 = vunpack.c.l.s4 1966171168
      %v3553 = vunpack.c.0.s8 %v3552
      %v3554 = vlaneseq
      %v3555 = vshrl.u32 %v3554, 7
      %v3556 = vsub.s32 %v3553, %v3555
      %v3557 = vrot.slane %v3543, %v3556
      %v3558 = vcombine.low %v3550, %v3557
      %v3560 = vunpack.c.l.s4 1966171168
      %v3561 = vunpack.c.0.s8 %v3560
      %v3562 = vlaneseq
      %v3563 = vshrl.u32 %v3562, 7
      %v3564 = vsub.s32 %v3561, %v3563
      %v3565 = vrot.slane %v3558, %v3564
      %v3567 = vadd.f32 %v3328, %v3565
      %v3568 = vmax.f32 %v3567, 0.0
      %v3569 = vld [vmem:[%s14] sm:$0xff]
      %v3570 = vld [vmem:[%s14 + $0x8] sm:$0xff]
      %v3571 = vld [vmem:[%s14 + $0x10] sm:$0xff]
      %v3572 = vld [vmem:[%s14 + $0x18] sm:$0xff]
      %v3573 = vld [vmem:[%s14 + $0x20] sm:$0xff]
      %v3574 = vld [vmem:[%s14 + $0x28] sm:$0xff]
      %v3575 = vld [vmem:[%s14 + $0x30] sm:$0xff]
      %v3576 = vld [vmem:[%s14 + $0x38] sm:$0xff]
      %v3577 = vld [vmem:[%s14 + $0x40] sm:$0xff]
      %v3578 = vld [vmem:[%s14 + $0x48] sm:$0xff]
      %v3579 = vld [vmem:[%s14 + $0x50] sm:$0xff]
      %v3580 = vld [vmem:[%s14 + $0x58] sm:$0xff]
      %v3581 = vld [vmem:[%s14 + $0x60] sm:$0xff]
      %v3582 = vld [vmem:[%s14 + $0x68] sm:$0xff]
      %v3583 = vld [vmem:[%s14 + $0x70] sm:$0xff]
      %v3584 = vld [vmem:[%s14 + $0x78] sm:$0xff]
      %v3585 = vld [vmem:[%s14 + $0x80] sm:$0xff]
      %v3586 = vld [vmem:[%s14 + $0x88] sm:$0xff]
      %v3587 = vld [vmem:[%s14 + $0x90] sm:$0xff]
      %v3588 = vld [vmem:[%s14 + $0x98] sm:$0xff]
      %v3589 = vld [vmem:[%s14 + $0xa0] sm:$0xff]
      %v3590 = vld [vmem:[%s14 + $0xa8] sm:$0xff]
      %v3591 = vld [vmem:[%s14 + $0xb0] sm:$0xff]
      %v3592 = vld [vmem:[%s14 + $0xb8] sm:$0xff]
      %v3593 = vld [vmem:[%s14 + $0xc0] sm:$0xff]
      %v3594 = vld [vmem:[%s14 + $0xc8] sm:$0xff]
      %v3595 = vld [vmem:[%s14 + $0xd0] sm:$0xff]
      %v3596 = vld [vmem:[%s14 + $0xd8] sm:$0xff]
      %v3597 = vld [vmem:[%s14 + $0xe0] sm:$0xff]
      %v3598 = vld [vmem:[%s14 + $0xe8] sm:$0xff]
      %v3599 = vld [vmem:[%s14 + $0xf0] sm:$0xff]
      %v3600 = vld [vmem:[%s14 + $0xf8] sm:$0xff]
      %v3601 = vld [vmem:[%s14 + $0x100] sm:$0xff]
      %v3602 = vld [vmem:[%s14 + $0x108] sm:$0xff]
      %v3603 = vld [vmem:[%s14 + $0x110] sm:$0xff]
      %v3604 = vld [vmem:[%s14 + $0x118] sm:$0xff]
      %v3605 = vld [vmem:[%s14 + $0x120] sm:$0xff]
      %v3606 = vld [vmem:[%s14 + $0x128] sm:$0xff]
      %v3607 = vld [vmem:[%s14 + $0x130] sm:$0xff]
      %v3608 = vld [vmem:[%s14 + $0x138] sm:$0xff]
      %v3609 = vld [vmem:[%s14 + $0x140] sm:$0xff]
      %v3610 = vld [vmem:[%s14 + $0x148] sm:$0xff]
      %v3611 = vld [vmem:[%s14 + $0x150] sm:$0xff]
      %v3612 = vld [vmem:[%s14 + $0x158] sm:$0xff]
      %v3613 = vld [vmem:[%s14 + $0x160] sm:$0xff]
      %v3614 = vld [vmem:[%s14 + $0x168] sm:$0xff]
      %v3615 = vld [vmem:[%s14 + $0x170] sm:$0xff]
      %v3616 = vld [vmem:[%s14 + $0x178] sm:$0xff]
      %v3617 = vld [vmem:[%s14 + $0x180] sm:$0xff]
      %v3618 = vld [vmem:[%s14 + $0x188] sm:$0xff]
      %v3619 = vld [vmem:[%s14 + $0x190] sm:$0xff]
      %v3620 = vld [vmem:[%s14 + $0x198] sm:$0xff]
      %v3621 = vld [vmem:[%s14 + $0x1a0] sm:$0xff]
      %v3622 = vld [vmem:[%s14 + $0x1a8] sm:$0xff]
      %v3623 = vld [vmem:[%s14 + $0x1b0] sm:$0xff]
      %v3624 = vld [vmem:[%s14 + $0x1b8] sm:$0xff]
      %v3625 = vld [vmem:[%s14 + $0x1c0] sm:$0xff]
      %v3626 = vld [vmem:[%s14 + $0x1c8] sm:$0xff]
      %v3627 = vld [vmem:[%s14 + $0x1d0] sm:$0xff]
      %v3628 = vld [vmem:[%s14 + $0x1d8] sm:$0xff]
      %v3629 = vld [vmem:[%s14 + $0x1e0] sm:$0xff]
      %v3630 = vld [vmem:[%s14 + $0x1e8] sm:$0xff]
      %v3631 = vld [vmem:[%s14 + $0x1f0] sm:$0xff]
      %v3632 = vld [vmem:[%s14 + $0x1f8] sm:$0xff]
      %v3633 = vld [vmem:[%s15] sm:$0x1]
      %v3635 = vlaneseq
      %v3636 = vshrl.u32 %v3635, 7
      %v3637 = vsub.s32 0, %v3636
      %v3638 = vrot.slane %v3568, %v3637
      %v3639 = vlaneseq
      %v3640 = vshrl.u32 %v3639, 7
      %v3641 = vsub.s32 1, %v3640
      %v3642 = vrot.slane %v3568, %v3641
      %v3643 = vlaneseq
      %v3644 = vshrl.u32 %v3643, 7
      %v3645 = vsub.s32 2, %v3644
      %v3646 = vrot.slane %v3568, %v3645
      %v3647 = vlaneseq
      %v3648 = vshrl.u32 %v3647, 7
      %v3649 = vsub.s32 3, %v3648
      %v3650 = vrot.slane %v3568, %v3649
      %3655 = vmatprep.subr.mxu0 0.0
      %3656 = vmatpush1.msra.mxu0 %v3569
      %3657 = vmatprep.subr.mxu0 0.0
      %3658 = vmatpush1.msra.mxu0 %v3570
      %3659 = vmatprep.subr.mxu0 0.0
      %3660 = vmatpush1.msra.mxu0 %v3571
      %3661 = vmatprep.subr.mxu0 0.0
      %3662 = vmatpush1.msra.mxu0 %v3572
      %3663 = vmatprep.subr.mxu0 0.0
      %3664 = vmatpush1.msra.mxu0 %v3573
      %3665 = vmatprep.subr.mxu0 0.0
      %3666 = vmatpush1.msra.mxu0 %v3574
      %3667 = vmatprep.subr.mxu0 0.0
      %3668 = vmatpush1.msra.mxu0 %v3575
      %3669 = vmatprep.subr.mxu0 0.0
      %3670 = vmatpush1.msra.mxu0 %v3576
      %3671 = vmatprep.subr.mxu0 0.0
      %3672 = vmatpush1.msra.mxu0 %v3577
      %3673 = vmatprep.subr.mxu0 0.0
      %3674 = vmatpush1.msra.mxu0 %v3578
      %3675 = vmatprep.subr.mxu0 0.0
      %3676 = vmatpush1.msra.mxu0 %v3579
      %3677 = vmatprep.subr.mxu0 0.0
      %3678 = vmatpush1.msra.mxu0 %v3580
      %3679 = vmatprep.subr.mxu0 0.0
      %3680 = vmatpush1.msra.mxu0 %v3581
      %3681 = vmatprep.subr.mxu0 0.0
      %3682 = vmatpush1.msra.mxu0 %v3582
      %3683 = vmatprep.subr.mxu0 0.0
      %3684 = vmatpush1.msra.mxu0 %v3583
      %3685 = vmatprep.subr.mxu0 0.0
      %3686 = vmatpush1.msra.mxu0 %v3584
      %3687 = vmatprep.subr.mxu0 0.0
      %3688 = vmatpush1.msra.mxu0 %v3585
      %3689 = vmatprep.subr.mxu0 0.0
      %3690 = vmatpush1.msra.mxu0 %v3586
      %3691 = vmatprep.subr.mxu0 0.0
      %3692 = vmatpush1.msra.mxu0 %v3587
      %3693 = vmatprep.subr.mxu0 0.0
      %3694 = vmatpush1.msra.mxu0 %v3588
      %3695 = vmatprep.subr.mxu0 0.0
      %3696 = vmatpush1.msra.mxu0 %v3589
      %3697 = vmatprep.subr.mxu0 0.0
      %3698 = vmatpush1.msra.mxu0 %v3590
      %3699 = vmatprep.subr.mxu0 0.0
      %3700 = vmatpush1.msra.mxu0 %v3591
      %3701 = vmatprep.subr.mxu0 0.0
      %3702 = vmatpush1.msra.mxu0 %v3592
      %3703 = vmatprep.subr.mxu0 0.0
      %3704 = vmatpush1.msra.mxu0 %v3593
      %3705 = vmatprep.subr.mxu0 0.0
      %3706 = vmatpush1.msra.mxu0 %v3594
      %3707 = vmatprep.subr.mxu0 0.0
      %3708 = vmatpush1.msra.mxu0 %v3595
      %3709 = vmatprep.subr.mxu0 0.0
      %3710 = vmatpush1.msra.mxu0 %v3596
      %3711 = vmatprep.subr.mxu0 0.0
      %3712 = vmatpush1.msra.mxu0 %v3597
      %3713 = vmatprep.subr.mxu0 0.0
      %3714 = vmatpush1.msra.mxu0 %v3598
      %3715 = vmatprep.subr.mxu0 0.0
      %3716 = vmatpush1.msra.mxu0 %v3599
      %3717 = vmatprep.subr.mxu0 0.0
      %3718 = vmatpush1.msra.mxu0 %v3600
      %3719 = vmatprep.mubr.f32.mxu0 %v3642
      %3720 = vmatmul.mubr.f32.gmra.mrb[0].mxu0 %v3638
      %v3721 = vpop.f32.mrb[0].mxu0
      %v3722 = vadd.f32 %v3633, %v3721
      %v3723 = vpop.f32.mrb[0].mxu0
      %3724 = vdwg.mxu0
      %3725 = vmatprep.subr.mxu0 0.0
      %3726 = vmatpush1.msra.mxu0 %v3601
      %3727 = vmatprep.subr.mxu0 0.0
      %3728 = vmatpush1.msra.mxu0 %v3602
      %3729 = vmatprep.subr.mxu0 0.0
      %3730 = vmatpush1.msra.mxu0 %v3603
      %3731 = vmatprep.subr.mxu0 0.0
      %3732 = vmatpush1.msra.mxu0 %v3604
      %3733 = vmatprep.subr.mxu0 0.0
      %3734 = vmatpush1.msra.mxu0 %v3605
      %3735 = vmatprep.subr.mxu0 0.0
      %3736 = vmatpush1.msra.mxu0 %v3606
      %3737 = vmatprep.subr.mxu0 0.0
      %3738 = vmatpush1.msra.mxu0 %v3607
      %3739 = vmatprep.subr.mxu0 0.0
      %3740 = vmatpush1.msra.mxu0 %v3608
      %3741 = vmatprep.subr.mxu0 0.0
      %3742 = vmatpush1.msra.mxu0 %v3609
      %3743 = vmatprep.subr.mxu0 0.0
      %3744 = vmatpush1.msra.mxu0 %v3610
      %3745 = vmatprep.subr.mxu0 0.0
      %3746 = vmatpush1.msra.mxu0 %v3611
      %3747 = vmatprep.subr.mxu0 0.0
      %3748 = vmatpush1.msra.mxu0 %v3612
      %3749 = vmatprep.subr.mxu0 0.0
      %3750 = vmatpush1.msra.mxu0 %v3613
      %3751 = vmatprep.subr.mxu0 0.0
      %3752 = vmatpush1.msra.mxu0 %v3614
      %3753 = vmatprep.subr.mxu0 0.0
      %3754 = vmatpush1.msra.mxu0 %v3615
      %3755 = vmatprep.subr.mxu0 0.0
      %3756 = vmatpush1.msra.mxu0 %v3616
      %3757 = vmatprep.subr.mxu0 0.0
      %3758 = vmatpush1.msra.mxu0 %v3617
      %3759 = vmatprep.subr.mxu0 0.0
      %3760 = vmatpush1.msra.mxu0 %v3618
      %3761 = vmatprep.subr.mxu0 0.0
      %3762 = vmatpush1.msra.mxu0 %v3619
      %3763 = vmatprep.subr.mxu0 0.0
      %3764 = vmatpush1.msra.mxu0 %v3620
      %3765 = vmatprep.subr.mxu0 0.0
      %3766 = vmatpush1.msra.mxu0 %v3621
      %3767 = vmatprep.subr.mxu0 0.0
      %3768 = vmatpush1.msra.mxu0 %v3622
      %3769 = vmatprep.subr.mxu0 0.0
      %3770 = vmatpush1.msra.mxu0 %v3623
      %3771 = vmatprep.subr.mxu0 0.0
      %3772 = vmatpush1.msra.mxu0 %v3624
      %3773 = vmatprep.subr.mxu0 0.0
      %3774 = vmatpush1.msra.mxu0 %v3625
      %3775 = vmatprep.subr.mxu0 0.0
      %3776 = vmatpush1.msra.mxu0 %v3626
      %3777 = vmatprep.subr.mxu0 0.0
      %3778 = vmatpush1.msra.mxu0 %v3627
      %3779 = vmatprep.subr.mxu0 0.0
      %3780 = vmatpush1.msra.mxu0 %v3628
      %3781 = vmatprep.subr.mxu0 0.0
      %3782 = vmatpush1.msra.mxu0 %v3629
      %3783 = vmatprep.subr.mxu0 0.0
      %3784 = vmatpush1.msra.mxu0 %v3630
      %3785 = vmatprep.subr.mxu0 0.0
      %3786 = vmatpush1.msra.mxu0 %v3631
      %3787 = vmatprep.subr.mxu0 0.0
      %3788 = vmatpush1.msra.mxu0 %v3632
      %3789 = vmatprep.mubr.f32.mxu0 %v3650
      %3790 = vmatmul.mubr.f32.gmra.mrb[0].mxu0 %v3646
      %v3791 = vpop.f32.mrb[0].mxu0
      %v3792 = vadd.f32 %v3722, %v3791
      %v3793 = vpop.f32.mrb[0].mxu0
      %3794 = vdwg.mxu0
      %v3795 = vld [vmem:[%s16] sm:$0x7f]
      %v3796 = vlaneseq
      %v3797 = vshrl.u32 %v3796, 7
      %v3798 = vsub.s32 0, %v3797
      %v3799 = vrot.slane %v3792, %v3798
      %v3800 = vmul.f32 %v3795, %v3799
      %v3801 = vld [vmem:[%s17] sm:$0xff]
      %v3802 = vld [vmem:[%s17 + $0x8] sm:$0xff]
      %v3803 = vld [vmem:[%s17 + $0x10] sm:$0xff]
      %v3804 = vld [vmem:[%s17 + $0x18] sm:$0xff]
      %v3805 = vld [vmem:[%s17 + $0x20] sm:$0xff]
      %v3806 = vld [vmem:[%s17 + $0x28] sm:$0xff]
      %v3807 = vld [vmem:[%s17 + $0x30] sm:$0xff]
      %v3808 = vld [vmem:[%s17 + $0x38] sm:$0xff]
      %v3809 = vld [vmem:[%s17 + $0x40] sm:$0xff]
      %v3810 = vld [vmem:[%s17 + $0x48] sm:$0xff]
      %v3811 = vld [vmem:[%s17 + $0x50] sm:$0xff]
      %v3812 = vld [vmem:[%s17 + $0x58] sm:$0xff]
      %v3813 = vld [vmem:[%s17 + $0x60] sm:$0xff]
      %v3814 = vld [vmem:[%s17 + $0x68] sm:$0xff]
      %vm3815 = vcmask 916480
      %v3817 = vsel %vm3815, %v3800, 0
      %3819 = vmatprep.subr.mxu0 0.0
      %3820 = vmatpush1.msra.mxu0 %v3801
      %3821 = vmatprep.subr.mxu0 0.0
      %3822 = vmatpush1.msra.mxu0 %v3802
      %3823 = vmatprep.subr.mxu0 0.0
      %3824 = vmatpush1.msra.mxu0 %v3803
      %3825 = vmatprep.subr.mxu0 0.0
      %3826 = vmatpush1.msra.mxu0 %v3804
      %3827 = vmatprep.subr.mxu0 0.0
      %3828 = vmatpush1.msra.mxu0 %v3805
      %3829 = vmatprep.subr.mxu0 0.0
      %3830 = vmatpush1.msra.mxu0 %v3806
      %3831 = vmatprep.subr.mxu0 0.0
      %3832 = vmatpush1.msra.mxu0 %v3807
      %3833 = vmatprep.subr.mxu0 0.0
      %3834 = vmatpush1.msra.mxu0 %v3808
      %3835 = vmatprep.subr.mxu0 0.0
      %3836 = vmatpush1.msra.mxu0 %v3809
      %3837 = vmatprep.subr.mxu0 0.0
      %3838 = vmatpush1.msra.mxu0 %v3810
      %3839 = vmatprep.subr.mxu0 0.0
      %3840 = vmatpush1.msra.mxu0 %v3811
      %3841 = vmatprep.subr.mxu0 0.0
      %3842 = vmatpush1.msra.mxu0 %v3812
      %3843 = vmatprep.subr.mxu0 0.0
      %3844 = vmatpush1.msra.mxu0 %v3813
      %3845 = vmatprep.subr.mxu0 0.0
      %3846 = vmatpush1.msra.mxu0 %v3814
      %3847 = vmatprep.subr.mxu0 0.0
      %3848 = vmatpush1.msra.mxu0 0.0
      %3849 = vmatprep.subr.mxu0 0.0
      %3850 = vmatpush1.msra.mxu0 0.0
      %3851 = vmatprep.subr.mxu0 0.0
      %3852 = vmatpush1.msra.mxu0 0.0
      %3853 = vmatprep.subr.mxu0 0.0
      %3854 = vmatpush1.msra.mxu0 0.0
      %3855 = vmatprep.subr.mxu0 0.0
      %3856 = vmatpush1.msra.mxu0 0.0
      %3857 = vmatprep.subr.mxu0 0.0
      %3858 = vmatpush1.msra.mxu0 0.0
      %3859 = vmatprep.subr.mxu0 0.0
      %3860 = vmatpush1.msra.mxu0 0.0
      %3861 = vmatprep.subr.mxu0 0.0
      %3862 = vmatpush1.msra.mxu0 0.0
      %3863 = vmatprep.subr.mxu0 0.0
      %3864 = vmatpush1.msra.mxu0 0.0
      %3865 = vmatprep.subr.mxu0 0.0
      %3866 = vmatpush1.msra.mxu0 0.0
      %3867 = vmatprep.subr.mxu0 0.0
      %3868 = vmatpush1.msra.mxu0 0.0
      %3869 = vmatprep.subr.mxu0 0.0
      %3870 = vmatpush1.msra.mxu0 0.0
      %3871 = vmatprep.subr.mxu0 0.0
      %3872 = vmatpush1.msra.mxu0 0.0
      %3873 = vmatprep.subr.mxu0 0.0
      %3874 = vmatpush1.msra.mxu0 0.0
      %3875 = vmatprep.subr.mxu0 0.0
      %3876 = vmatpush1.msra.mxu0 0.0
      %3877 = vmatprep.subr.mxu0 0.0
      %3878 = vmatpush1.msra.mxu0 0.0
      %3879 = vmatprep.subr.mxu0 0.0
      %3880 = vmatpush1.msra.mxu0 0.0
      %3881 = vmatprep.subr.mxu0 0.0
      %3882 = vmatpush1.msra.mxu0 0.0
      %3883 = vmatprep.mubr.f32.mxu0 0.0
      %3884 = vmatmul.mubr.f32.gmra.mrb[0].mxu0 %v3817
      %v3885 = vpop.f32.mrb[0].mxu0
      %v3886 = vadd.f32 0.0, %v3885
      %v3887 = vpop.f32.mrb[0].mxu0
      %3888 = vdwg.mxu0
      %v3889 = vlaneseq
      %v3890 = vand.u32 %v3889, 127
      %vm3891 = vcmp.lt.s32.totalorder %v3890, 6
      %v3892 = vsub.f32 0.0, %v3886
      %v3893 = vmul.f32 %v3892, 1.442695
      %v3894 = vpow.pop %v3893
      %v3895 = vadd.f32 %v3894, 1.0
      %v3896 = vrcp.pop %v3895
      %v3897 = vsel %vm3891, -1e+30, %v3886
      %vm3898 = vcmask 129024
      %v3899 = vsel %vm3898, %v3897, -inf
      %3900 = vmax.xlane.f32.xlu0 %v3899
      %v3901 = vpop.xlane.xlu0 %3900
      %v3902 = vsub.f32 %v3897, %v3901
      %v3903 = vmul.f32 %v3902, 1.442695
      %v3904 = vpow.pop %v3903
      %v3905 = vsel %vm3898, %v3904, 0.0
      %3906 = vadd.xlane.f32.xlu0 %v3905
      %v3907 = vpop.xlane.xlu0 %3906
      %v3908 = vrcp.pop %v3907
      %v3909 = vmul.f32 %v3904, %v3908
      %v3910 = vsel %vm3891, %v3896, %v3909
      %3911 = vst.msk [vmem:[%s573] sm:$0x7f] %vm3898, %v3910
      %p3912 = scmp.lt.s32.totalorder %s29, 1
      %s3913 = scalar_select %p3912, %s29, 1
      %s3914 = smul.addr %s3913, 8
      %s3915 = scalar_lea.vmem %s18, %s3914
      // Predicated region
      $region93: #{speech_yolo_forward.1} parent=91 // pred_check
        %p3916 = pneg %p430
      $region94: #{speech_yolo_forward.1} parent=91 // pred_check_branch
        %3918 = sbr.rel (%p3916) target = $region96
      $region95: #{speech_yolo_forward.1} parent=91 // pred_region
        _
      $region96: #{speech_yolo_forward.1} parent=91 // pred_fallthru
        _
    $region92: #{speech_yolo_forward.1} parent=5 // pred_fallthru
      _
    %p3919 = scmp.le.s32.totalorder 2, %s24
    // Predicated region
    $region97: #{speech_yolo_forward.1} parent=5 // pred_check
      %p3920 = pneg %p3919
    $region98: #{speech_yolo_forward.1} parent=5 // pred_check_branch
      %3922 = sbr.rel (%p3920) target = $region100
    $region99: #{speech_yolo_forward.1} parent=5 // pred_region
      %s3923 = ssub.s32 %s24, 2
      // Predicated region
      $region101: #{speech_yolo_forward.1} parent=99 // pred_check
        %p3924 = pneg %p436
      $region102: #{speech_yolo_forward.1} parent=99 // pred_check_branch
        %3926 = sbr.rel (%p3924) target = $region104
      $region103: #{speech_yolo_forward.1} parent=99 // pred_region
        %p3927 = scmp.lt.s32.totalorder %s30, 1
        %s3928 = scalar_select %p3927, %s30, 1
        %s3929 = smul.addr %s3928, 8
        %s3930 = scalar_lea.vmem %s18, %s3929
      $region104: #{speech_yolo_forward.1} parent=99 // pred_fallthru
        _
    $region100: #{speech_yolo_forward.1} parent=5 // pred_fallthru
      _
  $region6: #{speech_yolo_forward.1} parent=0 // loop_footer
    %s28 = sadd.s32 1, %s24
  $region7: #{speech_yolo_forward.1} parent=0 // loop_footer_branch
    %23 = sbr.rel target = $region3
  $region8: #{speech_yolo_forward.1} parent=0 // loop_exit
    _

</llo_original>
